<compile_context>
chip_gen: v6e
topology: v6e:2x2x1
jax: 0.10.0
libtpu: 0.0.40
codegen_flags: <defaults>
</compile_context>

<pallas_src>
import functools

import numpy as np
import jax
import jax.numpy as jnp
from jax import lax
from jax.experimental import pallas as pl
from jax.experimental.pallas import tpu as pltpu


# ----------------------------------------------------------------------------
# one-time pltpu.roll capability / sign probe (tiny kernel, run once).
#   -1 -> pltpu.roll matches jnp.roll (out[p] = x[p - shift])  => use shift=-s
#   +1 -> opposite convention (out[p] = x[p + shift])          => use shift=+s
#    0 -> roll not usable here; fall back to zero-pad + static-slice taps
# ----------------------------------------------------------------------------
_ROLL_SIGN = None


def _roll_sign():
    global _ROLL_SIGN
    if _ROLL_SIGN is not None:
        return _ROLL_SIGN
    try:
        def probe(x_ref, o_ref):
            o_ref[...] = pltpu.roll(x_ref[...], 1, axis=1)

        x = lax.broadcasted_iota(jnp.float32, (8, 256), 1)
        out = pl.pallas_call(
            probe, out_shape=jax.ShapeDtypeStruct((8, 256), jnp.float32))(x)
        v = float(out[0, 0])
        _ROLL_SIGN = -1 if v == 255.0 else (1 if v == 1.0 else 0)
    except Exception:
        _ROLL_SIGN = 0
    return _ROLL_SIGN


# ----------------------------------------------------------------------------
# small integer helpers (power-of-two dims lower to shifts/ands on the VPU)
# ----------------------------------------------------------------------------
def _idiv(x, d):
    return (x >> (d.bit_length() - 1)) if (d & (d - 1) == 0) else (x // d)


def _imod(x, d):
    return (x & (d - 1)) if (d & (d - 1) == 0) else (x % d)


# ----------------------------------------------------------------------------
# in-kernel constant builders (iota compares; no HBM constants shipped)
# ----------------------------------------------------------------------------
def _tap_masks(C, H, W):
    """Per-tap border masks for a 3x3 same conv on (C, H*W) lane-flattened data."""
    HW = H * W
    lane = lax.broadcasted_iota(jnp.int32, (C, HW), 1)
    col = _imod(lane, W)
    row = _idiv(lane, W)
    hmask = {0: col >= 1, 1: None, 2: col <= W - 2}
    vmask = {0: row >= 1, 1: None, 2: row <= H - 2}
    masks = {}
    for ky in range(3):
        for kx in range(3):
            h, v = hmask[kx], vmask[ky]
            if h is None and v is None:
                masks[(ky, kx)] = None
            elif h is None:
                masks[(ky, kx)] = v.astype(jnp.float32)
            elif v is None:
                masks[(ky, kx)] = h.astype(jnp.float32)
            else:
                masks[(ky, kx)] = jnp.logical_and(h, v).astype(jnp.float32)
    return masks


def _upsample_op(h_src, w_src):
    """(hs*ws, 4*hs*ws) one-hot so that  src(C, hs*ws) @ op  = nearest-2x up."""
    H, W = 2 * h_src, 2 * w_src
    hw_s, hw_b = h_src * w_src, H * W
    s_i = lax.broadcasted_iota(jnp.int32, (hw_s, hw_b), 0)
    d_i = lax.broadcasted_iota(jnp.int32, (hw_s, hw_b), 1)
    dy = _idiv(d_i, W)
    dx = d_i - dy * W
    src = _idiv(dy, 2) * w_src + _idiv(dx, 2)
    return (s_i == src).astype(jnp.float32)


def _pool_gather_op(H, W):
    """(H*W, (H//2)*(W//2)) one-hot gather of each 2x2 window's top-left corner."""
    h, w = H // 2, W // 2
    hw_in, hw_out = H * W, h * w
    s_i = lax.broadcasted_iota(jnp.int32, (hw_in, hw_out), 0)
    o_i = lax.broadcasted_iota(jnp.int32, (hw_in, hw_out), 1)
    oy = _idiv(o_i, w)
    ox = o_i - oy * w
    src = (2 * oy) * W + 2 * ox
    return (s_i == src).astype(jnp.float32)


# ----------------------------------------------------------------------------
# in-kernel compute helpers
# ----------------------------------------------------------------------------
def _shift_taps(z, shifts, W, roll_sign):
    """Returns arrays t_s with t_s[:, p] = z[:, p + s].  Out-of-range positions
    contain wrapped/zero junk and MUST be masked or never gathered by caller."""
    C, HW = z.shape
    if roll_sign != 0 and HW % 128 == 0:
        return [z if s == 0 else pltpu.roll(z, (roll_sign * s) % HW, axis=1)
                for s in shifts]
    pad = W + 1
    zpad = jnp.concatenate(
        [jnp.zeros((C, pad), z.dtype), z, jnp.zeros((C, pad), z.dtype)], axis=1)
    return [z if s == 0 else zpad[:, pad + s: pad + s + HW] for s in shifts]


def _conv3x3(z, w_big, b, H, W, masks, roll_sign):
    """3x3 same conv as one im2col MXU matmul: (C, 9C) @ (9C, H*W)."""
    keys = [(ky, kx) for ky in range(3) for kx in range(3)]
    shifts = [(ky - 1) * W + (kx - 1) for (ky, kx) in keys]
    taps = _shift_taps(z, shifts, W, roll_sign)
    masked = [t if masks[k] is None else t * masks[k] for k, t in zip(keys, taps)]
    stack = jnp.concatenate(masked, axis=0)                      # (9C, HW)
    return jnp.dot(w_big, stack, preferred_element_type=jnp.float32) + b


def _maxpool2x2(z, gather_op, H, W, roll_sign):
    """2x2 maxpool: 3 shifts + elementwise max, then ONE one-hot gather matmul.
    Only even (y, x) source positions are gathered, so shifted junk never leaks."""
    taps = _shift_taps(z, [0, 1, W, W + 1], W, roll_sign)
    m = taps[0]
    for t in taps[1:]:
        m = jnp.maximum(m, t)
    return jnp.dot(m, gather_op, preferred_element_type=jnp.float32)


# ----------------------------------------------------------------------------
# the fused BiFPN kernel (whole batch, whole pyramid, all convs in one call)
# ----------------------------------------------------------------------------
def bifpn_kernel(coef_ref, x_ref, w_ref, b_ref, o_ref, *,
                 shapes, offsets, slots, batch, roll_sign):
    L = len(shapes)
    C = x_ref.shape[1]
    hw = [h * w for h, w in shapes]

    # hoisted constants: built once from iota compares, reused for both images
    masks = {s: _tap_masks(C, *s) for s in set(shapes)}
    up_ops = [_upsample_op(*shapes[l + 1]) for l in range(L - 1)]    # l+1 -> l
    pool_ops = [_pool_gather_op(*shapes[l]) for l in range(L - 1)]   # l -> l+1

    def conv(z, step, lvl):
        return _conv3x3(z, w_ref[step], b_ref[step], *shapes[lvl],
                        masks[shapes[lvl]], roll_sign)

    for n in range(batch):                           # static unroll over batch
        img = x_ref[n]                               # (C, tot) lane-dense load
        path = [img[:, offsets[l]: offsets[l] + hw[l]] for l in range(L)]
        orig = list(path)                            # "inputs_clone"

        step = 0
        # ---- top-down pathway ------------------------------------------------
        for i in range(L - 1, 0, -1):
            tgt = i - 1
            up = jnp.dot(path[i], up_ops[tgt], preferred_element_type=jnp.float32)
            ca = coef_ref[3 * step + 0]
            cb = coef_ref[3 * step + 1]
            path[tgt] = conv(ca * path[tgt] + cb * up, step, tgt)
            step += 1

        # ---- bottom-up pathway -----------------------------------------------
        for i in range(0, L - 2):
            tgt = i + 1
            pooled = _maxpool2x2(path[i], pool_ops[i], *shapes[i], roll_sign)
            ca = coef_ref[3 * step + 0]
            cb = coef_ref[3 * step + 1]
            cc = coef_ref[3 * step + 2]
            path[tgt] = conv(ca * path[tgt] + cb * pooled + cc * orig[tgt], step, tgt)
            step += 1

        # ---- last output level -----------------------------------------------
        tgt = L - 1
        pooled = _maxpool2x2(path[L - 2], pool_ops[L - 2], *shapes[L - 2], roll_sign)
        ca = coef_ref[3 * step + 0]
        cb = coef_ref[3 * step + 1]
        path[tgt] = conv(ca * path[tgt] + cb * pooled, step, tgt)

        # ---- one lane-dense writeback of the whole pyramid --------------------
        pieces = []
        for l in range(L):
            pieces.append(path[l])
            pad = slots[l] - hw[l]
            if pad:
                pieces.append(jnp.zeros((C, pad), jnp.float32))
        o_ref[n] = jnp.concatenate(pieces, axis=1)


# ----------------------------------------------------------------------------
# wrapper
# ----------------------------------------------------------------------------
def bifpn_forward(inputs, w1_param, w2_param, conv_ws, conv_bs, eps=1e-4):
    L = len(inputs)
    N, C = int(inputs[0].shape[0]), int(inputs[0].shape[1])
    shapes = tuple((int(x.shape[2]), int(x.shape[3])) for x in inputs)
    hw = [h * w for h, w in shapes]
    nsteps = 2 * (L - 1)

    # 128-lane aligned slot per level inside one packed slab
    slots = tuple(((s + 127) // 128) * 128 for s in hw)
    offsets, cur = [], 0
    for s in slots:
        offsets.append(cur)
        cur += s
    offsets, tot = tuple(offsets), cur

    # normalized fusion weights (mirrors the PyTorch forward's scalar prep)
    w1 = jax.nn.relu(w1_param)
    w1 = w1 / (jnp.sum(w1, axis=0) + eps)
    w2 = jax.nn.relu(w2_param)
    w2 = w2 / (jnp.sum(w2, axis=0) + eps)

    zero = jnp.zeros((), jnp.float32)
    rows = []
    for i in range(L - 1, 0, -1):                                    # top-down
        d = w1[0, i - 1] + w1[1, i - 1] + eps
        rows += [w1[0, i - 1] / d, w1[1, i - 1] / d, zero]
    for i in range(0, L - 2):                                        # bottom-up
        d = w2[0, i] + w2[1, i] + w2[2, i] + eps
        rows += [w2[0, i] / d, w2[1, i] / d, w2[2, i] / d]
    d = w1[0, L - 1] + w1[1, L - 1] + eps                            # last level
    rows += [w1[0, L - 1] / d, w1[1, L - 1] / d, zero]
    coefs = jnp.stack(rows).astype(jnp.float32)                      # (3*nsteps,)

    # im2col conv weights: W_big[o, t*C + c] = w[o, c, ky, kx],  t = 3*ky + kx
    w_big = jnp.stack([jnp.transpose(w.reshape(C, C, 9), (0, 2, 1)).reshape(C, 9 * C)
                       for w in conv_ws]).astype(jnp.float32)        # (nsteps, C, 9C)
    b_big = jnp.stack([b.reshape(C, 1) for b in conv_bs]).astype(jnp.float32)

    # wrapper-side layout plumbing only: pack pyramid into one lane-dense slab
    pieces = []
    for l, x in enumerate(inputs):
        pieces.append(x.reshape(N, C, hw[l]).astype(jnp.float32))
        pad = slots[l] - hw[l]
        if pad:
            pieces.append(jnp.zeros((N, C, pad), jnp.float32))
    slab = jnp.concatenate(pieces, axis=2)                           # (N, C, tot)

    kernel = functools.partial(
        bifpn_kernel, shapes=shapes, offsets=offsets, slots=slots,
        batch=N, roll_sign=_roll_sign())

    out_slab = pl.pallas_call(
        kernel,
        in_specs=[
            pl.BlockSpec(memory_space=pltpu.MemorySpace.SMEM),   # fusion coefs
            pl.BlockSpec(memory_space=pltpu.MemorySpace.VMEM),   # packed pyramid
            pl.BlockSpec(memory_space=pltpu.MemorySpace.VMEM),   # conv weights
            pl.BlockSpec(memory_space=pltpu.MemorySpace.VMEM),   # conv biases
        ],
        out_specs=pl.BlockSpec(memory_space=pltpu.MemorySpace.VMEM),
        out_shape=jax.ShapeDtypeStruct((N, C, tot), jnp.float32),
    )(coefs, slab, w_big, b_big)

    return [out_slab[:, :, offsets[l]: offsets[l] + hw[l]].reshape(N, C, *shapes[l])
            for l in range(L)]


# ----------------------------------------------------------------------------
# pure-JAX reference mirroring the PyTorch forward
# ----------------------------------------------------------------------------
def ref_bifpn(inputs, w1_param, w2_param, conv_ws, conv_bs, eps=1e-4):
    L = len(inputs)
    w1 = jax.nn.relu(w1_param)
    w1 = w1 / (jnp.sum(w1, axis=0) + eps)
    w2 = jax.nn.relu(w2_param)
    w2 = w2 / (jnp.sum(w2, axis=0) + eps)
    path = list(inputs)
    clone = list(inputs)

    def conv(x, w, b):
        y = lax.conv_general_dilated(
            x, w, window_strides=(1, 1), padding=((1, 1), (1, 1)),
            dimension_numbers=("NCHW", "OIHW", "NCHW"),
            precision=jax.lax.Precision.HIGHEST)
        return y + b[None, :, None, None]

    def up2(x):
        return jnp.repeat(jnp.repeat(x, 2, axis=2), 2, axis=3)

    def pool2(x):
        n, c, h, w = x.shape
        return jnp.max(x.reshape(n, c, h // 2, 2, w // 2, 2), axis=(3, 5))

    k = 0
    for i in range(L - 1, 0, -1):
        path[i - 1] = (w1[0, i - 1] * path[i - 1] + w1[1, i - 1] * up2(path[i])) / (
            w1[0, i - 1] + w1[1, i - 1] + eps)
        path[i - 1] = conv(path[i - 1], conv_ws[k], conv_bs[k]); k += 1
    for i in range(0, L - 2):
        path[i + 1] = (w2[0, i] * path[i + 1] + w2[1, i] * pool2(path[i])
                       + w2[2, i] * clone[i + 1]) / (
            w2[0, i] + w2[1, i] + w2[2, i] + eps)
        path[i + 1] = conv(path[i + 1], conv_ws[k], conv_bs[k]); k += 1
    path[L - 1] = (w1[0, L - 1] * path[L - 1] + w1[1, L - 1] * pool2(path[L - 2])) / (
        w1[0, L - 1] + w1[1, L - 1] + eps)
    path[L - 1] = conv(path[L - 1], conv_ws[k], conv_bs[k]); k += 1
    return path


if __name__ == "__main__":
    key = jax.random.PRNGKey(0)

    # Small BiFPN config: levels=4, channels=8, batch=2, base spatial 16x16.
    L, N, C, base = 4, 2, 8, 16
    eps = 1e-4
    nsteps = 2 * (L - 1)
    shapes = [(base // (2 ** l), base // (2 ** l)) for l in range(L)]

    k_in, k_w1, k_w2, k_cw, k_cb = jax.random.split(key, 5)
    in_keys = jax.random.split(k_in, L)
    cw_keys = jax.random.split(k_cw, nsteps)
    cb_keys = jax.random.split(k_cb, nsteps)

    inputs = [jax.random.normal(in_keys[l], (N, C, h, w), jnp.float32)
              for l, (h, w) in enumerate(shapes)]
    w1p = jax.random.uniform(k_w1, (2, L), jnp.float32, 0.2, 1.0)
    w2p = jax.random.uniform(k_w2, (3, L - 2), jnp.float32, 0.2, 1.0)
    wscale = (2.0 / (9 * C + 9 * C)) ** 0.5
    conv_ws = [wscale * jax.random.normal(cw_keys[i], (C, C, 3, 3), jnp.float32)
               for i in range(nsteps)]
    conv_bs = [0.1 * jax.random.normal(cb_keys[i], (C,), jnp.float32)
               for i in range(nsteps)]

    outs = jax.block_until_ready(
        bifpn_forward(inputs, w1p, w2p, conv_ws, conv_bs, eps=eps))
    refs = jax.block_until_ready(
        ref_bifpn(inputs, w1p, w2p, conv_ws, conv_bs, eps=eps))

    max_err = 0.0
    ref_scale = 1.0
    for o, r in zip(outs, refs):
        assert o.shape == r.shape, (o.shape, r.shape)
        max_err = max(max_err, float(jnp.max(jnp.abs(o - r))))
        ref_scale = max(ref_scale, float(jnp.max(jnp.abs(r))))
    assert max_err <= 2e-2 * ref_scale, (
        f"mismatch vs reference: max abs err {max_err} (ref scale {ref_scale})")

    print("KERNEL_OK")
</pallas_src>

<mosaic_0001>
module attributes {stable_mosaic.version = 11 : i64} {
  func.func @probe(%arg0: memref<8x256xf32, #tpu.memory_space<vmem>>, %arg1: memref<8x256xf32, #tpu.memory_space<vmem>>) attributes {dimension_semantics = [], scalar_prefetch = 0 : i64, scratch_operands = 0 : i64, tpu.core_type = #tpu.core_type<tc>} {
    %c0 = arith.constant 0 : index
    %c0_0 = arith.constant 0 : index
    %0 = vector.load %arg0[%c0, %c0_0] : memref<8x256xf32, #tpu.memory_space<vmem>>, vector<8x256xf32>
    %c1_i32 = arith.constant 1 : i32
    %1 = tpu.dynamic_rotate %0 by %c1_i32 dim 1 : vector<8x256xf32>, i32 -> vector<8x256xf32>
    %c0_1 = arith.constant 0 : index
    %c0_2 = arith.constant 0 : index
    %2 = vector.load %arg1[%c0_1, %c0_2] : memref<8x256xf32, #tpu.memory_space<vmem>>, vector<8x256xf32>
    tpu.vector_store %arg1[%c0_1, %c0_2], %1 {strides = array<i32>} : memref<8x256xf32, #tpu.memory_space<vmem>>, vector<8x256xf32>,
    return
  }
}

module attributes {stable_mosaic.version = 11 : i64} {
  func.func @bifpn_kernel(%arg0: memref<18xf32, #tpu.memory_space<smem>>, %arg1: memref<2x8x640xf32, #tpu.memory_space<vmem>>, %arg2: memref<6x8x72xf32, #tpu.memory_space<vmem>>, %arg3: memref<6x8x1xf32, #tpu.memory_space<vmem>>, %arg4: memref<2x8x640xf32, #tpu.memory_space<vmem>>) attributes {dimension_semantics = [], scalar_prefetch = 0 : i64, scratch_operands = 0 : i64, tpu.core_type = #tpu.core_type<tc>} {
    %0 = tpu.iota {dimensions = array<i32: 1>} : vector<8x16xi32>
    %c3_i32 = arith.constant 3 : i32
    %1 = vector.broadcast %c3_i32 : i32 to vector<8x16xi32>
    %2 = arith.andi %0, %1 : vector<8x16xi32>
    %c2_i32 = arith.constant 2 : i32
    %3 = vector.broadcast %c2_i32 : i32 to vector<8x16xi32>
    %4 = arith.shrsi %0, %3 : vector<8x16xi32>
    %c1_i32 = arith.constant 1 : i32
    %5 = vector.broadcast %c1_i32 : i32 to vector<8x16xi32>
    %6 = arith.cmpi sge, %2, %5 : vector<8x16xi32>
    %c2_i32_0 = arith.constant 2 : i32
    %7 = vector.broadcast %c2_i32_0 : i32 to vector<8x16xi32>
    %8 = arith.cmpi sle, %2, %7 : vector<8x16xi32>
    %c1_i32_1 = arith.constant 1 : i32
    %9 = vector.broadcast %c1_i32_1 : i32 to vector<8x16xi32>
    %10 = arith.cmpi sge, %4, %9 : vector<8x16xi32>
    %c2_i32_2 = arith.constant 2 : i32
    %11 = vector.broadcast %c2_i32_2 : i32 to vector<8x16xi32>
    %12 = arith.cmpi sle, %4, %11 : vector<8x16xi32>
    %13 = arith.andi %6, %10 : vector<8x16xi1>
    %14 = arith.extui %13 : vector<8x16xi1> to vector<8x16xi32>
    %15 = arith.sitofp %14 : vector<8x16xi32> to vector<8x16xf32>
    %16 = arith.extui %10 : vector<8x16xi1> to vector<8x16xi32>
    %17 = arith.sitofp %16 : vector<8x16xi32> to vector<8x16xf32>
    %18 = arith.andi %8, %10 : vector<8x16xi1>
    %19 = arith.extui %18 : vector<8x16xi1> to vector<8x16xi32>
    %20 = arith.sitofp %19 : vector<8x16xi32> to vector<8x16xf32>
    %21 = arith.extui %6 : vector<8x16xi1> to vector<8x16xi32>
    %22 = arith.sitofp %21 : vector<8x16xi32> to vector<8x16xf32>
    %23 = arith.extui %8 : vector<8x16xi1> to vector<8x16xi32>
    %24 = arith.sitofp %23 : vector<8x16xi32> to vector<8x16xf32>
    %25 = arith.andi %6, %12 : vector<8x16xi1>
    %26 = arith.extui %25 : vector<8x16xi1> to vector<8x16xi32>
    %27 = arith.sitofp %26 : vector<8x16xi32> to vector<8x16xf32>
    %28 = arith.extui %12 : vector<8x16xi1> to vector<8x16xi32>
    %29 = arith.sitofp %28 : vector<8x16xi32> to vector<8x16xf32>
    %30 = arith.andi %8, %12 : vector<8x16xi1>
    %31 = arith.extui %30 : vector<8x16xi1> to vector<8x16xi32>
    %32 = arith.sitofp %31 : vector<8x16xi32> to vector<8x16xf32>
    %33 = tpu.iota {dimensions = array<i32: 1>} : vector<8x64xi32>
    %c7_i32 = arith.constant 7 : i32
    %34 = vector.broadcast %c7_i32 : i32 to vector<8x64xi32>
    %35 = arith.andi %33, %34 : vector<8x64xi32>
    %c3_i32_3 = arith.constant 3 : i32
    %36 = vector.broadcast %c3_i32_3 : i32 to vector<8x64xi32>
    %37 = arith.shrsi %33, %36 : vector<8x64xi32>
    %c1_i32_4 = arith.constant 1 : i32
    %38 = vector.broadcast %c1_i32_4 : i32 to vector<8x64xi32>
    %39 = arith.cmpi sge, %35, %38 : vector<8x64xi32>
    %c6_i32 = arith.constant 6 : i32
    %40 = vector.broadcast %c6_i32 : i32 to vector<8x64xi32>
    %41 = arith.cmpi sle, %35, %40 : vector<8x64xi32>
    %c1_i32_5 = arith.constant 1 : i32
    %42 = vector.broadcast %c1_i32_5 : i32 to vector<8x64xi32>
    %43 = arith.cmpi sge, %37, %42 : vector<8x64xi32>
    %c6_i32_6 = arith.constant 6 : i32
    %44 = vector.broadcast %c6_i32_6 : i32 to vector<8x64xi32>
    %45 = arith.cmpi sle, %37, %44 : vector<8x64xi32>
    %46 = arith.andi %39, %43 : vector<8x64xi1>
    %47 = arith.extui %46 : vector<8x64xi1> to vector<8x64xi32>
    %48 = arith.sitofp %47 : vector<8x64xi32> to vector<8x64xf32>
    %49 = arith.extui %43 : vector<8x64xi1> to vector<8x64xi32>
    %50 = arith.sitofp %49 : vector<8x64xi32> to vector<8x64xf32>
    %51 = arith.andi %41, %43 : vector<8x64xi1>
    %52 = arith.extui %51 : vector<8x64xi1> to vector<8x64xi32>
    %53 = arith.sitofp %52 : vector<8x64xi32> to vector<8x64xf32>
    %54 = arith.extui %39 : vector<8x64xi1> to vector<8x64xi32>
    %55 = arith.sitofp %54 : vector<8x64xi32> to vector<8x64xf32>
    %56 = arith.extui %41 : vector<8x64xi1> to vector<8x64xi32>
    %57 = arith.sitofp %56 : vector<8x64xi32> to vector<8x64xf32>
    %58 = arith.andi %39, %45 : vector<8x64xi1>
    %59 = arith.extui %58 : vector<8x64xi1> to vector<8x64xi32>
    %60 = arith.sitofp %59 : vector<8x64xi32> to vector<8x64xf32>
    %61 = arith.extui %45 : vector<8x64xi1> to vector<8x64xi32>
    %62 = arith.sitofp %61 : vector<8x64xi32> to vector<8x64xf32>
    %63 = arith.andi %41, %45 : vector<8x64xi1>
    %64 = arith.extui %63 : vector<8x64xi1> to vector<8x64xi32>
    %65 = arith.sitofp %64 : vector<8x64xi32> to vector<8x64xf32>
    %66 = tpu.iota {dimensions = array<i32: 1>} : vector<8x256xi32>
    %c15_i32 = arith.constant 15 : i32
    %67 = vector.broadcast %c15_i32 : i32 to vector<8x256xi32>
    %68 = arith.andi %66, %67 : vector<8x256xi32>
    %c4_i32 = arith.constant 4 : i32
    %69 = vector.broadcast %c4_i32 : i32 to vector<8x256xi32>
    %70 = arith.shrsi %66, %69 : vector<8x256xi32>
    %c1_i32_7 = arith.constant 1 : i32
    %71 = vector.broadcast %c1_i32_7 : i32 to vector<8x256xi32>
    %72 = arith.cmpi sge, %68, %71 : vector<8x256xi32>
    %c14_i32 = arith.constant 14 : i32
    %73 = vector.broadcast %c14_i32 : i32 to vector<8x256xi32>
    %74 = arith.cmpi sle, %68, %73 : vector<8x256xi32>
    %c1_i32_8 = arith.constant 1 : i32
    %75 = vector.broadcast %c1_i32_8 : i32 to vector<8x256xi32>
    %76 = arith.cmpi sge, %70, %75 : vector<8x256xi32>
    %c14_i32_9 = arith.constant 14 : i32
    %77 = vector.broadcast %c14_i32_9 : i32 to vector<8x256xi32>
    %78 = arith.cmpi sle, %70, %77 : vector<8x256xi32>
    %79 = arith.andi %72, %76 : vector<8x256xi1>
    %80 = arith.extui %79 : vector<8x256xi1> to vector<8x256xi32>
    %81 = arith.sitofp %80 : vector<8x256xi32> to vector<8x256xf32>
    %82 = arith.extui %76 : vector<8x256xi1> to vector<8x256xi32>
    %83 = arith.sitofp %82 : vector<8x256xi32> to vector<8x256xf32>
    %84 = arith.andi %74, %76 : vector<8x256xi1>
    %85 = arith.extui %84 : vector<8x256xi1> to vector<8x256xi32>
    %86 = arith.sitofp %85 : vector<8x256xi32> to vector<8x256xf32>
    %87 = arith.extui %72 : vector<8x256xi1> to vector<8x256xi32>
    %88 = arith.sitofp %87 : vector<8x256xi32> to vector<8x256xf32>
    %89 = arith.extui %74 : vector<8x256xi1> to vector<8x256xi32>
    %90 = arith.sitofp %89 : vector<8x256xi32> to vector<8x256xf32>
    %91 = arith.andi %72, %78 : vector<8x256xi1>
    %92 = arith.extui %91 : vector<8x256xi1> to vector<8x256xi32>
    %93 = arith.sitofp %92 : vector<8x256xi32> to vector<8x256xf32>
    %94 = arith.extui %78 : vector<8x256xi1> to vector<8x256xi32>
    %95 = arith.sitofp %94 : vector<8x256xi32> to vector<8x256xf32>
    %96 = arith.andi %74, %78 : vector<8x256xi1>
    %97 = arith.extui %96 : vector<8x256xi1> to vector<8x256xi32>
    %98 = arith.sitofp %97 : vector<8x256xi32> to vector<8x256xf32>
    %99 = tpu.iota {dimensions = array<i32: 1>} : vector<8x4xi32>
    %c1_i32_10 = arith.constant 1 : i32
    %100 = vector.broadcast %c1_i32_10 : i32 to vector<8x4xi32>
    %101 = arith.andi %99, %100 : vector<8x4xi32>
    %c1_i32_11 = arith.constant 1 : i32
    %102 = vector.broadcast %c1_i32_11 : i32 to vector<8x4xi32>
    %103 = arith.shrsi %99, %102 : vector<8x4xi32>
    %c1_i32_12 = arith.constant 1 : i32
    %104 = vector.broadcast %c1_i32_12 : i32 to vector<8x4xi32>
    %105 = arith.cmpi sge, %101, %104 : vector<8x4xi32>
    %c0_i32 = arith.constant 0 : i32
    %106 = vector.broadcast %c0_i32 : i32 to vector<8x4xi32>
    %107 = arith.cmpi sle, %101, %106 : vector<8x4xi32>
    %c1_i32_13 = arith.constant 1 : i32
    %108 = vector.broadcast %c1_i32_13 : i32 to vector<8x4xi32>
    %109 = arith.cmpi sge, %103, %108 : vector<8x4xi32>
    %c0_i32_14 = arith.constant 0 : i32
    %110 = vector.broadcast %c0_i32_14 : i32 to vector<8x4xi32>
    %111 = arith.cmpi sle, %103, %110 : vector<8x4xi32>
    %112 = arith.andi %105, %109 : vector<8x4xi1>
    %113 = arith.extui %112 : vector<8x4xi1> to vector<8x4xi32>
    %114 = arith.sitofp %113 : vector<8x4xi32> to vector<8x4xf32>
    %115 = arith.extui %109 : vector<8x4xi1> to vector<8x4xi32>
    %116 = arith.sitofp %115 : vector<8x4xi32> to vector<8x4xf32>
    %117 = arith.andi %107, %109 : vector<8x4xi1>
    %118 = arith.extui %117 : vector<8x4xi1> to vector<8x4xi32>
    %119 = arith.sitofp %118 : vector<8x4xi32> to vector<8x4xf32>
    %120 = arith.extui %105 : vector<8x4xi1> to vector<8x4xi32>
    %121 = arith.sitofp %120 : vector<8x4xi32> to vector<8x4xf32>
    %122 = arith.extui %107 : vector<8x4xi1> to vector<8x4xi32>
    %123 = arith.sitofp %122 : vector<8x4xi32> to vector<8x4xf32>
    %124 = arith.andi %105, %111 : vector<8x4xi1>
    %125 = arith.extui %124 : vector<8x4xi1> to vector<8x4xi32>
    %126 = arith.sitofp %125 : vector<8x4xi32> to vector<8x4xf32>
    %127 = arith.extui %111 : vector<8x4xi1> to vector<8x4xi32>
    %128 = arith.sitofp %127 : vector<8x4xi32> to vector<8x4xf32>
    %129 = arith.andi %107, %111 : vector<8x4xi1>
    %130 = arith.extui %129 : vector<8x4xi1> to vector<8x4xi32>
    %131 = arith.sitofp %130 : vector<8x4xi32> to vector<8x4xf32>
    %132 = tpu.iota {dimensions = array<i32: 0>} : vector<64x256xi32>
    %133 = tpu.iota {dimensions = array<i32: 1>} : vector<64x256xi32>
    %c4_i32_15 = arith.constant 4 : i32
    %134 = vector.broadcast %c4_i32_15 : i32 to vector<64x256xi32>
    %135 = arith.shrsi %133, %134 : vector<64x256xi32>
    %c16_i32 = arith.constant 16 : i32
    %136 = vector.broadcast %c16_i32 : i32 to vector<64x256xi32>
    %137 = arith.muli %135, %136 : vector<64x256xi32>
    %138 = arith.subi %133, %137 : vector<64x256xi32>
    %c1_i32_16 = arith.constant 1 : i32
    %139 = vector.broadcast %c1_i32_16 : i32 to vector<64x256xi32>
    %140 = arith.shrsi %135, %139 : vector<64x256xi32>
    %c8_i32 = arith.constant 8 : i32
    %141 = vector.broadcast %c8_i32 : i32 to vector<64x256xi32>
    %142 = arith.muli %140, %141 : vector<64x256xi32>
    %c1_i32_17 = arith.constant 1 : i32
    %143 = vector.broadcast %c1_i32_17 : i32 to vector<64x256xi32>
    %144 = arith.shrsi %138, %143 : vector<64x256xi32>
    %145 = arith.addi %142, %144 : vector<64x256xi32>
    %146 = arith.cmpi eq, %132, %145 : vector<64x256xi32>
    %147 = arith.extui %146 : vector<64x256xi1> to vector<64x256xi32>
    %148 = arith.sitofp %147 : vector<64x256xi32> to vector<64x256xf32>
    %149 = tpu.iota {dimensions = array<i32: 0>} : vector<16x64xi32>
    %150 = tpu.iota {dimensions = array<i32: 1>} : vector<16x64xi32>
    %c3_i32_18 = arith.constant 3 : i32
    %151 = vector.broadcast %c3_i32_18 : i32 to vector<16x64xi32>
    %152 = arith.shrsi %150, %151 : vector<16x64xi32>
    %c8_i32_19 = arith.constant 8 : i32
    %153 = vector.broadcast %c8_i32_19 : i32 to vector<16x64xi32>
    %154 = arith.muli %152, %153 : vector<16x64xi32>
    %155 = arith.subi %150, %154 : vector<16x64xi32>
    %c1_i32_20 = arith.constant 1 : i32
    %156 = vector.broadcast %c1_i32_20 : i32 to vector<16x64xi32>
    %157 = arith.shrsi %152, %156 : vector<16x64xi32>
    %c4_i32_21 = arith.constant 4 : i32
    %158 = vector.broadcast %c4_i32_21 : i32 to vector<16x64xi32>
    %159 = arith.muli %157, %158 : vector<16x64xi32>
    %c1_i32_22 = arith.constant 1 : i32
    %160 = vector.broadcast %c1_i32_22 : i32 to vector<16x64xi32>
    %161 = arith.shrsi %155, %160 : vector<16x64xi32>
    %162 = arith.addi %159, %161 : vector<16x64xi32>
    %163 = arith.cmpi eq, %149, %162 : vector<16x64xi32>
    %164 = arith.extui %163 : vector<16x64xi1> to vector<16x64xi32>
    %165 = arith.sitofp %164 : vector<16x64xi32> to vector<16x64xf32>
    %166 = tpu.iota {dimensions = array<i32: 0>} : vector<4x16xi32>
    %167 = tpu.iota {dimensions = array<i32: 1>} : vector<4x16xi32>
    %c2_i32_23 = arith.constant 2 : i32
    %168 = vector.broadcast %c2_i32_23 : i32 to vector<4x16xi32>
    %169 = arith.shrsi %167, %168 : vector<4x16xi32>
    %c4_i32_24 = arith.constant 4 : i32
    %170 = vector.broadcast %c4_i32_24 : i32 to vector<4x16xi32>
    %171 = arith.muli %169, %170 : vector<4x16xi32>
    %172 = arith.subi %167, %171 : vector<4x16xi32>
    %c1_i32_25 = arith.constant 1 : i32
    %173 = vector.broadcast %c1_i32_25 : i32 to vector<4x16xi32>
    %174 = arith.shrsi %169, %173 : vector<4x16xi32>
    %c2_i32_26 = arith.constant 2 : i32
    %175 = vector.broadcast %c2_i32_26 : i32 to vector<4x16xi32>
    %176 = arith.muli %174, %175 : vector<4x16xi32>
    %c1_i32_27 = arith.constant 1 : i32
    %177 = vector.broadcast %c1_i32_27 : i32 to vector<4x16xi32>
    %178 = arith.shrsi %172, %177 : vector<4x16xi32>
    %179 = arith.addi %176, %178 : vector<4x16xi32>
    %180 = arith.cmpi eq, %166, %179 : vector<4x16xi32>
    %181 = arith.extui %180 : vector<4x16xi1> to vector<4x16xi32>
    %182 = arith.sitofp %181 : vector<4x16xi32> to vector<4x16xf32>
    %183 = tpu.iota {dimensions = array<i32: 0>} : vector<256x64xi32>
    %184 = tpu.iota {dimensions = array<i32: 1>} : vector<256x64xi32>
    %c3_i32_28 = arith.constant 3 : i32
    %185 = vector.broadcast %c3_i32_28 : i32 to vector<256x64xi32>
    %186 = arith.shrsi %184, %185 : vector<256x64xi32>
    %c8_i32_29 = arith.constant 8 : i32
    %187 = vector.broadcast %c8_i32_29 : i32 to vector<256x64xi32>
    %188 = arith.muli %186, %187 : vector<256x64xi32>
    %189 = arith.subi %184, %188 : vector<256x64xi32>
    %c2_i32_30 = arith.constant 2 : i32
    %190 = vector.broadcast %c2_i32_30 : i32 to vector<256x64xi32>
    %191 = arith.muli %190, %186 : vector<256x64xi32>
    %c16_i32_31 = arith.constant 16 : i32
    %192 = vector.broadcast %c16_i32_31 : i32 to vector<256x64xi32>
    %193 = arith.muli %191, %192 : vector<256x64xi32>
    %c2_i32_32 = arith.constant 2 : i32
    %194 = vector.broadcast %c2_i32_32 : i32 to vector<256x64xi32>
    %195 = arith.muli %194, %189 : vector<256x64xi32>
    %196 = arith.addi %193, %195 : vector<256x64xi32>
    %197 = arith.cmpi eq, %183, %196 : vector<256x64xi32>
    %198 = arith.extui %197 : vector<256x64xi1> to vector<256x64xi32>
    %199 = arith.sitofp %198 : vector<256x64xi32> to vector<256x64xf32>
    %200 = tpu.iota {dimensions = array<i32: 0>} : vector<64x16xi32>
    %201 = tpu.iota {dimensions = array<i32: 1>} : vector<64x16xi32>
    %c2_i32_33 = arith.constant 2 : i32
    %202 = vector.broadcast %c2_i32_33 : i32 to vector<64x16xi32>
    %203 = arith.shrsi %201, %202 : vector<64x16xi32>
    %c4_i32_34 = arith.constant 4 : i32
    %204 = vector.broadcast %c4_i32_34 : i32 to vector<64x16xi32>
    %205 = arith.muli %203, %204 : vector<64x16xi32>
    %206 = arith.subi %201, %205 : vector<64x16xi32>
    %c2_i32_35 = arith.constant 2 : i32
    %207 = vector.broadcast %c2_i32_35 : i32 to vector<64x16xi32>
    %208 = arith.muli %207, %203 : vector<64x16xi32>
    %c8_i32_36 = arith.constant 8 : i32
    %209 = vector.broadcast %c8_i32_36 : i32 to vector<64x16xi32>
    %210 = arith.muli %208, %209 : vector<64x16xi32>
    %c2_i32_37 = arith.constant 2 : i32
    %211 = vector.broadcast %c2_i32_37 : i32 to vector<64x16xi32>
    %212 = arith.muli %211, %206 : vector<64x16xi32>
    %213 = arith.addi %210, %212 : vector<64x16xi32>
    %214 = arith.cmpi eq, %200, %213 : vector<64x16xi32>
    %215 = arith.extui %214 : vector<64x16xi1> to vector<64x16xi32>
    %216 = arith.sitofp %215 : vector<64x16xi32> to vector<64x16xf32>
    %217 = tpu.iota {dimensions = array<i32: 0>} : vector<16x4xi32>
    %218 = tpu.iota {dimensions = array<i32: 1>} : vector<16x4xi32>
    %c1_i32_38 = arith.constant 1 : i32
    %219 = vector.broadcast %c1_i32_38 : i32 to vector<16x4xi32>
    %220 = arith.shrsi %218, %219 : vector<16x4xi32>
    %c2_i32_39 = arith.constant 2 : i32
    %221 = vector.broadcast %c2_i32_39 : i32 to vector<16x4xi32>
    %222 = arith.muli %220, %221 : vector<16x4xi32>
    %223 = arith.subi %218, %222 : vector<16x4xi32>
    %c2_i32_40 = arith.constant 2 : i32
    %224 = vector.broadcast %c2_i32_40 : i32 to vector<16x4xi32>
    %225 = arith.muli %224, %220 : vector<16x4xi32>
    %c4_i32_41 = arith.constant 4 : i32
    %226 = vector.broadcast %c4_i32_41 : i32 to vector<16x4xi32>
    %227 = arith.muli %225, %226 : vector<16x4xi32>
    %c2_i32_42 = arith.constant 2 : i32
    %228 = vector.broadcast %c2_i32_42 : i32 to vector<16x4xi32>
    %229 = arith.muli %228, %223 : vector<16x4xi32>
    %230 = arith.addi %227, %229 : vector<16x4xi32>
    %231 = arith.cmpi eq, %217, %230 : vector<16x4xi32>
    %232 = arith.extui %231 : vector<16x4xi1> to vector<16x4xi32>
    %233 = arith.sitofp %232 : vector<16x4xi32> to vector<16x4xf32>
    %c0 = arith.constant 0 : index
    %c0_43 = arith.constant 0 : index
    %c0_44 = arith.constant 0 : index
    %234 = vector.load %arg1[%c0, %c0_43, %c0_44] : memref<2x8x640xf32, #tpu.memory_space<vmem>>, vector<1x8x640xf32>
    %235 = vector.shape_cast %234 : vector<1x8x640xf32> to vector<8x640xf32>
    %236 = vector.extract_strided_slice %235 {offsets = [0, 0], sizes = [8, 256], strides = [1, 1]} : vector<8x640xf32> to vector<8x256xf32>
    %237 = vector.extract_strided_slice %235 {offsets = [0, 256], sizes = [8, 64], strides = [1, 1]} : vector<8x640xf32> to vector<8x64xf32>
    %238 = vector.extract_strided_slice %235 {offsets = [0, 384], sizes = [8, 16], strides = [1, 1]} : vector<8x640xf32> to vector<8x16xf32>
    %239 = vector.extract_strided_slice %235 {offsets = [0, 512], sizes = [8, 4], strides = [1, 1]} : vector<8x640xf32> to vector<8x4xf32>
    %cst = arith.constant dense<0.000000e+00> : vector<8x16xf32>
    %240 = tpu.matmul %239, %182, %cst {dimension_numbers = #tpu.dot_dimension_numbers<[1], [0], [0], [1], [0, 0, 1, 1], [], []>} : vector<8x4xf32>, vector<4x16xf32>, vector<8x16xf32> -> vector<8x16xf32>
    %c0_45 = arith.constant 0 : index
    %241 = memref.load %arg0[%c0_45] : memref<18xf32, #tpu.memory_space<smem>>
    %c1 = arith.constant 1 : index
    %242 = memref.load %arg0[%c1] : memref<18xf32, #tpu.memory_space<smem>>
    %243 = vector.broadcast %241 : f32 to vector<8x16xf32>
    %244 = arith.mulf %243, %238 : vector<8x16xf32>
    %245 = vector.broadcast %242 : f32 to vector<8x16xf32>
    %246 = arith.mulf %245, %240 : vector<8x16xf32>
    %247 = arith.addf %244, %246 : vector<8x16xf32>
    %c0_46 = arith.constant 0 : index
    %c0_47 = arith.constant 0 : index
    %c0_48 = arith.constant 0 : index
    %248 = vector.load %arg2[%c0_46, %c0_47, %c0_48] : memref<6x8x72xf32, #tpu.memory_space<vmem>>, vector<1x8x72xf32>
    %249 = vector.shape_cast %248 : vector<1x8x72xf32> to vector<8x72xf32>
    %c0_49 = arith.constant 0 : index
    %c0_50 = arith.constant 0 : index
    %c0_51 = arith.constant 0 : index
    %250 = vector.load %arg3[%c0_49, %c0_50, %c0_51] : memref<6x8x1xf32, #tpu.memory_space<vmem>>, vector<1x8x1xf32>
    %251 = vector.shape_cast %250 : vector<1x8x1xf32> to vector<8x1xf32>
    %cst_52 = arith.constant 0.000000e+00 : f32
    %252 = vector.broadcast %cst_52 : f32 to vector<8x5xf32>
    %cst_53 = arith.constant 0.000000e+00 : f32
    %253 = vector.broadcast %cst_53 : f32 to vector<8x5xf32>
    %254 = tpu.concatenate %252, %247, %253 in 1 : vector<8x5xf32>, vector<8x16xf32>, vector<8x5xf32> -> vector<8x26xf32>
    %255 = vector.extract_strided_slice %254 {offsets = [0, 0], sizes = [8, 16], strides = [1, 1]} : vector<8x26xf32> to vector<8x16xf32>
    %256 = vector.extract_strided_slice %254 {offsets = [0, 1], sizes = [8, 16], strides = [1, 1]} : vector<8x26xf32> to vector<8x16xf32>
    %257 = vector.extract_strided_slice %254 {offsets = [0, 2], sizes = [8, 16], strides = [1, 1]} : vector<8x26xf32> to vector<8x16xf32>
    %258 = vector.extract_strided_slice %254 {offsets = [0, 4], sizes = [8, 16], strides = [1, 1]} : vector<8x26xf32> to vector<8x16xf32>
    %259 = vector.extract_strided_slice %254 {offsets = [0, 6], sizes = [8, 16], strides = [1, 1]} : vector<8x26xf32> to vector<8x16xf32>
    %260 = vector.extract_strided_slice %254 {offsets = [0, 8], sizes = [8, 16], strides = [1, 1]} : vector<8x26xf32> to vector<8x16xf32>
    %261 = vector.extract_strided_slice %254 {offsets = [0, 9], sizes = [8, 16], strides = [1, 1]} : vector<8x26xf32> to vector<8x16xf32>
    %262 = vector.extract_strided_slice %254 {offsets = [0, 10], sizes = [8, 16], strides = [1, 1]} : vector<8x26xf32> to vector<8x16xf32>
    %263 = arith.mulf %255, %15 : vector<8x16xf32>
    %264 = arith.mulf %256, %17 : vector<8x16xf32>
    %265 = arith.mulf %257, %20 : vector<8x16xf32>
    %266 = arith.mulf %258, %22 : vector<8x16xf32>
    %267 = arith.mulf %259, %24 : vector<8x16xf32>
    %268 = arith.mulf %260, %27 : vector<8x16xf32>
    %269 = arith.mulf %261, %29 : vector<8x16xf32>
    %270 = arith.mulf %262, %32 : vector<8x16xf32>
    %271 = tpu.concatenate %263, %264, %265, %266, %247, %267, %268, %269, %270 in 0 : vector<8x16xf32>, vector<8x16xf32>, vector<8x16xf32>, vector<8x16xf32>, vector<8x16xf32>, vector<8x16xf32>, vector<8x16xf32>, vector<8x16xf32>, vector<8x16xf32> -> vector<72x16xf32>
    %cst_54 = arith.constant dense<0.000000e+00> : vector<8x16xf32>
    %272 = tpu.matmul %249, %271, %cst_54 {dimension_numbers = #tpu.dot_dimension_numbers<[1], [0], [0], [1], [0, 0, 1, 1], [], []>} : vector<8x72xf32>, vector<72x16xf32>, vector<8x16xf32> -> vector<8x16xf32>
    %273 = vector.broadcast %251 : vector<8x1xf32> to vector<8x16xf32>
    %274 = arith.addf %272, %273 : vector<8x16xf32>
    %cst_55 = arith.constant dense<0.000000e+00> : vector<8x64xf32>
    %275 = tpu.matmul %274, %165, %cst_55 {dimension_numbers = #tpu.dot_dimension_numbers<[1], [0], [0], [1], [0, 0, 1, 1], [], []>} : vector<8x16xf32>, vector<16x64xf32>, vector<8x64xf32> -> vector<8x64xf32>
    %c3 = arith.constant 3 : index
    %276 = memref.load %arg0[%c3] : memref<18xf32, #tpu.memory_space<smem>>
    %c4 = arith.constant 4 : index
    %277 = memref.load %arg0[%c4] : memref<18xf32, #tpu.memory_space<smem>>
    %278 = vector.broadcast %276 : f32 to vector<8x64xf32>
    %279 = arith.mulf %278, %237 : vector<8x64xf32>
    %280 = vector.broadcast %277 : f32 to vector<8x64xf32>
    %281 = arith.mulf %280, %275 : vector<8x64xf32>
    %282 = arith.addf %279, %281 : vector<8x64xf32>
    %c1_56 = arith.constant 1 : index
    %c0_57 = arith.constant 0 : index
    %c0_58 = arith.constant 0 : index
    %283 = vector.load %arg2[%c1_56, %c0_57, %c0_58] : memref<6x8x72xf32, #tpu.memory_space<vmem>>, vector<1x8x72xf32>
    %284 = vector.shape_cast %283 : vector<1x8x72xf32> to vector<8x72xf32>
    %c1_59 = arith.constant 1 : index
    %c0_60 = arith.constant 0 : index
    %c0_61 = arith.constant 0 : index
    %285 = vector.load %arg3[%c1_59, %c0_60, %c0_61] : memref<6x8x1xf32, #tpu.memory_space<vmem>>, vector<1x8x1xf32>
    %286 = vector.shape_cast %285 : vector<1x8x1xf32> to vector<8x1xf32>
    %cst_62 = arith.constant 0.000000e+00 : f32
    %287 = vector.broadcast %cst_62 : f32 to vector<8x9xf32>
    %cst_63 = arith.constant 0.000000e+00 : f32
    %288 = vector.broadcast %cst_63 : f32 to vector<8x9xf32>
    %289 = tpu.concatenate %287, %282, %288 in 1 : vector<8x9xf32>, vector<8x64xf32>, vector<8x9xf32> -> vector<8x82xf32>
    %290 = vector.extract_strided_slice %289 {offsets = [0, 0], sizes = [8, 64], strides = [1, 1]} : vector<8x82xf32> to vector<8x64xf32>
    %291 = vector.extract_strided_slice %289 {offsets = [0, 1], sizes = [8, 64], strides = [1, 1]} : vector<8x82xf32> to vector<8x64xf32>
    %292 = vector.extract_strided_slice %289 {offsets = [0, 2], sizes = [8, 64], strides = [1, 1]} : vector<8x82xf32> to vector<8x64xf32>
    %293 = vector.extract_strided_slice %289 {offsets = [0, 8], sizes = [8, 64], strides = [1, 1]} : vector<8x82xf32> to vector<8x64xf32>
    %294 = vector.extract_strided_slice %289 {offsets = [0, 10], sizes = [8, 64], strides = [1, 1]} : vector<8x82xf32> to vector<8x64xf32>
    %295 = vector.extract_strided_slice %289 {offsets = [0, 16], sizes = [8, 64], strides = [1, 1]} : vector<8x82xf32> to vector<8x64xf32>
    %296 = vector.extract_strided_slice %289 {offsets = [0, 17], sizes = [8, 64], strides = [1, 1]} : vector<8x82xf32> to vector<8x64xf32>
    %297 = vector.extract_strided_slice %289 {offsets = [0, 18], sizes = [8, 64], strides = [1, 1]} : vector<8x82xf32> to vector<8x64xf32>
    %298 = arith.mulf %290, %48 : vector<8x64xf32>
    %299 = arith.mulf %291, %50 : vector<8x64xf32>
    %300 = arith.mulf %292, %53 : vector<8x64xf32>
    %301 = arith.mulf %293, %55 : vector<8x64xf32>
    %302 = arith.mulf %294, %57 : vector<8x64xf32>
    %303 = arith.mulf %295, %60 : vector<8x64xf32>
    %304 = arith.mulf %296, %62 : vector<8x64xf32>
    %305 = arith.mulf %297, %65 : vector<8x64xf32>
    %306 = tpu.concatenate %298, %299, %300, %301, %282, %302, %303, %304, %305 in 0 : vector<8x64xf32>, vector<8x64xf32>, vector<8x64xf32>, vector<8x64xf32>, vector<8x64xf32>, vector<8x64xf32>, vector<8x64xf32>, vector<8x64xf32>, vector<8x64xf32> -> vector<72x64xf32>
    %cst_64 = arith.constant dense<0.000000e+00> : vector<8x64xf32>
    %307 = tpu.matmul %284, %306, %cst_64 {dimension_numbers = #tpu.dot_dimension_numbers<[1], [0], [0], [1], [0, 0, 1, 1], [], []>} : vector<8x72xf32>, vector<72x64xf32>, vector<8x64xf32> -> vector<8x64xf32>
    %308 = vector.broadcast %286 : vector<8x1xf32> to vector<8x64xf32>
    %309 = arith.addf %307, %308 : vector<8x64xf32>
    %cst_65 = arith.constant dense<0.000000e+00> : vector<8x256xf32>
    %310 = tpu.matmul %309, %148, %cst_65 {dimension_numbers = #tpu.dot_dimension_numbers<[1], [0], [0], [1], [0, 0, 1, 1], [], []>} : vector<8x64xf32>, vector<64x256xf32>, vector<8x256xf32> -> vector<8x256xf32>
    %c6 = arith.constant 6 : index
    %311 = memref.load %arg0[%c6] : memref<18xf32, #tpu.memory_space<smem>>
    %c7 = arith.constant 7 : index
    %312 = memref.load %arg0[%c7] : memref<18xf32, #tpu.memory_space<smem>>
    %313 = vector.broadcast %311 : f32 to vector<8x256xf32>
    %314 = arith.mulf %313, %236 : vector<8x256xf32>
    %315 = vector.broadcast %312 : f32 to vector<8x256xf32>
    %316 = arith.mulf %315, %310 : vector<8x256xf32>
    %317 = arith.addf %314, %316 : vector<8x256xf32>
    %c2 = arith.constant 2 : index
    %c0_66 = arith.constant 0 : index
    %c0_67 = arith.constant 0 : index
    %318 = vector.load %arg2[%c2, %c0_66, %c0_67] : memref<6x8x72xf32, #tpu.memory_space<vmem>>, vector<1x8x72xf32>
    %319 = vector.shape_cast %318 : vector<1x8x72xf32> to vector<8x72xf32>
    %c2_68 = arith.constant 2 : index
    %c0_69 = arith.constant 0 : index
    %c0_70 = arith.constant 0 : index
    %320 = vector.load %arg3[%c2_68, %c0_69, %c0_70] : memref<6x8x1xf32, #tpu.memory_space<vmem>>, vector<1x8x1xf32>
    %321 = vector.shape_cast %320 : vector<1x8x1xf32> to vector<8x1xf32>
    %cst_71 = arith.constant 0.000000e+00 : f32
    %322 = vector.broadcast %cst_71 : f32 to vector<8x17xf32>
    %cst_72 = arith.constant 0.000000e+00 : f32
    %323 = vector.broadcast %cst_72 : f32 to vector<8x17xf32>
    %324 = tpu.concatenate %322, %317, %323 in 1 : vector<8x17xf32>, vector<8x256xf32>, vector<8x17xf32> -> vector<8x290xf32>
    %325 = vector.extract_strided_slice %324 {offsets = [0, 0], sizes = [8, 256], strides = [1, 1]} : vector<8x290xf32> to vector<8x256xf32>
    %326 = vector.extract_strided_slice %324 {offsets = [0, 1], sizes = [8, 256], strides = [1, 1]} : vector<8x290xf32> to vector<8x256xf32>
    %327 = vector.extract_strided_slice %324 {offsets = [0, 2], sizes = [8, 256], strides = [1, 1]} : vector<8x290xf32> to vector<8x256xf32>
    %328 = vector.extract_strided_slice %324 {offsets = [0, 16], sizes = [8, 256], strides = [1, 1]} : vector<8x290xf32> to vector<8x256xf32>
    %329 = vector.extract_strided_slice %324 {offsets = [0, 18], sizes = [8, 256], strides = [1, 1]} : vector<8x290xf32> to vector<8x256xf32>
    %330 = vector.extract_strided_slice %324 {offsets = [0, 32], sizes = [8, 256], strides = [1, 1]} : vector<8x290xf32> to vector<8x256xf32>
    %331 = vector.extract_strided_slice %324 {offsets = [0, 33], sizes = [8, 256], strides = [1, 1]} : vector<8x290xf32> to vector<8x256xf32>
    %332 = vector.extract_strided_slice %324 {offsets = [0, 34], sizes = [8, 256], strides = [1, 1]} : vector<8x290xf32> to vector<8x256xf32>
    %333 = arith.mulf %325, %81 : vector<8x256xf32>
    %334 = arith.mulf %326, %83 : vector<8x256xf32>
    %335 = arith.mulf %327, %86 : vector<8x256xf32>
    %336 = arith.mulf %328, %88 : vector<8x256xf32>
    %337 = arith.mulf %329, %90 : vector<8x256xf32>
    %338 = arith.mulf %330, %93 : vector<8x256xf32>
    %339 = arith.mulf %331, %95 : vector<8x256xf32>
    %340 = arith.mulf %332, %98 : vector<8x256xf32>
    %341 = tpu.concatenate %333, %334, %335, %336, %317, %337, %338, %339, %340 in 0 : vector<8x256xf32>, vector<8x256xf32>, vector<8x256xf32>, vector<8x256xf32>, vector<8x256xf32>, vector<8x256xf32>, vector<8x256xf32>, vector<8x256xf32>, vector<8x256xf32> -> vector<72x256xf32>
    %cst_73 = arith.constant dense<0.000000e+00> : vector<8x256xf32>
    %342 = tpu.matmul %319, %341, %cst_73 {dimension_numbers = #tpu.dot_dimension_numbers<[1], [0], [0], [1], [0, 0, 1, 1], [], []>} : vector<8x72xf32>, vector<72x256xf32>, vector<8x256xf32> -> vector<8x256xf32>
    %343 = vector.broadcast %321 : vector<8x1xf32> to vector<8x256xf32>
    %344 = arith.addf %342, %343 : vector<8x256xf32>
    %cst_74 = arith.constant 0.000000e+00 : f32
    %345 = vector.broadcast %cst_74 : f32 to vector<8x17xf32>
    %cst_75 = arith.constant 0.000000e+00 : f32
    %346 = vector.broadcast %cst_75 : f32 to vector<8x17xf32>
    %347 = tpu.concatenate %345, %344, %346 in 1 : vector<8x17xf32>, vector<8x256xf32>, vector<8x17xf32> -> vector<8x290xf32>
    %348 = vector.extract_strided_slice %347 {offsets = [0, 18], sizes = [8, 256], strides = [1, 1]} : vector<8x290xf32> to vector<8x256xf32>
    %349 = vector.extract_strided_slice %347 {offsets = [0, 33], sizes = [8, 256], strides = [1, 1]} : vector<8x290xf32> to vector<8x256xf32>
    %350 = vector.extract_strided_slice %347 {offsets = [0, 34], sizes = [8, 256], strides = [1, 1]} : vector<8x290xf32> to vector<8x256xf32>
    %351 = arith.maximumf %344, %348 : vector<8x256xf32>
    %352 = arith.maximumf %351, %349 : vector<8x256xf32>
    %353 = arith.maximumf %352, %350 : vector<8x256xf32>
    %cst_76 = arith.constant dense<0.000000e+00> : vector<8x64xf32>
    %354 = tpu.matmul %353, %199, %cst_76 {dimension_numbers = #tpu.dot_dimension_numbers<[1], [0], [0], [1], [0, 0, 1, 1], [], []>} : vector<8x256xf32>, vector<256x64xf32>, vector<8x64xf32> -> vector<8x64xf32>
    %c9 = arith.constant 9 : index
    %355 = memref.load %arg0[%c9] : memref<18xf32, #tpu.memory_space<smem>>
    %c10 = arith.constant 10 : index
    %356 = memref.load %arg0[%c10] : memref<18xf32, #tpu.memory_space<smem>>
    %c11 = arith.constant 11 : index
    %357 = memref.load %arg0[%c11] : memref<18xf32, #tpu.memory_space<smem>>
    %358 = vector.broadcast %355 : f32 to vector<8x64xf32>
    %359 = arith.mulf %358, %309 : vector<8x64xf32>
    %360 = vector.broadcast %356 : f32 to vector<8x64xf32>
    %361 = arith.mulf %360, %354 : vector<8x64xf32>
    %362 = arith.addf %359, %361 : vector<8x64xf32>
    %363 = vector.broadcast %357 : f32 to vector<8x64xf32>
    %364 = arith.mulf %363, %237 : vector<8x64xf32>
    %365 = arith.addf %362, %364 : vector<8x64xf32>
    %c3_77 = arith.constant 3 : index
    %c0_78 = arith.constant 0 : index
    %c0_79 = arith.constant 0 : index
    %366 = vector.load %arg2[%c3_77, %c0_78, %c0_79] : memref<6x8x72xf32, #tpu.memory_space<vmem>>, vector<1x8x72xf32>
    %367 = vector.shape_cast %366 : vector<1x8x72xf32> to vector<8x72xf32>
    %c3_80 = arith.constant 3 : index
    %c0_81 = arith.constant 0 : index
    %c0_82 = arith.constant 0 : index
    %368 = vector.load %arg3[%c3_80, %c0_81, %c0_82] : memref<6x8x1xf32, #tpu.memory_space<vmem>>, vector<1x8x1xf32>
    %369 = vector.shape_cast %368 : vector<1x8x1xf32> to vector<8x1xf32>
    %cst_83 = arith.constant 0.000000e+00 : f32
    %370 = vector.broadcast %cst_83 : f32 to vector<8x9xf32>
    %cst_84 = arith.constant 0.000000e+00 : f32
    %371 = vector.broadcast %cst_84 : f32 to vector<8x9xf32>
    %372 = tpu.concatenate %370, %365, %371 in 1 : vector<8x9xf32>, vector<8x64xf32>, vector<8x9xf32> -> vector<8x82xf32>
    %373 = vector.extract_strided_slice %372 {offsets = [0, 0], sizes = [8, 64], strides = [1, 1]} : vector<8x82xf32> to vector<8x64xf32>
    %374 = vector.extract_strided_slice %372 {offsets = [0, 1], sizes = [8, 64], strides = [1, 1]} : vector<8x82xf32> to vector<8x64xf32>
    %375 = vector.extract_strided_slice %372 {offsets = [0, 2], sizes = [8, 64], strides = [1, 1]} : vector<8x82xf32> to vector<8x64xf32>
    %376 = vector.extract_strided_slice %372 {offsets = [0, 8], sizes = [8, 64], strides = [1, 1]} : vector<8x82xf32> to vector<8x64xf32>
    %377 = vector.extract_strided_slice %372 {offsets = [0, 10], sizes = [8, 64], strides = [1, 1]} : vector<8x82xf32> to vector<8x64xf32>
    %378 = vector.extract_strided_slice %372 {offsets = [0, 16], sizes = [8, 64], strides = [1, 1]} : vector<8x82xf32> to vector<8x64xf32>
    %379 = vector.extract_strided_slice %372 {offsets = [0, 17], sizes = [8, 64], strides = [1, 1]} : vector<8x82xf32> to vector<8x64xf32>
    %380 = vector.extract_strided_slice %372 {offsets = [0, 18], sizes = [8, 64], strides = [1, 1]} : vector<8x82xf32> to vector<8x64xf32>
    %381 = arith.mulf %373, %48 : vector<8x64xf32>
    %382 = arith.mulf %374, %50 : vector<8x64xf32>
    %383 = arith.mulf %375, %53 : vector<8x64xf32>
    %384 = arith.mulf %376, %55 : vector<8x64xf32>
    %385 = arith.mulf %377, %57 : vector<8x64xf32>
    %386 = arith.mulf %378, %60 : vector<8x64xf32>
    %387 = arith.mulf %379, %62 : vector<8x64xf32>
    %388 = arith.mulf %380, %65 : vector<8x64xf32>
    %389 = tpu.concatenate %381, %382, %383, %384, %365, %385, %386, %387, %388 in 0 : vector<8x64xf32>, vector<8x64xf32>, vector<8x64xf32>, vector<8x64xf32>, vector<8x64xf32>, vector<8x64xf32>, vector<8x64xf32>, vector<8x64xf32>, vector<8x64xf32> -> vector<72x64xf32>
    %cst_85 = arith.constant dense<0.000000e+00> : vector<8x64xf32>
    %390 = tpu.matmul %367, %389, %cst_85 {dimension_numbers = #tpu.dot_dimension_numbers<[1], [0], [0], [1], [0, 0, 1, 1], [], []>} : vector<8x72xf32>, vector<72x64xf32>, vector<8x64xf32> -> vector<8x64xf32>
    %391 = vector.broadcast %369 : vector<8x1xf32> to vector<8x64xf32>
    %392 = arith.addf %390, %391 : vector<8x64xf32>
    %cst_86 = arith.constant 0.000000e+00 : f32
    %393 = vector.broadcast %cst_86 : f32 to vector<8x9xf32>
    %cst_87 = arith.constant 0.000000e+00 : f32
    %394 = vector.broadcast %cst_87 : f32 to vector<8x9xf32>
    %395 = tpu.concatenate %393, %392, %394 in 1 : vector<8x9xf32>, vector<8x64xf32>, vector<8x9xf32> -> vector<8x82xf32>
    %396 = vector.extract_strided_slice %395 {offsets = [0, 10], sizes = [8, 64], strides = [1, 1]} : vector<8x82xf32> to vector<8x64xf32>
    %397 = vector.extract_strided_slice %395 {offsets = [0, 17], sizes = [8, 64], strides = [1, 1]} : vector<8x82xf32> to vector<8x64xf32>
    %398 = vector.extract_strided_slice %395 {offsets = [0, 18], sizes = [8, 64], strides = [1, 1]} : vector<8x82xf32> to vector<8x64xf32>
    %399 = arith.maximumf %392, %396 : vector<8x64xf32>
    %400 = arith.maximumf %399, %397 : vector<8x64xf32>
    %401 = arith.maximumf %400, %398 : vector<8x64xf32>
    %cst_88 = arith.constant dense<0.000000e+00> : vector<8x16xf32>
    %402 = tpu.matmul %401, %216, %cst_88 {dimension_numbers = #tpu.dot_dimension_numbers<[1], [0], [0], [1], [0, 0, 1, 1], [], []>} : vector<8x64xf32>, vector<64x16xf32>, vector<8x16xf32> -> vector<8x16xf32>
    %c12 = arith.constant 12 : index
    %403 = memref.load %arg0[%c12] : memref<18xf32, #tpu.memory_space<smem>>
    %c13 = arith.constant 13 : index
    %404 = memref.load %arg0[%c13] : memref<18xf32, #tpu.memory_space<smem>>
    %c14 = arith.constant 14 : index
    %405 = memref.load %arg0[%c14] : memref<18xf32, #tpu.memory_space<smem>>
    %406 = vector.broadcast %403 : f32 to vector<8x16xf32>
    %407 = arith.mulf %406, %274 : vector<8x16xf32>
    %408 = vector.broadcast %404 : f32 to vector<8x16xf32>
    %409 = arith.mulf %408, %402 : vector<8x16xf32>
    %410 = arith.addf %407, %409 : vector<8x16xf32>
    %411 = vector.broadcast %405 : f32 to vector<8x16xf32>
    %412 = arith.mulf %411, %238 : vector<8x16xf32>
    %413 = arith.addf %410, %412 : vector<8x16xf32>
    %c4_89 = arith.constant 4 : index
    %c0_90 = arith.constant 0 : index
    %c0_91 = arith.constant 0 : index
    %414 = vector.load %arg2[%c4_89, %c0_90, %c0_91] : memref<6x8x72xf32, #tpu.memory_space<vmem>>, vector<1x8x72xf32>
    %415 = vector.shape_cast %414 : vector<1x8x72xf32> to vector<8x72xf32>
    %c4_92 = arith.constant 4 : index
    %c0_93 = arith.constant 0 : index
    %c0_94 = arith.constant 0 : index
    %416 = vector.load %arg3[%c4_92, %c0_93, %c0_94] : memref<6x8x1xf32, #tpu.memory_space<vmem>>, vector<1x8x1xf32>
    %417 = vector.shape_cast %416 : vector<1x8x1xf32> to vector<8x1xf32>
    %cst_95 = arith.constant 0.000000e+00 : f32
    %418 = vector.broadcast %cst_95 : f32 to vector<8x5xf32>
    %cst_96 = arith.constant 0.000000e+00 : f32
    %419 = vector.broadcast %cst_96 : f32 to vector<8x5xf32>
    %420 = tpu.concatenate %418, %413, %419 in 1 : vector<8x5xf32>, vector<8x16xf32>, vector<8x5xf32> -> vector<8x26xf32>
    %421 = vector.extract_strided_slice %420 {offsets = [0, 0], sizes = [8, 16], strides = [1, 1]} : vector<8x26xf32> to vector<8x16xf32>
    %422 = vector.extract_strided_slice %420 {offsets = [0, 1], sizes = [8, 16], strides = [1, 1]} : vector<8x26xf32> to vector<8x16xf32>
    %423 = vector.extract_strided_slice %420 {offsets = [0, 2], sizes = [8, 16], strides = [1, 1]} : vector<8x26xf32> to vector<8x16xf32>
    %424 = vector.extract_strided_slice %420 {offsets = [0, 4], sizes = [8, 16], strides = [1, 1]} : vector<8x26xf32> to vector<8x16xf32>
    %425 = vector.extract_strided_slice %420 {offsets = [0, 6], sizes = [8, 16], strides = [1, 1]} : vector<8x26xf32> to vector<8x16xf32>
    %426 = vector.extract_strided_slice %420 {offsets = [0, 8], sizes = [8, 16], strides = [1, 1]} : vector<8x26xf32> to vector<8x16xf32>
    %427 = vector.extract_strided_slice %420 {offsets = [0, 9], sizes = [8, 16], strides = [1, 1]} : vector<8x26xf32> to vector<8x16xf32>
    %428 = vector.extract_strided_slice %420 {offsets = [0, 10], sizes = [8, 16], strides = [1, 1]} : vector<8x26xf32> to vector<8x16xf32>
    %429 = arith.mulf %421, %15 : vector<8x16xf32>
    %430 = arith.mulf %422, %17 : vector<8x16xf32>
    %431 = arith.mulf %423, %20 : vector<8x16xf32>
    %432 = arith.mulf %424, %22 : vector<8x16xf32>
    %433 = arith.mulf %425, %24 : vector<8x16xf32>
    %434 = arith.mulf %426, %27 : vector<8x16xf32>
    %435 = arith.mulf %427, %29 : vector<8x16xf32>
    %436 = arith.mulf %428, %32 : vector<8x16xf32>
    %437 = tpu.concatenate %429, %430, %431, %432, %413, %433, %434, %435, %436 in 0 : vector<8x16xf32>, vector<8x16xf32>, vector<8x16xf32>, vector<8x16xf32>, vector<8x16xf32>, vector<8x16xf32>, vector<8x16xf32>, vector<8x16xf32>, vector<8x16xf32> -> vector<72x16xf32>
    %cst_97 = arith.constant dense<0.000000e+00> : vector<8x16xf32>
    %438 = tpu.matmul %415, %437, %cst_97 {dimension_numbers = #tpu.dot_dimension_numbers<[1], [0], [0], [1], [0, 0, 1, 1], [], []>} : vector<8x72xf32>, vector<72x16xf32>, vector<8x16xf32> -> vector<8x16xf32>
    %439 = vector.broadcast %417 : vector<8x1xf32> to vector<8x16xf32>
    %440 = arith.addf %438, %439 : vector<8x16xf32>
    %cst_98 = arith.constant 0.000000e+00 : f32
    %441 = vector.broadcast %cst_98 : f32 to vector<8x5xf32>
    %cst_99 = arith.constant 0.000000e+00 : f32
    %442 = vector.broadcast %cst_99 : f32 to vector<8x5xf32>
    %443 = tpu.concatenate %441, %440, %442 in 1 : vector<8x5xf32>, vector<8x16xf32>, vector<8x5xf32> -> vector<8x26xf32>
    %444 = vector.extract_strided_slice %443 {offsets = [0, 6], sizes = [8, 16], strides = [1, 1]} : vector<8x26xf32> to vector<8x16xf32>
    %445 = vector.extract_strided_slice %443 {offsets = [0, 9], sizes = [8, 16], strides = [1, 1]} : vector<8x26xf32> to vector<8x16xf32>
    %446 = vector.extract_strided_slice %443 {offsets = [0, 10], sizes = [8, 16], strides = [1, 1]} : vector<8x26xf32> to vector<8x16xf32>
    %447 = arith.maximumf %440, %444 : vector<8x16xf32>
    %448 = arith.maximumf %447, %445 : vector<8x16xf32>
    %449 = arith.maximumf %448, %446 : vector<8x16xf32>
    %cst_100 = arith.constant dense<0.000000e+00> : vector<8x4xf32>
    %450 = tpu.matmul %449, %233, %cst_100 {dimension_numbers = #tpu.dot_dimension_numbers<[1], [0], [0], [1], [0, 0, 1, 1], [], []>} : vector<8x16xf32>, vector<16x4xf32>, vector<8x4xf32> -> vector<8x4xf32>
    %c15 = arith.constant 15 : index
    %451 = memref.load %arg0[%c15] : memref<18xf32, #tpu.memory_space<smem>>
    %c16 = arith.constant 16 : index
    %452 = memref.load %arg0[%c16] : memref<18xf32, #tpu.memory_space<smem>>
    %453 = vector.broadcast %451 : f32 to vector<8x4xf32>
    %454 = arith.mulf %453, %239 : vector<8x4xf32>
    %455 = vector.broadcast %452 : f32 to vector<8x4xf32>
    %456 = arith.mulf %455, %450 : vector<8x4xf32>
    %457 = arith.addf %454, %456 : vector<8x4xf32>
    %c5 = arith.constant 5 : index
    %c0_101 = arith.constant 0 : index
    %c0_102 = arith.constant 0 : index
    %458 = vector.load %arg2[%c5, %c0_101, %c0_102] : memref<6x8x72xf32, #tpu.memory_space<vmem>>, vector<1x8x72xf32>
    %459 = vector.shape_cast %458 : vector<1x8x72xf32> to vector<8x72xf32>
    %c5_103 = arith.constant 5 : index
    %c0_104 = arith.constant 0 : index
    %c0_105 = arith.constant 0 : index
    %460 = vector.load %arg3[%c5_103, %c0_104, %c0_105] : memref<6x8x1xf32, #tpu.memory_space<vmem>>, vector<1x8x1xf32>
    %461 = vector.shape_cast %460 : vector<1x8x1xf32> to vector<8x1xf32>
    %cst_106 = arith.constant 0.000000e+00 : f32
    %462 = vector.broadcast %cst_106 : f32 to vector<8x3xf32>
    %cst_107 = arith.constant 0.000000e+00 : f32
    %463 = vector.broadcast %cst_107 : f32 to vector<8x3xf32>
    %464 = tpu.concatenate %462, %457, %463 in 1 : vector<8x3xf32>, vector<8x4xf32>, vector<8x3xf32> -> vector<8x10xf32>
    %465 = vector.extract_strided_slice %464 {offsets = [0, 0], sizes = [8, 4], strides = [1, 1]} : vector<8x10xf32> to vector<8x4xf32>
    %466 = vector.extract_strided_slice %464 {offsets = [0, 1], sizes = [8, 4], strides = [1, 1]} : vector<8x10xf32> to vector<8x4xf32>
    %467 = vector.extract_strided_slice %464 {offsets = [0, 2], sizes = [8, 4], strides = [1, 1]} : vector<8x10xf32> to vector<8x4xf32>
    %468 = vector.extract_strided_slice %464 {offsets = [0, 2], sizes = [8, 4], strides = [1, 1]} : vector<8x10xf32> to vector<8x4xf32>
    %469 = vector.extract_strided_slice %464 {offsets = [0, 4], sizes = [8, 4], strides = [1, 1]} : vector<8x10xf32> to vector<8x4xf32>
    %470 = vector.extract_strided_slice %464 {offsets = [0, 4], sizes = [8, 4], strides = [1, 1]} : vector<8x10xf32> to vector<8x4xf32>
    %471 = vector.extract_strided_slice %464 {offsets = [0, 5], sizes = [8, 4], strides = [1, 1]} : vector<8x10xf32> to vector<8x4xf32>
    %472 = vector.extract_strided_slice %464 {offsets = [0, 6], sizes = [8, 4], strides = [1, 1]} : vector<8x10xf32> to vector<8x4xf32>
    %473 = arith.mulf %465, %114 : vector<8x4xf32>
    %474 = arith.mulf %466, %116 : vector<8x4xf32>
    %475 = arith.mulf %467, %119 : vector<8x4xf32>
    %476 = arith.mulf %468, %121 : vector<8x4xf32>
    %477 = arith.mulf %469, %123 : vector<8x4xf32>
    %478 = arith.mulf %470, %126 : vector<8x4xf32>
    %479 = arith.mulf %471, %128 : vector<8x4xf32>
    %480 = arith.mulf %472, %131 : vector<8x4xf32>
    %481 = tpu.concatenate %473, %474, %475, %476, %457, %477, %478, %479, %480 in 0 : vector<8x4xf32>, vector<8x4xf32>, vector<8x4xf32>, vector<8x4xf32>, vector<8x4xf32>, vector<8x4xf32>, vector<8x4xf32>, vector<8x4xf32>, vector<8x4xf32> -> vector<72x4xf32>
    %cst_108 = arith.constant dense<0.000000e+00> : vector<8x4xf32>
    %482 = tpu.matmul %459, %481, %cst_108 {dimension_numbers = #tpu.dot_dimension_numbers<[1], [0], [0], [1], [0, 0, 1, 1], [], []>} : vector<8x72xf32>, vector<72x4xf32>, vector<8x4xf32> -> vector<8x4xf32>
    %483 = vector.broadcast %461 : vector<8x1xf32> to vector<8x4xf32>
    %484 = arith.addf %482, %483 : vector<8x4xf32>
    %cst_109 = arith.constant 0.000000e+00 : f32
    %485 = vector.broadcast %cst_109 : f32 to vector<8x64xf32>
    %cst_110 = arith.constant 0.000000e+00 : f32
    %486 = vector.broadcast %cst_110 : f32 to vector<8x112xf32>
    %cst_111 = arith.constant 0.000000e+00 : f32
    %487 = vector.broadcast %cst_111 : f32 to vector<8x124xf32>
    %488 = tpu.concatenate %344, %392, %485, %440, %486, %484, %487 in 1 : vector<8x256xf32>, vector<8x64xf32>, vector<8x64xf32>, vector<8x16xf32>, vector<8x112xf32>, vector<8x4xf32>, vector<8x124xf32> -> vector<8x640xf32>
    %c0_112 = arith.constant 0 : index
    %c0_113 = arith.constant 0 : index
    %c0_114 = arith.constant 0 : index
    %489 = vector.load %arg4[%c0_112, %c0_113, %c0_114] : memref<2x8x640xf32, #tpu.memory_space<vmem>>, vector<1x8x640xf32>
    %490 = vector.shape_cast %489 : vector<1x8x640xf32> to vector<8x640xf32>
    %491 = vector.shape_cast %488 : vector<8x640xf32> to vector<1x8x640xf32>
    tpu.vector_store %arg4[%c0_112, %c0_113, %c0_114], %491 {strides = array<i32>} : memref<2x8x640xf32, #tpu.memory_space<vmem>>, vector<1x8x640xf32>,
    %c1_115 = arith.constant 1 : index
    %c0_116 = arith.constant 0 : index
    %c0_117 = arith.constant 0 : index
    %492 = vector.load %arg1[%c1_115, %c0_116, %c0_117] : memref<2x8x640xf32, #tpu.memory_space<vmem>>, vector<1x8x640xf32>
    %493 = vector.shape_cast %492 : vector<1x8x640xf32> to vector<8x640xf32>
    %494 = vector.extract_strided_slice %493 {offsets = [0, 0], sizes = [8, 256], strides = [1, 1]} : vector<8x640xf32> to vector<8x256xf32>
    %495 = vector.extract_strided_slice %493 {offsets = [0, 256], sizes = [8, 64], strides = [1, 1]} : vector<8x640xf32> to vector<8x64xf32>
    %496 = vector.extract_strided_slice %493 {offsets = [0, 384], sizes = [8, 16], strides = [1, 1]} : vector<8x640xf32> to vector<8x16xf32>
    %497 = vector.extract_strided_slice %493 {offsets = [0, 512], sizes = [8, 4], strides = [1, 1]} : vector<8x640xf32> to vector<8x4xf32>
    %cst_118 = arith.constant dense<0.000000e+00> : vector<8x16xf32>
    %498 = tpu.matmul %497, %182, %cst_118 {dimension_numbers = #tpu.dot_dimension_numbers<[1], [0], [0], [1], [0, 0, 1, 1], [], []>} : vector<8x4xf32>, vector<4x16xf32>, vector<8x16xf32> -> vector<8x16xf32>
    %c0_119 = arith.constant 0 : index
    %499 = memref.load %arg0[%c0_119] : memref<18xf32, #tpu.memory_space<smem>>
    %c1_120 = arith.constant 1 : index
    %500 = memref.load %arg0[%c1_120] : memref<18xf32, #tpu.memory_space<smem>>
    %501 = vector.broadcast %499 : f32 to vector<8x16xf32>
    %502 = arith.mulf %501, %496 : vector<8x16xf32>
    %503 = vector.broadcast %500 : f32 to vector<8x16xf32>
    %504 = arith.mulf %503, %498 : vector<8x16xf32>
    %505 = arith.addf %502, %504 : vector<8x16xf32>
    %c0_121 = arith.constant 0 : index
    %c0_122 = arith.constant 0 : index
    %c0_123 = arith.constant 0 : index
    %506 = vector.load %arg2[%c0_121, %c0_122, %c0_123] : memref<6x8x72xf32, #tpu.memory_space<vmem>>, vector<1x8x72xf32>
    %507 = vector.shape_cast %506 : vector<1x8x72xf32> to vector<8x72xf32>
    %c0_124 = arith.constant 0 : index
    %c0_125 = arith.constant 0 : index
    %c0_126 = arith.constant 0 : index
    %508 = vector.load %arg3[%c0_124, %c0_125, %c0_126] : memref<6x8x1xf32, #tpu.memory_space<vmem>>, vector<1x8x1xf32>
    %509 = vector.shape_cast %508 : vector<1x8x1xf32> to vector<8x1xf32>
    %cst_127 = arith.constant 0.000000e+00 : f32
    %510 = vector.broadcast %cst_127 : f32 to vector<8x5xf32>
    %cst_128 = arith.constant 0.000000e+00 : f32
    %511 = vector.broadcast %cst_128 : f32 to vector<8x5xf32>
    %512 = tpu.concatenate %510, %505, %511 in 1 : vector<8x5xf32>, vector<8x16xf32>, vector<8x5xf32> -> vector<8x26xf32>
    %513 = vector.extract_strided_slice %512 {offsets = [0, 0], sizes = [8, 16], strides = [1, 1]} : vector<8x26xf32> to vector<8x16xf32>
    %514 = vector.extract_strided_slice %512 {offsets = [0, 1], sizes = [8, 16], strides = [1, 1]} : vector<8x26xf32> to vector<8x16xf32>
    %515 = vector.extract_strided_slice %512 {offsets = [0, 2], sizes = [8, 16], strides = [1, 1]} : vector<8x26xf32> to vector<8x16xf32>
    %516 = vector.extract_strided_slice %512 {offsets = [0, 4], sizes = [8, 16], strides = [1, 1]} : vector<8x26xf32> to vector<8x16xf32>
    %517 = vector.extract_strided_slice %512 {offsets = [0, 6], sizes = [8, 16], strides = [1, 1]} : vector<8x26xf32> to vector<8x16xf32>
    %518 = vector.extract_strided_slice %512 {offsets = [0, 8], sizes = [8, 16], strides = [1, 1]} : vector<8x26xf32> to vector<8x16xf32>
    %519 = vector.extract_strided_slice %512 {offsets = [0, 9], sizes = [8, 16], strides = [1, 1]} : vector<8x26xf32> to vector<8x16xf32>
    %520 = vector.extract_strided_slice %512 {offsets = [0, 10], sizes = [8, 16], strides = [1, 1]} : vector<8x26xf32> to vector<8x16xf32>
    %521 = arith.mulf %513, %15 : vector<8x16xf32>
    %522 = arith.mulf %514, %17 : vector<8x16xf32>
    %523 = arith.mulf %515, %20 : vector<8x16xf32>
    %524 = arith.mulf %516, %22 : vector<8x16xf32>
    %525 = arith.mulf %517, %24 : vector<8x16xf32>
    %526 = arith.mulf %518, %27 : vector<8x16xf32>
    %527 = arith.mulf %519, %29 : vector<8x16xf32>
    %528 = arith.mulf %520, %32 : vector<8x16xf32>
    %529 = tpu.concatenate %521, %522, %523, %524, %505, %525, %526, %527, %528 in 0 : vector<8x16xf32>, vector<8x16xf32>, vector<8x16xf32>, vector<8x16xf32>, vector<8x16xf32>, vector<8x16xf32>, vector<8x16xf32>, vector<8x16xf32>, vector<8x16xf32> -> vector<72x16xf32>
    %cst_129 = arith.constant dense<0.000000e+00> : vector<8x16xf32>
    %530 = tpu.matmul %507, %529, %cst_129 {dimension_numbers = #tpu.dot_dimension_numbers<[1], [0], [0], [1], [0, 0, 1, 1], [], []>} : vector<8x72xf32>, vector<72x16xf32>, vector<8x16xf32> -> vector<8x16xf32>
    %531 = vector.broadcast %509 : vector<8x1xf32> to vector<8x16xf32>
    %532 = arith.addf %530, %531 : vector<8x16xf32>
    %cst_130 = arith.constant dense<0.000000e+00> : vector<8x64xf32>
    %533 = tpu.matmul %532, %165, %cst_130 {dimension_numbers = #tpu.dot_dimension_numbers<[1], [0], [0], [1], [0, 0, 1, 1], [], []>} : vector<8x16xf32>, vector<16x64xf32>, vector<8x64xf32> -> vector<8x64xf32>
    %c3_131 = arith.constant 3 : index
    %534 = memref.load %arg0[%c3_131] : memref<18xf32, #tpu.memory_space<smem>>
    %c4_132 = arith.constant 4 : index
    %535 = memref.load %arg0[%c4_132] : memref<18xf32, #tpu.memory_space<smem>>
    %536 = vector.broadcast %534 : f32 to vector<8x64xf32>
    %537 = arith.mulf %536, %495 : vector<8x64xf32>
    %538 = vector.broadcast %535 : f32 to vector<8x64xf32>
    %539 = arith.mulf %538, %533 : vector<8x64xf32>
    %540 = arith.addf %537, %539 : vector<8x64xf32>
    %c1_133 = arith.constant 1 : index
    %c0_134 = arith.constant 0 : index
    %c0_135 = arith.constant 0 : index
    %541 = vector.load %arg2[%c1_133, %c0_134, %c0_135] : memref<6x8x72xf32, #tpu.memory_space<vmem>>, vector<1x8x72xf32>
    %542 = vector.shape_cast %541 : vector<1x8x72xf32> to vector<8x72xf32>
    %c1_136 = arith.constant 1 : index
    %c0_137 = arith.constant 0 : index
    %c0_138 = arith.constant 0 : index
    %543 = vector.load %arg3[%c1_136, %c0_137, %c0_138] : memref<6x8x1xf32, #tpu.memory_space<vmem>>, vector<1x8x1xf32>
    %544 = vector.shape_cast %543 : vector<1x8x1xf32> to vector<8x1xf32>
    %cst_139 = arith.constant 0.000000e+00 : f32
    %545 = vector.broadcast %cst_139 : f32 to vector<8x9xf32>
    %cst_140 = arith.constant 0.000000e+00 : f32
    %546 = vector.broadcast %cst_140 : f32 to vector<8x9xf32>
    %547 = tpu.concatenate %545, %540, %546 in 1 : vector<8x9xf32>, vector<8x64xf32>, vector<8x9xf32> -> vector<8x82xf32>
    %548 = vector.extract_strided_slice %547 {offsets = [0, 0], sizes = [8, 64], strides = [1, 1]} : vector<8x82xf32> to vector<8x64xf32>
    %549 = vector.extract_strided_slice %547 {offsets = [0, 1], sizes = [8, 64], strides = [1, 1]} : vector<8x82xf32> to vector<8x64xf32>
    %550 = vector.extract_strided_slice %547 {offsets = [0, 2], sizes = [8, 64], strides = [1, 1]} : vector<8x82xf32> to vector<8x64xf32>
    %551 = vector.extract_strided_slice %547 {offsets = [0, 8], sizes = [8, 64], strides = [1, 1]} : vector<8x82xf32> to vector<8x64xf32>
    %552 = vector.extract_strided_slice %547 {offsets = [0, 10], sizes = [8, 64], strides = [1, 1]} : vector<8x82xf32> to vector<8x64xf32>
    %553 = vector.extract_strided_slice %547 {offsets = [0, 16], sizes = [8, 64], strides = [1, 1]} : vector<8x82xf32> to vector<8x64xf32>
    %554 = vector.extract_strided_slice %547 {offsets = [0, 17], sizes = [8, 64], strides = [1, 1]} : vector<8x82xf32> to vector<8x64xf32>
    %555 = vector.extract_strided_slice %547 {offsets = [0, 18], sizes = [8, 64], strides = [1, 1]} : vector<8x82xf32> to vector<8x64xf32>
    %556 = arith.mulf %548, %48 : vector<8x64xf32>
    %557 = arith.mulf %549, %50 : vector<8x64xf32>
    %558 = arith.mulf %550, %53 : vector<8x64xf32>
    %559 = arith.mulf %551, %55 : vector<8x64xf32>
    %560 = arith.mulf %552, %57 : vector<8x64xf32>
    %561 = arith.mulf %553, %60 : vector<8x64xf32>
    %562 = arith.mulf %554, %62 : vector<8x64xf32>
    %563 = arith.mulf %555, %65 : vector<8x64xf32>
    %564 = tpu.concatenate %556, %557, %558, %559, %540, %560, %561, %562, %563 in 0 : vector<8x64xf32>, vector<8x64xf32>, vector<8x64xf32>, vector<8x64xf32>, vector<8x64xf32>, vector<8x64xf32>, vector<8x64xf32>, vector<8x64xf32>, vector<8x64xf32> -> vector<72x64xf32>
    %cst_141 = arith.constant dense<0.000000e+00> : vector<8x64xf32>
    %565 = tpu.matmul %542, %564, %cst_141 {dimension_numbers = #tpu.dot_dimension_numbers<[1], [0], [0], [1], [0, 0, 1, 1], [], []>} : vector<8x72xf32>, vector<72x64xf32>, vector<8x64xf32> -> vector<8x64xf32>
    %566 = vector.broadcast %544 : vector<8x1xf32> to vector<8x64xf32>
    %567 = arith.addf %565, %566 : vector<8x64xf32>
    %cst_142 = arith.constant dense<0.000000e+00> : vector<8x256xf32>
    %568 = tpu.matmul %567, %148, %cst_142 {dimension_numbers = #tpu.dot_dimension_numbers<[1], [0], [0], [1], [0, 0, 1, 1], [], []>} : vector<8x64xf32>, vector<64x256xf32>, vector<8x256xf32> -> vector<8x256xf32>
    %c6_143 = arith.constant 6 : index
    %569 = memref.load %arg0[%c6_143] : memref<18xf32, #tpu.memory_space<smem>>
    %c7_144 = arith.constant 7 : index
    %570 = memref.load %arg0[%c7_144] : memref<18xf32, #tpu.memory_space<smem>>
    %571 = vector.broadcast %569 : f32 to vector<8x256xf32>
    %572 = arith.mulf %571, %494 : vector<8x256xf32>
    %573 = vector.broadcast %570 : f32 to vector<8x256xf32>
    %574 = arith.mulf %573, %568 : vector<8x256xf32>
    %575 = arith.addf %572, %574 : vector<8x256xf32>
    %c2_145 = arith.constant 2 : index
    %c0_146 = arith.constant 0 : index
    %c0_147 = arith.constant 0 : index
    %576 = vector.load %arg2[%c2_145, %c0_146, %c0_147] : memref<6x8x72xf32, #tpu.memory_space<vmem>>, vector<1x8x72xf32>
    %577 = vector.shape_cast %576 : vector<1x8x72xf32> to vector<8x72xf32>
    %c2_148 = arith.constant 2 : index
    %c0_149 = arith.constant 0 : index
    %c0_150 = arith.constant 0 : index
    %578 = vector.load %arg3[%c2_148, %c0_149, %c0_150] : memref<6x8x1xf32, #tpu.memory_space<vmem>>, vector<1x8x1xf32>
    %579 = vector.shape_cast %578 : vector<1x8x1xf32> to vector<8x1xf32>
    %cst_151 = arith.constant 0.000000e+00 : f32
    %580 = vector.broadcast %cst_151 : f32 to vector<8x17xf32>
    %cst_152 = arith.constant 0.000000e+00 : f32
    %581 = vector.broadcast %cst_152 : f32 to vector<8x17xf32>
    %582 = tpu.concatenate %580, %575, %581 in 1 : vector<8x17xf32>, vector<8x256xf32>, vector<8x17xf32> -> vector<8x290xf32>
    %583 = vector.extract_strided_slice %582 {offsets = [0, 0], sizes = [8, 256], strides = [1, 1]} : vector<8x290xf32> to vector<8x256xf32>
    %584 = vector.extract_strided_slice %582 {offsets = [0, 1], sizes = [8, 256], strides = [1, 1]} : vector<8x290xf32> to vector<8x256xf32>
    %585 = vector.extract_strided_slice %582 {offsets = [0, 2], sizes = [8, 256], strides = [1, 1]} : vector<8x290xf32> to vector<8x256xf32>
    %586 = vector.extract_strided_slice %582 {offsets = [0, 16], sizes = [8, 256], strides = [1, 1]} : vector<8x290xf32> to vector<8x256xf32>
    %587 = vector.extract_strided_slice %582 {offsets = [0, 18], sizes = [8, 256], strides = [1, 1]} : vector<8x290xf32> to vector<8x256xf32>
    %588 = vector.extract_strided_slice %582 {offsets = [0, 32], sizes = [8, 256], strides = [1, 1]} : vector<8x290xf32> to vector<8x256xf32>
    %589 = vector.extract_strided_slice %582 {offsets = [0, 33], sizes = [8, 256], strides = [1, 1]} : vector<8x290xf32> to vector<8x256xf32>
    %590 = vector.extract_strided_slice %582 {offsets = [0, 34], sizes = [8, 256], strides = [1, 1]} : vector<8x290xf32> to vector<8x256xf32>
    %591 = arith.mulf %583, %81 : vector<8x256xf32>
    %592 = arith.mulf %584, %83 : vector<8x256xf32>
    %593 = arith.mulf %585, %86 : vector<8x256xf32>
    %594 = arith.mulf %586, %88 : vector<8x256xf32>
    %595 = arith.mulf %587, %90 : vector<8x256xf32>
    %596 = arith.mulf %588, %93 : vector<8x256xf32>
    %597 = arith.mulf %589, %95 : vector<8x256xf32>
    %598 = arith.mulf %590, %98 : vector<8x256xf32>
    %599 = tpu.concatenate %591, %592, %593, %594, %575, %595, %596, %597, %598 in 0 : vector<8x256xf32>, vector<8x256xf32>, vector<8x256xf32>, vector<8x256xf32>, vector<8x256xf32>, vector<8x256xf32>, vector<8x256xf32>, vector<8x256xf32>, vector<8x256xf32> -> vector<72x256xf32>
    %cst_153 = arith.constant dense<0.000000e+00> : vector<8x256xf32>
    %600 = tpu.matmul %577, %599, %cst_153 {dimension_numbers = #tpu.dot_dimension_numbers<[1], [0], [0], [1], [0, 0, 1, 1], [], []>} : vector<8x72xf32>, vector<72x256xf32>, vector<8x256xf32> -> vector<8x256xf32>
    %601 = vector.broadcast %579 : vector<8x1xf32> to vector<8x256xf32>
    %602 = arith.addf %600, %601 : vector<8x256xf32>
    %cst_154 = arith.constant 0.000000e+00 : f32
    %603 = vector.broadcast %cst_154 : f32 to vector<8x17xf32>
    %cst_155 = arith.constant 0.000000e+00 : f32
    %604 = vector.broadcast %cst_155 : f32 to vector<8x17xf32>
    %605 = tpu.concatenate %603, %602, %604 in 1 : vector<8x17xf32>, vector<8x256xf32>, vector<8x17xf32> -> vector<8x290xf32>
    %606 = vector.extract_strided_slice %605 {offsets = [0, 18], sizes = [8, 256], strides = [1, 1]} : vector<8x290xf32> to vector<8x256xf32>
    %607 = vector.extract_strided_slice %605 {offsets = [0, 33], sizes = [8, 256], strides = [1, 1]} : vector<8x290xf32> to vector<8x256xf32>
    %608 = vector.extract_strided_slice %605 {offsets = [0, 34], sizes = [8, 256], strides = [1, 1]} : vector<8x290xf32> to vector<8x256xf32>
    %609 = arith.maximumf %602, %606 : vector<8x256xf32>
    %610 = arith.maximumf %609, %607 : vector<8x256xf32>
    %611 = arith.maximumf %610, %608 : vector<8x256xf32>
    %cst_156 = arith.constant dense<0.000000e+00> : vector<8x64xf32>
    %612 = tpu.matmul %611, %199, %cst_156 {dimension_numbers = #tpu.dot_dimension_numbers<[1], [0], [0], [1], [0, 0, 1, 1], [], []>} : vector<8x256xf32>, vector<256x64xf32>, vector<8x64xf32> -> vector<8x64xf32>
    %c9_157 = arith.constant 9 : index
    %613 = memref.load %arg0[%c9_157] : memref<18xf32, #tpu.memory_space<smem>>
    %c10_158 = arith.constant 10 : index
    %614 = memref.load %arg0[%c10_158] : memref<18xf32, #tpu.memory_space<smem>>
    %c11_159 = arith.constant 11 : index
    %615 = memref.load %arg0[%c11_159] : memref<18xf32, #tpu.memory_space<smem>>
    %616 = vector.broadcast %613 : f32 to vector<8x64xf32>
    %617 = arith.mulf %616, %567 : vector<8x64xf32>
    %618 = vector.broadcast %614 : f32 to vector<8x64xf32>
    %619 = arith.mulf %618, %612 : vector<8x64xf32>
    %620 = arith.addf %617, %619 : vector<8x64xf32>
    %621 = vector.broadcast %615 : f32 to vector<8x64xf32>
    %622 = arith.mulf %621, %495 : vector<8x64xf32>
    %623 = arith.addf %620, %622 : vector<8x64xf32>
    %c3_160 = arith.constant 3 : index
    %c0_161 = arith.constant 0 : index
    %c0_162 = arith.constant 0 : index
    %624 = vector.load %arg2[%c3_160, %c0_161, %c0_162] : memref<6x8x72xf32, #tpu.memory_space<vmem>>, vector<1x8x72xf32>
    %625 = vector.shape_cast %624 : vector<1x8x72xf32> to vector<8x72xf32>
    %c3_163 = arith.constant 3 : index
    %c0_164 = arith.constant 0 : index
    %c0_165 = arith.constant 0 : index
    %626 = vector.load %arg3[%c3_163, %c0_164, %c0_165] : memref<6x8x1xf32, #tpu.memory_space<vmem>>, vector<1x8x1xf32>
    %627 = vector.shape_cast %626 : vector<1x8x1xf32> to vector<8x1xf32>
    %cst_166 = arith.constant 0.000000e+00 : f32
    %628 = vector.broadcast %cst_166 : f32 to vector<8x9xf32>
    %cst_167 = arith.constant 0.000000e+00 : f32
    %629 = vector.broadcast %cst_167 : f32 to vector<8x9xf32>
    %630 = tpu.concatenate %628, %623, %629 in 1 : vector<8x9xf32>, vector<8x64xf32>, vector<8x9xf32> -> vector<8x82xf32>
    %631 = vector.extract_strided_slice %630 {offsets = [0, 0], sizes = [8, 64], strides = [1, 1]} : vector<8x82xf32> to vector<8x64xf32>
    %632 = vector.extract_strided_slice %630 {offsets = [0, 1], sizes = [8, 64], strides = [1, 1]} : vector<8x82xf32> to vector<8x64xf32>
    %633 = vector.extract_strided_slice %630 {offsets = [0, 2], sizes = [8, 64], strides = [1, 1]} : vector<8x82xf32> to vector<8x64xf32>
    %634 = vector.extract_strided_slice %630 {offsets = [0, 8], sizes = [8, 64], strides = [1, 1]} : vector<8x82xf32> to vector<8x64xf32>
    %635 = vector.extract_strided_slice %630 {offsets = [0, 10], sizes = [8, 64], strides = [1, 1]} : vector<8x82xf32> to vector<8x64xf32>
    %636 = vector.extract_strided_slice %630 {offsets = [0, 16], sizes = [8, 64], strides = [1, 1]} : vector<8x82xf32> to vector<8x64xf32>
    %637 = vector.extract_strided_slice %630 {offsets = [0, 17], sizes = [8, 64], strides = [1, 1]} : vector<8x82xf32> to vector<8x64xf32>
    %638 = vector.extract_strided_slice %630 {offsets = [0, 18], sizes = [8, 64], strides = [1, 1]} : vector<8x82xf32> to vector<8x64xf32>
    %639 = arith.mulf %631, %48 : vector<8x64xf32>
    %640 = arith.mulf %632, %50 : vector<8x64xf32>
    %641 = arith.mulf %633, %53 : vector<8x64xf32>
    %642 = arith.mulf %634, %55 : vector<8x64xf32>
    %643 = arith.mulf %635, %57 : vector<8x64xf32>
    %644 = arith.mulf %636, %60 : vector<8x64xf32>
    %645 = arith.mulf %637, %62 : vector<8x64xf32>
    %646 = arith.mulf %638, %65 : vector<8x64xf32>
    %647 = tpu.concatenate %639, %640, %641, %642, %623, %643, %644, %645, %646 in 0 : vector<8x64xf32>, vector<8x64xf32>, vector<8x64xf32>, vector<8x64xf32>, vector<8x64xf32>, vector<8x64xf32>, vector<8x64xf32>, vector<8x64xf32>, vector<8x64xf32> -> vector<72x64xf32>
    %cst_168 = arith.constant dense<0.000000e+00> : vector<8x64xf32>
    %648 = tpu.matmul %625, %647, %cst_168 {dimension_numbers = #tpu.dot_dimension_numbers<[1], [0], [0], [1], [0, 0, 1, 1], [], []>} : vector<8x72xf32>, vector<72x64xf32>, vector<8x64xf32> -> vector<8x64xf32>
    %649 = vector.broadcast %627 : vector<8x1xf32> to vector<8x64xf32>
    %650 = arith.addf %648, %649 : vector<8x64xf32>
    %cst_169 = arith.constant 0.000000e+00 : f32
    %651 = vector.broadcast %cst_169 : f32 to vector<8x9xf32>
    %cst_170 = arith.constant 0.000000e+00 : f32
    %652 = vector.broadcast %cst_170 : f32 to vector<8x9xf32>
    %653 = tpu.concatenate %651, %650, %652 in 1 : vector<8x9xf32>, vector<8x64xf32>, vector<8x9xf32> -> vector<8x82xf32>
    %654 = vector.extract_strided_slice %653 {offsets = [0, 10], sizes = [8, 64], strides = [1, 1]} : vector<8x82xf32> to vector<8x64xf32>
    %655 = vector.extract_strided_slice %653 {offsets = [0, 17], sizes = [8, 64], strides = [1, 1]} : vector<8x82xf32> to vector<8x64xf32>
    %656 = vector.extract_strided_slice %653 {offsets = [0, 18], sizes = [8, 64], strides = [1, 1]} : vector<8x82xf32> to vector<8x64xf32>
    %657 = arith.maximumf %650, %654 : vector<8x64xf32>
    %658 = arith.maximumf %657, %655 : vector<8x64xf32>
    %659 = arith.maximumf %658, %656 : vector<8x64xf32>
    %cst_171 = arith.constant dense<0.000000e+00> : vector<8x16xf32>
    %660 = tpu.matmul %659, %216, %cst_171 {dimension_numbers = #tpu.dot_dimension_numbers<[1], [0], [0], [1], [0, 0, 1, 1], [], []>} : vector<8x64xf32>, vector<64x16xf32>, vector<8x16xf32> -> vector<8x16xf32>
    %c12_172 = arith.constant 12 : index
    %661 = memref.load %arg0[%c12_172] : memref<18xf32, #tpu.memory_space<smem>>
    %c13_173 = arith.constant 13 : index
    %662 = memref.load %arg0[%c13_173] : memref<18xf32, #tpu.memory_space<smem>>
    %c14_174 = arith.constant 14 : index
    %663 = memref.load %arg0[%c14_174] : memref<18xf32, #tpu.memory_space<smem>>
    %664 = vector.broadcast %661 : f32 to vector<8x16xf32>
    %665 = arith.mulf %664, %532 : vector<8x16xf32>
    %666 = vector.broadcast %662 : f32 to vector<8x16xf32>
    %667 = arith.mulf %666, %660 : vector<8x16xf32>
    %668 = arith.addf %665, %667 : vector<8x16xf32>
    %669 = vector.broadcast %663 : f32 to vector<8x16xf32>
    %670 = arith.mulf %669, %496 : vector<8x16xf32>
    %671 = arith.addf %668, %670 : vector<8x16xf32>
    %c4_175 = arith.constant 4 : index
    %c0_176 = arith.constant 0 : index
    %c0_177 = arith.constant 0 : index
    %672 = vector.load %arg2[%c4_175, %c0_176, %c0_177] : memref<6x8x72xf32, #tpu.memory_space<vmem>>, vector<1x8x72xf32>
    %673 = vector.shape_cast %672 : vector<1x8x72xf32> to vector<8x72xf32>
    %c4_178 = arith.constant 4 : index
    %c0_179 = arith.constant 0 : index
    %c0_180 = arith.constant 0 : index
    %674 = vector.load %arg3[%c4_178, %c0_179, %c0_180] : memref<6x8x1xf32, #tpu.memory_space<vmem>>, vector<1x8x1xf32>
    %675 = vector.shape_cast %674 : vector<1x8x1xf32> to vector<8x1xf32>
    %cst_181 = arith.constant 0.000000e+00 : f32
    %676 = vector.broadcast %cst_181 : f32 to vector<8x5xf32>
    %cst_182 = arith.constant 0.000000e+00 : f32
    %677 = vector.broadcast %cst_182 : f32 to vector<8x5xf32>
    %678 = tpu.concatenate %676, %671, %677 in 1 : vector<8x5xf32>, vector<8x16xf32>, vector<8x5xf32> -> vector<8x26xf32>
    %679 = vector.extract_strided_slice %678 {offsets = [0, 0], sizes = [8, 16], strides = [1, 1]} : vector<8x26xf32> to vector<8x16xf32>
    %680 = vector.extract_strided_slice %678 {offsets = [0, 1], sizes = [8, 16], strides = [1, 1]} : vector<8x26xf32> to vector<8x16xf32>
    %681 = vector.extract_strided_slice %678 {offsets = [0, 2], sizes = [8, 16], strides = [1, 1]} : vector<8x26xf32> to vector<8x16xf32>
    %682 = vector.extract_strided_slice %678 {offsets = [0, 4], sizes = [8, 16], strides = [1, 1]} : vector<8x26xf32> to vector<8x16xf32>
    %683 = vector.extract_strided_slice %678 {offsets = [0, 6], sizes = [8, 16], strides = [1, 1]} : vector<8x26xf32> to vector<8x16xf32>
    %684 = vector.extract_strided_slice %678 {offsets = [0, 8], sizes = [8, 16], strides = [1, 1]} : vector<8x26xf32> to vector<8x16xf32>
    %685 = vector.extract_strided_slice %678 {offsets = [0, 9], sizes = [8, 16], strides = [1, 1]} : vector<8x26xf32> to vector<8x16xf32>
    %686 = vector.extract_strided_slice %678 {offsets = [0, 10], sizes = [8, 16], strides = [1, 1]} : vector<8x26xf32> to vector<8x16xf32>
    %687 = arith.mulf %679, %15 : vector<8x16xf32>
    %688 = arith.mulf %680, %17 : vector<8x16xf32>
    %689 = arith.mulf %681, %20 : vector<8x16xf32>
    %690 = arith.mulf %682, %22 : vector<8x16xf32>
    %691 = arith.mulf %683, %24 : vector<8x16xf32>
    %692 = arith.mulf %684, %27 : vector<8x16xf32>
    %693 = arith.mulf %685, %29 : vector<8x16xf32>
    %694 = arith.mulf %686, %32 : vector<8x16xf32>
    %695 = tpu.concatenate %687, %688, %689, %690, %671, %691, %692, %693, %694 in 0 : vector<8x16xf32>, vector<8x16xf32>, vector<8x16xf32>, vector<8x16xf32>, vector<8x16xf32>, vector<8x16xf32>, vector<8x16xf32>, vector<8x16xf32>, vector<8x16xf32> -> vector<72x16xf32>
    %cst_183 = arith.constant dense<0.000000e+00> : vector<8x16xf32>
    %696 = tpu.matmul %673, %695, %cst_183 {dimension_numbers = #tpu.dot_dimension_numbers<[1], [0], [0], [1], [0, 0, 1, 1], [], []>} : vector<8x72xf32>, vector<72x16xf32>, vector<8x16xf32> -> vector<8x16xf32>
    %697 = vector.broadcast %675 : vector<8x1xf32> to vector<8x16xf32>
    %698 = arith.addf %696, %697 : vector<8x16xf32>
    %cst_184 = arith.constant 0.000000e+00 : f32
    %699 = vector.broadcast %cst_184 : f32 to vector<8x5xf32>
    %cst_185 = arith.constant 0.000000e+00 : f32
    %700 = vector.broadcast %cst_185 : f32 to vector<8x5xf32>
    %701 = tpu.concatenate %699, %698, %700 in 1 : vector<8x5xf32>, vector<8x16xf32>, vector<8x5xf32> -> vector<8x26xf32>
    %702 = vector.extract_strided_slice %701 {offsets = [0, 6], sizes = [8, 16], strides = [1, 1]} : vector<8x26xf32> to vector<8x16xf32>
    %703 = vector.extract_strided_slice %701 {offsets = [0, 9], sizes = [8, 16], strides = [1, 1]} : vector<8x26xf32> to vector<8x16xf32>
    %704 = vector.extract_strided_slice %701 {offsets = [0, 10], sizes = [8, 16], strides = [1, 1]} : vector<8x26xf32> to vector<8x16xf32>
    %705 = arith.maximumf %698, %702 : vector<8x16xf32>
    %706 = arith.maximumf %705, %703 : vector<8x16xf32>
    %707 = arith.maximumf %706, %704 : vector<8x16xf32>
    %cst_186 = arith.constant dense<0.000000e+00> : vector<8x4xf32>
    %708 = tpu.matmul %707, %233, %cst_186 {dimension_numbers = #tpu.dot_dimension_numbers<[1], [0], [0], [1], [0, 0, 1, 1], [], []>} : vector<8x16xf32>, vector<16x4xf32>, vector<8x4xf32> -> vector<8x4xf32>
    %c15_187 = arith.constant 15 : index
    %709 = memref.load %arg0[%c15_187] : memref<18xf32, #tpu.memory_space<smem>>
    %c16_188 = arith.constant 16 : index
    %710 = memref.load %arg0[%c16_188] : memref<18xf32, #tpu.memory_space<smem>>
    %711 = vector.broadcast %709 : f32 to vector<8x4xf32>
    %712 = arith.mulf %711, %497 : vector<8x4xf32>
    %713 = vector.broadcast %710 : f32 to vector<8x4xf32>
    %714 = arith.mulf %713, %708 : vector<8x4xf32>
    %715 = arith.addf %712, %714 : vector<8x4xf32>
    %c5_189 = arith.constant 5 : index
    %c0_190 = arith.constant 0 : index
    %c0_191 = arith.constant 0 : index
    %716 = vector.load %arg2[%c5_189, %c0_190, %c0_191] : memref<6x8x72xf32, #tpu.memory_space<vmem>>, vector<1x8x72xf32>
    %717 = vector.shape_cast %716 : vector<1x8x72xf32> to vector<8x72xf32>
    %c5_192 = arith.constant 5 : index
    %c0_193 = arith.constant 0 : index
    %c0_194 = arith.constant 0 : index
    %718 = vector.load %arg3[%c5_192, %c0_193, %c0_194] : memref<6x8x1xf32, #tpu.memory_space<vmem>>, vector<1x8x1xf32>
    %719 = vector.shape_cast %718 : vector<1x8x1xf32> to vector<8x1xf32>
    %cst_195 = arith.constant 0.000000e+00 : f32
    %720 = vector.broadcast %cst_195 : f32 to vector<8x3xf32>
    %cst_196 = arith.constant 0.000000e+00 : f32
    %721 = vector.broadcast %cst_196 : f32 to vector<8x3xf32>
    %722 = tpu.concatenate %720, %715, %721 in 1 : vector<8x3xf32>, vector<8x4xf32>, vector<8x3xf32> -> vector<8x10xf32>
    %723 = vector.extract_strided_slice %722 {offsets = [0, 0], sizes = [8, 4], strides = [1, 1]} : vector<8x10xf32> to vector<8x4xf32>
    %724 = vector.extract_strided_slice %722 {offsets = [0, 1], sizes = [8, 4], strides = [1, 1]} : vector<8x10xf32> to vector<8x4xf32>
    %725 = vector.extract_strided_slice %722 {offsets = [0, 2], sizes = [8, 4], strides = [1, 1]} : vector<8x10xf32> to vector<8x4xf32>
    %726 = vector.extract_strided_slice %722 {offsets = [0, 2], sizes = [8, 4], strides = [1, 1]} : vector<8x10xf32> to vector<8x4xf32>
    %727 = vector.extract_strided_slice %722 {offsets = [0, 4], sizes = [8, 4], strides = [1, 1]} : vector<8x10xf32> to vector<8x4xf32>
    %728 = vector.extract_strided_slice %722 {offsets = [0, 4], sizes = [8, 4], strides = [1, 1]} : vector<8x10xf32> to vector<8x4xf32>
    %729 = vector.extract_strided_slice %722 {offsets = [0, 5], sizes = [8, 4], strides = [1, 1]} : vector<8x10xf32> to vector<8x4xf32>
    %730 = vector.extract_strided_slice %722 {offsets = [0, 6], sizes = [8, 4], strides = [1, 1]} : vector<8x10xf32> to vector<8x4xf32>
    %731 = arith.mulf %723, %114 : vector<8x4xf32>
    %732 = arith.mulf %724, %116 : vector<8x4xf32>
    %733 = arith.mulf %725, %119 : vector<8x4xf32>
    %734 = arith.mulf %726, %121 : vector<8x4xf32>
    %735 = arith.mulf %727, %123 : vector<8x4xf32>
    %736 = arith.mulf %728, %126 : vector<8x4xf32>
    %737 = arith.mulf %729, %128 : vector<8x4xf32>
    %738 = arith.mulf %730, %131 : vector<8x4xf32>
    %739 = tpu.concatenate %731, %732, %733, %734, %715, %735, %736, %737, %738 in 0 : vector<8x4xf32>, vector<8x4xf32>, vector<8x4xf32>, vector<8x4xf32>, vector<8x4xf32>, vector<8x4xf32>, vector<8x4xf32>, vector<8x4xf32>, vector<8x4xf32> -> vector<72x4xf32>
    %cst_197 = arith.constant dense<0.000000e+00> : vector<8x4xf32>
    %740 = tpu.matmul %717, %739, %cst_197 {dimension_numbers = #tpu.dot_dimension_numbers<[1], [0], [0], [1], [0, 0, 1, 1], [], []>} : vector<8x72xf32>, vector<72x4xf32>, vector<8x4xf32> -> vector<8x4xf32>
    %741 = vector.broadcast %719 : vector<8x1xf32> to vector<8x4xf32>
    %742 = arith.addf %740, %741 : vector<8x4xf32>
    %cst_198 = arith.constant 0.000000e+00 : f32
    %743 = vector.broadcast %cst_198 : f32 to vector<8x64xf32>
    %cst_199 = arith.constant 0.000000e+00 : f32
    %744 = vector.broadcast %cst_199 : f32 to vector<8x112xf32>
    %cst_200 = arith.constant 0.000000e+00 : f32
    %745 = vector.broadcast %cst_200 : f32 to vector<8x124xf32>
    %746 = tpu.concatenate %602, %650, %743, %698, %744, %742, %745 in 1 : vector<8x256xf32>, vector<8x64xf32>, vector<8x64xf32>, vector<8x16xf32>, vector<8x112xf32>, vector<8x4xf32>, vector<8x124xf32> -> vector<8x640xf32>
    %c1_201 = arith.constant 1 : index
    %c0_202 = arith.constant 0 : index
    %c0_203 = arith.constant 0 : index
    %747 = vector.load %arg4[%c1_201, %c0_202, %c0_203] : memref<2x8x640xf32, #tpu.memory_space<vmem>>, vector<1x8x640xf32>
    %748 = vector.shape_cast %747 : vector<1x8x640xf32> to vector<8x640xf32>
    %749 = vector.shape_cast %746 : vector<8x640xf32> to vector<1x8x640xf32>
    tpu.vector_store %arg4[%c1_201, %c0_202, %c0_203], %749 {strides = array<i32>} : memref<2x8x640xf32, #tpu.memory_space<vmem>>, vector<1x8x640xf32>,
    return
  }
}

</mosaic_0001>

<llo_original>
// kernel: tpu_custom_call.1
$region0: #{tpu_custom_call.1}
  #allocation0 [shape = 'u32[]', space=smem, size = 0x4, offset = 0x4, fixed_abs, tag = 'smem constant byte address 0x4 - core index']
  #allocation1 [shape = 'u32[144,128]{1,0:T(1,128)}', space=vmem, size = 0x12000, scoped, tag = 'internal scratch']
  %s0 = inlined_call_operand.hbm [shape: f32[8,256], index: 0, kind: input, shape index: {}]
  %s1 = inlined_call_operand.hbm [shape: f32[8,256], index: 1, kind: output, shape index: {}]
  %s2 = sld [smem:[#allocation0]]
  $region18: #{tpu_custom_call.1} parent=0
    _
  %s4 = ssub.s32 1, %s2
  %s5 = scalar_select 0, %s4, %s2
  $region1: #{tpu_custom_call.1} parent=0
    #allocation2 [shape = 'u8[8192]{0}', space=vmem, size = 0x2000, scoped, tag = 'input window, operand 0, single buffered']
    #allocation3 [shape = 's32[1]{0}', space=sflag, size = 0x4, scoped, tag = 'scoped memory for tpu_custom_call.1']
    #allocation4 [shape = 's32[1]{0}', space=sflag, size = 0x4, scoped, tag = 'scoped memory for tpu_custom_call.1']
    #allocation5 [shape = 'u8[8192]{0}', space=vmem, size = 0x2000, scoped, tag = 'output window, operand 0, single buffered']
    %6 = vsyncpa [#allocation3], 0
    %7 = vsyncpa [#allocation4], 0
    // Predicated region
    $region2: #{tpu_custom_call.1} parent=1 // pred_check
      _
    $region3: #{tpu_custom_call.1} parent=1 // pred_check_branch
      %9 = sbr.rel (0) target = $region5
    $region4: #{tpu_custom_call.1} parent=1 // pred_region
      %s11 = ssub.s32 256, 256
      %12 = vsyncadd [#allocation3], %s11
      %s14 = sshll.u32 [#allocation2], 4
      %s15 = int_to_ptr.vmem [resolvable:$true] %s14
      %17 = dma.hbm_to_vmem [thread:$0]  %s0, 256, %s15, [#allocation3]
    $region5: #{tpu_custom_call.1} parent=1 // pred_fallthru
      _
    // Predicated region
    $region6: #{tpu_custom_call.1} parent=1 // pred_check
      _
    $region7: #{tpu_custom_call.1} parent=1 // pred_check_branch
      %19 = sbr.rel (0) target = $region9
    $region8: #{tpu_custom_call.1} parent=1 // pred_region
      %20 = dma.done [#allocation3], 256
    $region9: #{tpu_custom_call.1} parent=1 // pred_fallthru
      _
    %v21 = vld [vmem:[#allocation2] sm:$0xff]
    %v22 = vld [vmem:[#allocation2 + $0x8] sm:$0xff]
    %23 = vrot.lane.b32.xlu0 %v21, 1
    %v24 = vpop.permute.xlu0 %23
    %25 = vrot.lane.b32.xlu0 %v22, 1
    %v26 = vpop.permute.xlu0 %25
    %v27 = vlaneseq
    %v28 = vand.u32 %v27, 127
    %vm29 = vcmp.lt.s32.totalorder %v28, 1
    %v30 = vsel %vm29, %v24, %v26
    %v31 = vsel %vm29, %v26, %v24
    %32 = vst [vmem:[#allocation5] sm:$0xff] %v31
    %33 = vst [vmem:[#allocation5 + $0x8] sm:$0xff] %v30
    // Predicated region
    $region10: #{tpu_custom_call.1} parent=1 // pred_check
      _
    $region11: #{tpu_custom_call.1} parent=1 // pred_check_branch
      %35 = sbr.rel (0) target = $region13
    $region12: #{tpu_custom_call.1} parent=1 // pred_region
      %s37 = ssub.s32 256, 256
      %38 = vsyncadd [#allocation4], %s37
      %s40 = sshll.u32 [#allocation5], 4
      %s41 = int_to_ptr.vmem [resolvable:$true] %s40
      %43 = dma.vmem_to_hbm [thread:$0]  %s41, 256, %s1, [#allocation4]
    $region13: #{tpu_custom_call.1} parent=1 // pred_fallthru
      _
    // Predicated region
    $region14: #{tpu_custom_call.1} parent=1 // pred_check
      _
    $region15: #{tpu_custom_call.1} parent=1 // pred_check_branch
      %45 = sbr.rel (0) target = $region17
    $region16: #{tpu_custom_call.1} parent=1 // pred_region
      %46 = dma.done [#allocation4], 256
    $region17: #{tpu_custom_call.1} parent=1 // pred_fallthru
      _
    %47 = vsyncpa [#allocation3], 1
    %48 = vsyncpa [#allocation4], 1

// kernel: tpu_custom_call.1
$region0: #{tpu_custom_call.1}
  #allocation0 [shape = 'u32[]', space=smem, size = 0x4, offset = 0x4, fixed_abs, tag = 'smem constant byte address 0x4 - core index']
  #allocation1 [shape = 'u32[144,128]{1,0:T(1,128)}', space=vmem, size = 0x12000, scoped, tag = 'internal scratch']
  %s0 = inlined_call_operand.vmem [shape: f32[18], index: 0, kind: input, shape index: {}]
  %s1 = inlined_call_operand.hbm [shape: f32[2,8,640], index: 1, kind: input, shape index: {}]
  %s2 = inlined_call_operand.vmem [shape: f32[6,8,72], index: 2, kind: input, shape index: {}]
  %s3 = inlined_call_operand.vmem [shape: f32[6,8,1], index: 3, kind: input, shape index: {}]
  %s4 = inlined_call_operand.hbm [shape: f32[2,8,640], index: 4, kind: output, shape index: {}]
  %s5 = sld [smem:[#allocation0]]
  $region34: #{tpu_custom_call.1} parent=0
    _
  %s7 = ssub.s32 1, %s5
  %s8 = scalar_select 0, %s7, %s5
  $region1: #{tpu_custom_call.1} parent=0
    #allocation2 [shape = 'u8[512]{0}', space=smem, size = 0x200, scoped, tag = 'input window, operand 0, single buffered']
    #allocation3 [shape = 's32[1]{0}', space=sflag, size = 0x4, scoped, tag = 'scoped memory for tpu_custom_call.1']
    #allocation4 [shape = 's32[1]{0}', space=sflag, size = 0x4, scoped, tag = 'scoped memory for tpu_custom_call.1']
    #allocation5 [shape = 's32[1]{0}', space=sflag, size = 0x4, scoped, tag = 'scoped memory for tpu_custom_call.1']
    #allocation6 [shape = 'u8[40960]{0}', space=vmem, size = 0xa000, scoped, tag = 'input window, operand 1, single buffered']
    #allocation7 [shape = 'u8[40960]{0}', space=vmem, size = 0xa000, scoped, tag = 'output window, operand 0, single buffered']
    %9 = vsyncpa [#allocation5], 0
    %10 = vsyncpa [#allocation3], 0
    %11 = vsyncpa [#allocation4], 0
    // Predicated region
    $region2: #{tpu_custom_call.1} parent=1 // pred_check
      _
    $region3: #{tpu_custom_call.1} parent=1 // pred_check_branch
      %13 = sbr.rel (0) target = $region5
    $region4: #{tpu_custom_call.1} parent=1 // pred_region
      %s15 = ssub.s32 16, 16
      %16 = vsyncadd [#allocation5], %s15
      %s18 = sshll.u32 %s0, 4
      %s19 = int_to_ptr.vmem [resolvable:$true] %s18
      %21 = dma.vmem_to_smem %s19, 16, [#allocation2], [#allocation5]
    $region5: #{tpu_custom_call.1} parent=1 // pred_fallthru
      _
    // Predicated region
    $region6: #{tpu_custom_call.1} parent=1 // pred_check
      _
    $region7: #{tpu_custom_call.1} parent=1 // pred_check_branch
      %23 = sbr.rel (0) target = $region9
    $region8: #{tpu_custom_call.1} parent=1 // pred_region
      %s25 = ssub.s32 1280, 1280
      %26 = vsyncadd [#allocation3], %s25
      %s27 = sshll.u32 [#allocation6], 4
      %s28 = int_to_ptr.vmem [resolvable:$true] %s27
      %33 = dma.hbm_to_vmem [thread:$0]  %s1, 1280, %s28, [#allocation3], 640, 640, 40
    $region9: #{tpu_custom_call.1} parent=1 // pred_fallthru
      _
    // Predicated region
    $region10: #{tpu_custom_call.1} parent=1 // pred_check
      _
    $region11: #{tpu_custom_call.1} parent=1 // pred_check_branch
      %35 = sbr.rel (0) target = $region13
    $region12: #{tpu_custom_call.1} parent=1 // pred_region
      _
    $region13: #{tpu_custom_call.1} parent=1 // pred_fallthru
      _
    // Predicated region
    $region14: #{tpu_custom_call.1} parent=1 // pred_check
      _
    $region15: #{tpu_custom_call.1} parent=1 // pred_check_branch
      %37 = sbr.rel (0) target = $region17
    $region16: #{tpu_custom_call.1} parent=1 // pred_region
      _
    $region17: #{tpu_custom_call.1} parent=1 // pred_fallthru
      _
    // Predicated region
    $region18: #{tpu_custom_call.1} parent=1 // pred_check
      _
    $region19: #{tpu_custom_call.1} parent=1 // pred_check_branch
      %39 = sbr.rel (0) target = $region21
    $region20: #{tpu_custom_call.1} parent=1 // pred_region
      %40 = dma.done [#allocation5], 16
    $region21: #{tpu_custom_call.1} parent=1 // pred_fallthru
      _
    // Predicated region
    $region22: #{tpu_custom_call.1} parent=1 // pred_check
      _
    $region23: #{tpu_custom_call.1} parent=1 // pred_check_branch
      %42 = sbr.rel (0) target = $region25
    $region24: #{tpu_custom_call.1} parent=1 // pred_region
      %43 = dma.done [#allocation3], 1280
    $region25: #{tpu_custom_call.1} parent=1 // pred_fallthru
      _
    %44 = sfence
    %v45 = vlaneseq
    %v46 = vand.u32 %v45, 127
    %v47 = vand.u32 %v46, 3
    %v48 = vshra.s32 %v46, 2
    %vm49 = vcmp.ge.s32.totalorder %v47, 1
    %vm50 = vcmp.le.s32.totalorder %v47, 2
    %vm51 = vcmp.ge.s32.totalorder %v48, 1
    %vm52 = vcmp.le.s32.totalorder %v48, 2
    %vm53 = vmand %vm49, %vm51
    %v54 = vsel %vm53, 1, 0
    %v55 = vcvt.s32.f32 %v54
    %v56 = vsel %vm51, 1, 0
    %v57 = vcvt.s32.f32 %v56
    %vm58 = vmand %vm50, %vm51
    %v59 = vsel %vm58, 1, 0
    %v60 = vcvt.s32.f32 %v59
    %v61 = vsel %vm49, 1, 0
    %v62 = vcvt.s32.f32 %v61
    %v63 = vsel %vm50, 1, 0
    %v64 = vcvt.s32.f32 %v63
    %vm65 = vmand %vm49, %vm52
    %v66 = vsel %vm65, 1, 0
    %v67 = vcvt.s32.f32 %v66
    %v68 = vsel %vm52, 1, 0
    %v69 = vcvt.s32.f32 %v68
    %vm70 = vmand %vm50, %vm52
    %v71 = vsel %vm70, 1, 0
    %v72 = vcvt.s32.f32 %v71
    %v73 = vand.u32 %v46, 7
    %v74 = vshra.s32 %v46, 3
    %vm75 = vcmp.ge.s32.totalorder %v73, 1
    %vm76 = vcmp.le.s32.totalorder %v73, 6
    %vm77 = vcmp.ge.s32.totalorder %v74, 1
    %vm78 = vcmp.le.s32.totalorder %v74, 6
    %vm79 = vmand %vm75, %vm77
    %v80 = vsel %vm79, 1, 0
    %v81 = vcvt.s32.f32 %v80
    %v82 = vsel %vm77, 1, 0
    %v83 = vcvt.s32.f32 %v82
    %vm84 = vmand %vm76, %vm77
    %v85 = vsel %vm84, 1, 0
    %v86 = vcvt.s32.f32 %v85
    %v87 = vsel %vm75, 1, 0
    %v88 = vcvt.s32.f32 %v87
    %v89 = vsel %vm76, 1, 0
    %v90 = vcvt.s32.f32 %v89
    %vm91 = vmand %vm75, %vm78
    %v92 = vsel %vm91, 1, 0
    %v93 = vcvt.s32.f32 %v92
    %v94 = vsel %vm78, 1, 0
    %v95 = vcvt.s32.f32 %v94
    %vm96 = vmand %vm76, %vm78
    %v97 = vsel %vm96, 1, 0
    %v98 = vcvt.s32.f32 %v97
    %v99 = vadd.s32 %v46, 128
    %v100 = vand.u32 %v46, 15
    %v101 = vand.u32 %v99, 15
    %v102 = vshra.s32 %v46, 4
    %v103 = vshra.s32 %v99, 4
    %vm104 = vcmp.ge.s32.totalorder %v100, 1
    %vm105 = vcmp.ge.s32.totalorder %v101, 1
    %vm106 = vcmp.le.s32.totalorder %v100, 14
    %vm107 = vcmp.le.s32.totalorder %v101, 14
    %vm108 = vcmp.ge.s32.totalorder %v102, 1
    %vm109 = vcmp.ge.s32.totalorder %v103, 1
    %vm110 = vcmp.le.s32.totalorder %v102, 14
    %vm111 = vcmp.le.s32.totalorder %v103, 14
    %vm112 = vmand %vm104, %vm108
    %vm113 = vmand %vm105, %vm109
    %v114 = vsel %vm112, 1, 0
    %v115 = vsel %vm113, 1, 0
    %v116 = vcvt.s32.f32 %v114
    %v117 = vcvt.s32.f32 %v115
    %v118 = vsel %vm108, 1, 0
    %v119 = vsel %vm109, 1, 0
    %v120 = vcvt.s32.f32 %v118
    %v121 = vcvt.s32.f32 %v119
    %vm122 = vmand %vm106, %vm108
    %vm123 = vmand %vm107, %vm109
    %v124 = vsel %vm122, 1, 0
    %v125 = vsel %vm123, 1, 0
    %v126 = vcvt.s32.f32 %v124
    %v127 = vcvt.s32.f32 %v125
    %v128 = vsel %vm104, 1, 0
    %v129 = vsel %vm105, 1, 0
    %v130 = vcvt.s32.f32 %v128
    %v131 = vcvt.s32.f32 %v129
    %v132 = vsel %vm106, 1, 0
    %v133 = vsel %vm107, 1, 0
    %v134 = vcvt.s32.f32 %v132
    %v135 = vcvt.s32.f32 %v133
    %vm136 = vmand %vm104, %vm110
    %vm137 = vmand %vm105, %vm111
    %v138 = vsel %vm136, 1, 0
    %v139 = vsel %vm137, 1, 0
    %v140 = vcvt.s32.f32 %v138
    %v141 = vcvt.s32.f32 %v139
    %v142 = vsel %vm110, 1, 0
    %v143 = vsel %vm111, 1, 0
    %v144 = vcvt.s32.f32 %v142
    %v145 = vcvt.s32.f32 %v143
    %vm146 = vmand %vm106, %vm110
    %vm147 = vmand %vm107, %vm111
    %v148 = vsel %vm146, 1, 0
    %v149 = vsel %vm147, 1, 0
    %v150 = vcvt.s32.f32 %v148
    %v151 = vcvt.s32.f32 %v149
    %v152 = vand.u32 %v46, 1
    %v153 = vshra.s32 %v46, 1
    %vm154 = vcmp.ge.s32.totalorder %v152, 1
    %vm155 = vcmp.le.s32.totalorder %v152, 0
    %vm156 = vcmp.ge.s32.totalorder %v153, 1
    %vm157 = vcmp.le.s32.totalorder %v153, 0
    %vm158 = vmand %vm154, %vm156
    %v159 = vsel %vm158, 1, 0
    %v160 = vcvt.s32.f32 %v159
    %v161 = vsel %vm156, 1, 0
    %v162 = vcvt.s32.f32 %v161
    %vm163 = vmand %vm155, %vm156
    %v164 = vsel %vm163, 1, 0
    %v165 = vcvt.s32.f32 %v164
    %v166 = vsel %vm154, 1, 0
    %v167 = vcvt.s32.f32 %v166
    %v168 = vsel %vm155, 1, 0
    %v169 = vcvt.s32.f32 %v168
    %vm170 = vmand %vm154, %vm157
    %v171 = vsel %vm170, 1, 0
    %v172 = vcvt.s32.f32 %v171
    %v173 = vsel %vm157, 1, 0
    %v174 = vcvt.s32.f32 %v173
    %vm175 = vmand %vm155, %vm157
    %v176 = vsel %vm175, 1, 0
    %v177 = vcvt.s32.f32 %v176
    %v178 = vlaneseq
    %v179 = vshrl.u32 %v178, 7
    %v180 = vadd.s32 %v179, 8
    %v181 = vadd.s32 %v179, 16
    %v182 = vadd.s32 %v179, 24
    %v183 = vadd.s32 %v179, 32
    %v184 = vadd.s32 %v179, 40
    %v185 = vadd.s32 %v179, 48
    %v186 = vadd.s32 %v179, 56
    %v187 = vmul.u32 %v102, 16
    %v188 = vmul.u32 %v103, 16
    %v189 = vsub.s32 %v46, %v187
    %v190 = vsub.s32 %v99, %v188
    %v191 = vshra.s32 %v102, 1
    %v192 = vshra.s32 %v103, 1
    %v193 = vmul.u32 %v191, 8
    %v194 = vmul.u32 %v192, 8
    %v195 = vshra.s32 %v189, 1
    %v196 = vshra.s32 %v190, 1
    %v197 = vadd.s32 %v193, %v195
    %v198 = vadd.s32 %v194, %v196
    %vm199 = vcmp.eq.s32.totalorder %v179, %v197
    %vm200 = vcmp.eq.s32.totalorder %v179, %v198
    %vm201 = vcmp.eq.s32.totalorder %v180, %v197
    %vm202 = vcmp.eq.s32.totalorder %v180, %v198
    %vm203 = vcmp.eq.s32.totalorder %v181, %v197
    %vm204 = vcmp.eq.s32.totalorder %v181, %v198
    %vm205 = vcmp.eq.s32.totalorder %v182, %v197
    %vm206 = vcmp.eq.s32.totalorder %v182, %v198
    %vm207 = vcmp.eq.s32.totalorder %v183, %v197
    %vm208 = vcmp.eq.s32.totalorder %v183, %v198
    %vm209 = vcmp.eq.s32.totalorder %v184, %v197
    %vm210 = vcmp.eq.s32.totalorder %v184, %v198
    %vm211 = vcmp.eq.s32.totalorder %v185, %v197
    %vm212 = vcmp.eq.s32.totalorder %v185, %v198
    %vm213 = vcmp.eq.s32.totalorder %v186, %v197
    %vm214 = vcmp.eq.s32.totalorder %v186, %v198
    %v215 = vsel %vm199, 1, 0
    %v216 = vsel %vm200, 1, 0
    %v217 = vsel %vm201, 1, 0
    %v218 = vsel %vm202, 1, 0
    %v219 = vsel %vm203, 1, 0
    %v220 = vsel %vm204, 1, 0
    %v221 = vsel %vm205, 1, 0
    %v222 = vsel %vm206, 1, 0
    %v223 = vsel %vm207, 1, 0
    %v224 = vsel %vm208, 1, 0
    %v225 = vsel %vm209, 1, 0
    %v226 = vsel %vm210, 1, 0
    %v227 = vsel %vm211, 1, 0
    %v228 = vsel %vm212, 1, 0
    %v229 = vsel %vm213, 1, 0
    %v230 = vsel %vm214, 1, 0
    %v231 = vcvt.s32.f32 %v215
    %v232 = vcvt.s32.f32 %v216
    %v233 = vcvt.s32.f32 %v217
    %v234 = vcvt.s32.f32 %v218
    %v235 = vcvt.s32.f32 %v219
    %v236 = vcvt.s32.f32 %v220
    %v237 = vcvt.s32.f32 %v221
    %v238 = vcvt.s32.f32 %v222
    %v239 = vcvt.s32.f32 %v223
    %v240 = vcvt.s32.f32 %v224
    %v241 = vcvt.s32.f32 %v225
    %v242 = vcvt.s32.f32 %v226
    %v243 = vcvt.s32.f32 %v227
    %v244 = vcvt.s32.f32 %v228
    %v245 = vcvt.s32.f32 %v229
    %v246 = vcvt.s32.f32 %v230
    %v247 = vmul.u32 %v74, 8
    %v248 = vsub.s32 %v46, %v247
    %v249 = vshra.s32 %v74, 1
    %v250 = vmul.u32 %v249, 4
    %v251 = vshra.s32 %v248, 1
    %v252 = vadd.s32 %v250, %v251
    %vm253 = vcmp.eq.s32.totalorder %v179, %v252
    %vm254 = vcmp.eq.s32.totalorder %v180, %v252
    %v255 = vsel %vm253, 1, 0
    %v256 = vsel %vm254, 1, 0
    %v257 = vcvt.s32.f32 %v255
    %v258 = vcvt.s32.f32 %v256
    %v259 = vmul.u32 %v48, 4
    %v260 = vsub.s32 %v46, %v259
    %v261 = vshra.s32 %v48, 1
    %v262 = vmul.u32 %v261, 2
    %v263 = vshra.s32 %v260, 1
    %v264 = vadd.s32 %v262, %v263
    %vm265 = vcmp.eq.s32.totalorder %v179, %v264
    %v266 = vsel %vm265, 1, 0
    %v267 = vcvt.s32.f32 %v266
    %v268 = vadd.s32 %v179, 64
    %v269 = vadd.s32 %v179, 72
    %v270 = vadd.s32 %v179, 80
    %v271 = vadd.s32 %v179, 88
    %v272 = vadd.s32 %v179, 96
    %v273 = vadd.s32 %v179, 104
    %v274 = vadd.s32 %v179, 112
    %v275 = vadd.s32 %v179, 120
    %v276 = vadd.s32 %v179, 128
    %v277 = vadd.s32 %v179, 136
    %v278 = vadd.s32 %v179, 144
    %v279 = vadd.s32 %v179, 152
    %v280 = vadd.s32 %v179, 160
    %v281 = vadd.s32 %v179, 168
    %v282 = vadd.s32 %v179, 176
    %v283 = vadd.s32 %v179, 184
    %v284 = vadd.s32 %v179, 192
    %v285 = vadd.s32 %v179, 200
    %v286 = vadd.s32 %v179, 208
    %v287 = vadd.s32 %v179, 216
    %v288 = vadd.s32 %v179, 224
    %v289 = vadd.s32 %v179, 232
    %v290 = vadd.s32 %v179, 240
    %v291 = vadd.s32 %v179, 248
    %v292 = vmul.u32 %v74, 2
    %v293 = vmul.u32 %v292, 16
    %v294 = vmul.u32 %v248, 2
    %v295 = vadd.s32 %v293, %v294
    %vm296 = vcmp.eq.s32.totalorder %v179, %v295
    %vm297 = vcmp.eq.s32.totalorder %v180, %v295
    %vm298 = vcmp.eq.s32.totalorder %v181, %v295
    %vm299 = vcmp.eq.s32.totalorder %v182, %v295
    %vm300 = vcmp.eq.s32.totalorder %v183, %v295
    %vm301 = vcmp.eq.s32.totalorder %v184, %v295
    %vm302 = vcmp.eq.s32.totalorder %v185, %v295
    %vm303 = vcmp.eq.s32.totalorder %v186, %v295
    %vm304 = vcmp.eq.s32.totalorder %v268, %v295
    %vm305 = vcmp.eq.s32.totalorder %v269, %v295
    %vm306 = vcmp.eq.s32.totalorder %v270, %v295
    %vm307 = vcmp.eq.s32.totalorder %v271, %v295
    %vm308 = vcmp.eq.s32.totalorder %v272, %v295
    %vm309 = vcmp.eq.s32.totalorder %v273, %v295
    %vm310 = vcmp.eq.s32.totalorder %v274, %v295
    %vm311 = vcmp.eq.s32.totalorder %v275, %v295
    %vm312 = vcmp.eq.s32.totalorder %v276, %v295
    %vm313 = vcmp.eq.s32.totalorder %v277, %v295
    %vm314 = vcmp.eq.s32.totalorder %v278, %v295
    %vm315 = vcmp.eq.s32.totalorder %v279, %v295
    %vm316 = vcmp.eq.s32.totalorder %v280, %v295
    %vm317 = vcmp.eq.s32.totalorder %v281, %v295
    %vm318 = vcmp.eq.s32.totalorder %v282, %v295
    %vm319 = vcmp.eq.s32.totalorder %v283, %v295
    %vm320 = vcmp.eq.s32.totalorder %v284, %v295
    %vm321 = vcmp.eq.s32.totalorder %v285, %v295
    %vm322 = vcmp.eq.s32.totalorder %v286, %v295
    %vm323 = vcmp.eq.s32.totalorder %v287, %v295
    %vm324 = vcmp.eq.s32.totalorder %v288, %v295
    %vm325 = vcmp.eq.s32.totalorder %v289, %v295
    %vm326 = vcmp.eq.s32.totalorder %v290, %v295
    %vm327 = vcmp.eq.s32.totalorder %v291, %v295
    %v328 = vsel %vm296, 1, 0
    %v329 = vsel %vm297, 1, 0
    %v330 = vsel %vm298, 1, 0
    %v331 = vsel %vm299, 1, 0
    %v332 = vsel %vm300, 1, 0
    %v333 = vsel %vm301, 1, 0
    %v334 = vsel %vm302, 1, 0
    %v335 = vsel %vm303, 1, 0
    %v336 = vsel %vm304, 1, 0
    %v337 = vsel %vm305, 1, 0
    %v338 = vsel %vm306, 1, 0
    %v339 = vsel %vm307, 1, 0
    %v340 = vsel %vm308, 1, 0
    %v341 = vsel %vm309, 1, 0
    %v342 = vsel %vm310, 1, 0
    %v343 = vsel %vm311, 1, 0
    %v344 = vsel %vm312, 1, 0
    %v345 = vsel %vm313, 1, 0
    %v346 = vsel %vm314, 1, 0
    %v347 = vsel %vm315, 1, 0
    %v348 = vsel %vm316, 1, 0
    %v349 = vsel %vm317, 1, 0
    %v350 = vsel %vm318, 1, 0
    %v351 = vsel %vm319, 1, 0
    %v352 = vsel %vm320, 1, 0
    %v353 = vsel %vm321, 1, 0
    %v354 = vsel %vm322, 1, 0
    %v355 = vsel %vm323, 1, 0
    %v356 = vsel %vm324, 1, 0
    %v357 = vsel %vm325, 1, 0
    %v358 = vsel %vm326, 1, 0
    %v359 = vsel %vm327, 1, 0
    %v360 = vcvt.s32.f32 %v328
    %v361 = vcvt.s32.f32 %v329
    %v362 = vcvt.s32.f32 %v330
    %v363 = vcvt.s32.f32 %v331
    %v364 = vcvt.s32.f32 %v332
    %v365 = vcvt.s32.f32 %v333
    %v366 = vcvt.s32.f32 %v334
    %v367 = vcvt.s32.f32 %v335
    %v368 = vcvt.s32.f32 %v336
    %v369 = vcvt.s32.f32 %v337
    %v370 = vcvt.s32.f32 %v338
    %v371 = vcvt.s32.f32 %v339
    %v372 = vcvt.s32.f32 %v340
    %v373 = vcvt.s32.f32 %v341
    %v374 = vcvt.s32.f32 %v342
    %v375 = vcvt.s32.f32 %v343
    %v376 = vcvt.s32.f32 %v344
    %v377 = vcvt.s32.f32 %v345
    %v378 = vcvt.s32.f32 %v346
    %v379 = vcvt.s32.f32 %v347
    %v380 = vcvt.s32.f32 %v348
    %v381 = vcvt.s32.f32 %v349
    %v382 = vcvt.s32.f32 %v350
    %v383 = vcvt.s32.f32 %v351
    %v384 = vcvt.s32.f32 %v352
    %v385 = vcvt.s32.f32 %v353
    %v386 = vcvt.s32.f32 %v354
    %v387 = vcvt.s32.f32 %v355
    %v388 = vcvt.s32.f32 %v356
    %v389 = vcvt.s32.f32 %v357
    %v390 = vcvt.s32.f32 %v358
    %v391 = vcvt.s32.f32 %v359
    %v392 = vmul.u32 %v48, 2
    %v393 = vmul.u32 %v392, 8
    %v394 = vmul.u32 %v260, 2
    %v395 = vadd.s32 %v393, %v394
    %vm396 = vcmp.eq.s32.totalorder %v179, %v395
    %vm397 = vcmp.eq.s32.totalorder %v180, %v395
    %vm398 = vcmp.eq.s32.totalorder %v181, %v395
    %vm399 = vcmp.eq.s32.totalorder %v182, %v395
    %vm400 = vcmp.eq.s32.totalorder %v183, %v395
    %vm401 = vcmp.eq.s32.totalorder %v184, %v395
    %vm402 = vcmp.eq.s32.totalorder %v185, %v395
    %vm403 = vcmp.eq.s32.totalorder %v186, %v395
    %v404 = vsel %vm396, 1, 0
    %v405 = vsel %vm397, 1, 0
    %v406 = vsel %vm398, 1, 0
    %v407 = vsel %vm399, 1, 0
    %v408 = vsel %vm400, 1, 0
    %v409 = vsel %vm401, 1, 0
    %v410 = vsel %vm402, 1, 0
    %v411 = vsel %vm403, 1, 0
    %v412 = vcvt.s32.f32 %v404
    %v413 = vcvt.s32.f32 %v405
    %v414 = vcvt.s32.f32 %v406
    %v415 = vcvt.s32.f32 %v407
    %v416 = vcvt.s32.f32 %v408
    %v417 = vcvt.s32.f32 %v409
    %v418 = vcvt.s32.f32 %v410
    %v419 = vcvt.s32.f32 %v411
    %v420 = vmul.u32 %v153, 2
    %v421 = vsub.s32 %v46, %v420
    %v422 = vmul.u32 %v420, 4
    %v423 = vmul.u32 %v421, 2
    %v424 = vadd.s32 %v422, %v423
    %vm425 = vcmp.eq.s32.totalorder %v179, %v424
    %vm426 = vcmp.eq.s32.totalorder %v180, %v424
    %v427 = vsel %vm425, 1, 0
    %v428 = vsel %vm426, 1, 0
    %v429 = vcvt.s32.f32 %v427
    %v430 = vcvt.s32.f32 %v428
    %v431 = vld [vmem:[#allocation6] sm:$0xff]
    %v432 = vld [vmem:[#allocation6 + $0x8] sm:$0xff]
    %v433 = vld [vmem:[#allocation6 + $0x10] sm:$0xff]
    %v434 = vld [vmem:[#allocation6 + $0x18] sm:$0xff]
    %v435 = vld [vmem:[#allocation6 + $0x20] sm:$0xff]
    %vm436 = vcmask 31744
    %v438 = vsel %vm436, %v435, 0
    %vm440 = vcmask 1043456
    %v442 = vsel %vm440, %v267, 0
    %444 = vmatprep.subr.mxu0 0.0
    %445 = vmatpush1.msra.mxu0 0.0
    %446 = vmatprep.subr.mxu0 0.0
    %447 = vmatpush1.msra.mxu0 0.0
    %448 = vmatprep.subr.mxu0 0.0
    %449 = vmatpush1.msra.mxu0 0.0
    %450 = vmatprep.subr.mxu0 0.0
    %451 = vmatpush1.msra.mxu0 0.0
    %452 = vmatprep.subr.mxu0 0.0
    %453 = vmatpush1.msra.mxu0 0.0
    %454 = vmatprep.subr.mxu0 0.0
    %455 = vmatpush1.msra.mxu0 0.0
    %456 = vmatprep.subr.mxu0 0.0
    %457 = vmatpush1.msra.mxu0 0.0
    %458 = vmatprep.subr.mxu0 0.0
    %459 = vmatpush1.msra.mxu0 0.0
    %460 = vmatprep.subr.mxu0 0.0
    %461 = vmatpush1.msra.mxu0 0.0
    %462 = vmatprep.subr.mxu0 0.0
    %463 = vmatpush1.msra.mxu0 0.0
    %464 = vmatprep.subr.mxu0 0.0
    %465 = vmatpush1.msra.mxu0 0.0
    %466 = vmatprep.subr.mxu0 0.0
    %467 = vmatpush1.msra.mxu0 0.0
    %468 = vmatprep.subr.mxu0 0.0
    %469 = vmatpush1.msra.mxu0 0.0
    %470 = vmatprep.subr.mxu0 0.0
    %471 = vmatpush1.msra.mxu0 0.0
    %472 = vmatprep.subr.mxu0 0.0
    %473 = vmatpush1.msra.mxu0 0.0
    %474 = vmatprep.subr.mxu0 0.0
    %475 = vmatpush1.msra.mxu0 %v442
    %476 = vmatprep.subr.mxu0 0.0
    %477 = vmatpush2.msra.mxu0 0.0
    %478 = vmatprep.subr.mxu0 0.0
    %479 = vmatpush2.msra.mxu0 0.0
    %480 = vmatprep.subr.mxu0 0.0
    %481 = vmatpush2.msra.mxu0 0.0
    %482 = vmatprep.subr.mxu0 0.0
    %483 = vmatpush2.msra.mxu0 0.0
    %484 = vmatprep.subr.mxu0 0.0
    %485 = vmatpush2.msra.mxu0 0.0
    %486 = vmatprep.subr.mxu0 0.0
    %487 = vmatpush2.msra.mxu0 0.0
    %488 = vmatprep.subr.mxu0 0.0
    %489 = vmatpush2.msra.mxu0 0.0
    %490 = vmatprep.subr.mxu0 0.0
    %491 = vmatpush2.msra.mxu0 0.0
    %492 = vmatprep.subr.mxu0 0.0
    %493 = vmatpush2.msra.mxu0 0.0
    %494 = vmatprep.subr.mxu0 0.0
    %495 = vmatpush2.msra.mxu0 0.0
    %496 = vmatprep.subr.mxu0 0.0
    %497 = vmatpush2.msra.mxu0 0.0
    %498 = vmatprep.subr.mxu0 0.0
    %499 = vmatpush2.msra.mxu0 0.0
    %500 = vmatprep.subr.mxu0 0.0
    %501 = vmatpush2.msra.mxu0 0.0
    %502 = vmatprep.subr.mxu0 0.0
    %503 = vmatpush2.msra.mxu0 0.0
    %504 = vmatprep.subr.mxu0 0.0
    %505 = vmatpush2.msra.mxu0 0.0
    %506 = vmatprep.subr.mxu0 0.0
    %507 = vmatpush2.msra.mxu0 0.0
    %508 = vmatprep.mubr.f32.mxu0 0.0
    %509 = vmatmul.mubr.f32.gmra.mxu0 %v438
    %v510 = vpop.f32.mrf.mxu0
    %v511 = vadd.f32 0.0, %v510
    %v512 = vpop.f32.mrf.mxu0
    %513 = vdwg.mxu0
    %s514 = sld [smem:[#allocation2]]
    %s515 = sld [smem:[#allocation2 + $0x1]]
    %v516 = vstv %s514
    %v517 = vmul.f32 %v516, %v434
    %v518 = vstv %s515
    %v519 = vmul.f32 %v518, %v511
    %v520 = vadd.f32 %v517, %v519
    %v521 = vld [vmem:[%s2] sm:$0xff]
    %v522 = vld [vmem:[%s3] sm:$0xff]
    %524 = vrot.lane.b32.xlu0 %v520, 5
    %v525 = vpop.permute.xlu0 %524
    %vm527 = vcmask 39936
    %v528 = vsel %vm527, 0.0, %v525
    %vm529 = vcmask 171008
    %v530 = vsel %vm529, %v528, 0.0
    %v531 = vmul.f32 %v530, %v55
    %533 = vrot.lane.b32.xlu0 %v57, 1
    %v534 = vpop.permute.xlu0 %533
    %v536 = vmul.f32 %v530, %v534
    %538 = vrot.lane.b32.xlu0 %v60, 2
    %v539 = vpop.permute.xlu0 %538
    %v541 = vmul.f32 %v530, %v539
    %543 = vrot.lane.b32.xlu0 %v62, 4
    %v544 = vpop.permute.xlu0 %543
    %v546 = vmul.f32 %v530, %v544
    %548 = vrot.lane.b32.xlu0 %v64, 6
    %v549 = vpop.permute.xlu0 %548
    %v551 = vmul.f32 %v530, %v549
    %553 = vrot.lane.b32.xlu0 %v67, 8
    %v554 = vpop.permute.xlu0 %553
    %v556 = vmul.f32 %v530, %v554
    %558 = vrot.lane.b32.xlu0 %v69, 9
    %v559 = vpop.permute.xlu0 %558
    %v561 = vmul.f32 %v530, %v559
    %563 = vrot.lane.b32.xlu0 %v72, 10
    %v564 = vpop.permute.xlu0 %563
    %v566 = vmul.f32 %v530, %v564
    %568 = vrot.lane.b32.xlu0 %v536, 127
    %v569 = vpop.permute.xlu0 %568
    %572 = vrot.lane.b32.xlu0 %v541, 126
    %v573 = vpop.permute.xlu0 %572
    %576 = vrot.lane.b32.xlu0 %v546, 124
    %v577 = vpop.permute.xlu0 %576
    %580 = vrot.lane.b32.xlu0 %v551, 122
    %v581 = vpop.permute.xlu0 %580
    %584 = vrot.lane.b32.xlu0 %v556, 120
    %v585 = vpop.permute.xlu0 %584
    %588 = vrot.lane.b32.xlu0 %v561, 119
    %v589 = vpop.permute.xlu0 %588
    %592 = vrot.lane.b32.xlu0 %v566, 118
    %v593 = vpop.permute.xlu0 %592
    %596 = vset.pattern.permute.xlu0 0
    %597 = vperm.xlu0 %596, %v522
    %v598 = vpop.permute.xlu0 %597
    %vm600 = vcmask 588800
    %v602 = vsel %vm600, %v521, 0
    %604 = vmatprep.subr.mxu0 0.0
    %605 = vmatpush1.msra.mxu0 0.0
    %606 = vmatprep.subr.mxu0 0.0
    %607 = vmatpush1.msra.mxu0 0.0
    %608 = vmatprep.subr.mxu0 0.0
    %609 = vmatpush1.msra.mxu0 0.0
    %610 = vmatprep.subr.mxu0 0.0
    %611 = vmatpush1.msra.mxu0 0.0
    %612 = vmatprep.subr.mxu0 0.0
    %613 = vmatpush1.msra.mxu0 0.0
    %614 = vmatprep.subr.mxu0 0.0
    %615 = vmatpush1.msra.mxu0 0.0
    %616 = vmatprep.subr.mxu0 0.0
    %617 = vmatpush1.msra.mxu0 0.0
    %618 = vmatprep.subr.mxu0 0.0
    %619 = vmatpush1.msra.mxu0 %v593
    %620 = vmatprep.subr.mxu0 0.0
    %621 = vmatpush1.msra.mxu0 %v589
    %622 = vmatprep.subr.mxu0 0.0
    %623 = vmatpush1.msra.mxu0 %v585
    %624 = vmatprep.subr.mxu0 0.0
    %625 = vmatpush1.msra.mxu0 %v581
    %626 = vmatprep.subr.mxu0 0.0
    %627 = vmatpush1.msra.mxu0 %v520
    %628 = vmatprep.subr.mxu0 0.0
    %629 = vmatpush1.msra.mxu0 %v577
    %630 = vmatprep.subr.mxu0 0.0
    %631 = vmatpush1.msra.mxu0 %v573
    %632 = vmatprep.subr.mxu0 0.0
    %633 = vmatpush1.msra.mxu0 %v569
    %634 = vmatprep.subr.mxu0 0.0
    %635 = vmatpush1.msra.mxu0 %v531
    %636 = vmatprep.subr.mxu0 0.0
    %637 = vmatpush2.msra.mxu0 0.0
    %638 = vmatprep.subr.mxu0 0.0
    %639 = vmatpush2.msra.mxu0 0.0
    %640 = vmatprep.subr.mxu0 0.0
    %641 = vmatpush2.msra.mxu0 0.0
    %642 = vmatprep.subr.mxu0 0.0
    %643 = vmatpush2.msra.mxu0 0.0
    %644 = vmatprep.subr.mxu0 0.0
    %645 = vmatpush2.msra.mxu0 0.0
    %646 = vmatprep.subr.mxu0 0.0
    %647 = vmatpush2.msra.mxu0 0.0
    %648 = vmatprep.subr.mxu0 0.0
    %649 = vmatpush2.msra.mxu0 0.0
    %650 = vmatprep.subr.mxu0 0.0
    %651 = vmatpush2.msra.mxu0 0.0
    %652 = vmatprep.subr.mxu0 0.0
    %653 = vmatpush2.msra.mxu0 0.0
    %654 = vmatprep.subr.mxu0 0.0
    %655 = vmatpush2.msra.mxu0 0.0
    %656 = vmatprep.subr.mxu0 0.0
    %657 = vmatpush2.msra.mxu0 0.0
    %658 = vmatprep.subr.mxu0 0.0
    %659 = vmatpush2.msra.mxu0 0.0
    %660 = vmatprep.subr.mxu0 0.0
    %661 = vmatpush2.msra.mxu0 0.0
    %662 = vmatprep.subr.mxu0 0.0
    %663 = vmatpush2.msra.mxu0 0.0
    %664 = vmatprep.subr.mxu0 0.0
    %665 = vmatpush2.msra.mxu0 0.0
    %666 = vmatprep.subr.mxu0 0.0
    %667 = vmatpush2.msra.mxu0 0.0
    %668 = vmatprep.mubr.f32.mxu0 0.0
    %669 = vmatmul.mubr.f32.gmra.mxu0 %v602
    %v670 = vpop.f32.mrf.mxu0
    %v671 = vadd.f32 %v598, %v670
    %v672 = vpop.f32.mrf.mxu0
    %673 = vdwg.mxu0
    %vm674 = vcmask 130048
    %v676 = vsel %vm674, %v671, 0
    %678 = vmatprep.subr.mxu0 0.0
    %679 = vmatpush1.msra.mxu0 0.0
    %680 = vmatprep.subr.mxu0 0.0
    %681 = vmatpush1.msra.mxu0 0.0
    %682 = vmatprep.subr.mxu0 0.0
    %683 = vmatpush1.msra.mxu0 0.0
    %684 = vmatprep.subr.mxu0 0.0
    %685 = vmatpush1.msra.mxu0 0.0
    %686 = vmatprep.subr.mxu0 0.0
    %687 = vmatpush1.msra.mxu0 0.0
    %688 = vmatprep.subr.mxu0 0.0
    %689 = vmatpush1.msra.mxu0 0.0
    %690 = vmatprep.subr.mxu0 0.0
    %691 = vmatpush1.msra.mxu0 0.0
    %692 = vmatprep.subr.mxu0 0.0
    %693 = vmatpush1.msra.mxu0 0.0
    %694 = vmatprep.subr.mxu0 0.0
    %695 = vmatpush1.msra.mxu0 0.0
    %696 = vmatprep.subr.mxu0 0.0
    %697 = vmatpush1.msra.mxu0 0.0
    %698 = vmatprep.subr.mxu0 0.0
    %699 = vmatpush1.msra.mxu0 0.0
    %700 = vmatprep.subr.mxu0 0.0
    %701 = vmatpush1.msra.mxu0 0.0
    %702 = vmatprep.subr.mxu0 0.0
    %703 = vmatpush1.msra.mxu0 0.0
    %704 = vmatprep.subr.mxu0 0.0
    %705 = vmatpush1.msra.mxu0 0.0
    %706 = vmatprep.subr.mxu0 0.0
    %707 = vmatpush1.msra.mxu0 %v258
    %708 = vmatprep.subr.mxu0 0.0
    %709 = vmatpush1.msra.mxu0 %v257
    %710 = vmatprep.subr.mxu0 0.0
    %711 = vmatpush2.msra.mxu0 0.0
    %712 = vmatprep.subr.mxu0 0.0
    %713 = vmatpush2.msra.mxu0 0.0
    %714 = vmatprep.subr.mxu0 0.0
    %715 = vmatpush2.msra.mxu0 0.0
    %716 = vmatprep.subr.mxu0 0.0
    %717 = vmatpush2.msra.mxu0 0.0
    %718 = vmatprep.subr.mxu0 0.0
    %719 = vmatpush2.msra.mxu0 0.0
    %720 = vmatprep.subr.mxu0 0.0
    %721 = vmatpush2.msra.mxu0 0.0
    %722 = vmatprep.subr.mxu0 0.0
    %723 = vmatpush2.msra.mxu0 0.0
    %724 = vmatprep.subr.mxu0 0.0
    %725 = vmatpush2.msra.mxu0 0.0
    %726 = vmatprep.subr.mxu0 0.0
    %727 = vmatpush2.msra.mxu0 0.0
    %728 = vmatprep.subr.mxu0 0.0
    %729 = vmatpush2.msra.mxu0 0.0
    %730 = vmatprep.subr.mxu0 0.0
    %731 = vmatpush2.msra.mxu0 0.0
    %732 = vmatprep.subr.mxu0 0.0
    %733 = vmatpush2.msra.mxu0 0.0
    %734 = vmatprep.subr.mxu0 0.0
    %735 = vmatpush2.msra.mxu0 0.0
    %736 = vmatprep.subr.mxu0 0.0
    %737 = vmatpush2.msra.mxu0 0.0
    %738 = vmatprep.subr.mxu0 0.0
    %739 = vmatpush2.msra.mxu0 0.0
    %740 = vmatprep.subr.mxu0 0.0
    %741 = vmatpush2.msra.mxu0 0.0
    %742 = vmatprep.mubr.f32.mxu0 0.0
    %743 = vmatmul.mubr.f32.gmra.mxu0 %v676
    %v744 = vpop.f32.mrf.mxu0
    %v745 = vadd.f32 0.0, %v744
    %v746 = vpop.f32.mrf.mxu0
    %747 = vdwg.mxu0
    %s748 = sld [smem:[#allocation2 + $0x3]]
    %s749 = sld [smem:[#allocation2 + $0x4]]
    %v750 = vstv %s748
    %v751 = vmul.f32 %v750, %v433
    %v752 = vstv %s749
    %v753 = vmul.f32 %v752, %v745
    %v754 = vadd.f32 %v751, %v753
    %s755 = scalar_lea.vmem %s2, 8
    %v756 = vld [vmem:[%s755] sm:$0xff]
    %s757 = scalar_lea.vmem %s3, 8
    %v758 = vld [vmem:[%s757] sm:$0xff]
    %760 = vrot.lane.b32.xlu0 %v754, 9
    %v761 = vpop.permute.xlu0 %760
    %vm763 = vcmask 72704
    %v764 = vsel %vm763, 0.0, %v761
    %vm765 = vcmask 596992
    %v766 = vsel %vm765, %v764, 0.0
    %v767 = vmul.f32 %v766, %v81
    %769 = vrot.lane.b32.xlu0 %v83, 1
    %v770 = vpop.permute.xlu0 %769
    %v772 = vmul.f32 %v766, %v770
    %774 = vrot.lane.b32.xlu0 %v86, 2
    %v775 = vpop.permute.xlu0 %774
    %v777 = vmul.f32 %v766, %v775
    %779 = vrot.lane.b32.xlu0 %v88, 8
    %v780 = vpop.permute.xlu0 %779
    %v782 = vmul.f32 %v766, %v780
    %784 = vrot.lane.b32.xlu0 %v90, 10
    %v785 = vpop.permute.xlu0 %784
    %v787 = vmul.f32 %v766, %v785
    %789 = vrot.lane.b32.xlu0 %v93, 16
    %v790 = vpop.permute.xlu0 %789
    %v792 = vmul.f32 %v766, %v790
    %794 = vrot.lane.b32.xlu0 %v95, 17
    %v795 = vpop.permute.xlu0 %794
    %v797 = vmul.f32 %v766, %v795
    %799 = vrot.lane.b32.xlu0 %v98, 18
    %v800 = vpop.permute.xlu0 %799
    %v802 = vmul.f32 %v766, %v800
    %804 = vrot.lane.b32.xlu0 %v772, 127
    %v805 = vpop.permute.xlu0 %804
    %808 = vrot.lane.b32.xlu0 %v777, 126
    %v809 = vpop.permute.xlu0 %808
    %812 = vrot.lane.b32.xlu0 %v782, 120
    %v813 = vpop.permute.xlu0 %812
    %816 = vrot.lane.b32.xlu0 %v787, 118
    %v817 = vpop.permute.xlu0 %816
    %820 = vrot.lane.b32.xlu0 %v792, 112
    %v821 = vpop.permute.xlu0 %820
    %824 = vrot.lane.b32.xlu0 %v797, 111
    %v825 = vpop.permute.xlu0 %824
    %828 = vrot.lane.b32.xlu0 %v802, 110
    %v829 = vpop.permute.xlu0 %828
    %832 = vset.pattern.permute.xlu0 0
    %833 = vperm.xlu0 %832, %v758
    %v834 = vpop.permute.xlu0 %833
    %v837 = vsel %vm600, %v756, 0
    %839 = vmatprep.subr.mxu0 0.0
    %840 = vmatpush1.msra.mxu0 0.0
    %841 = vmatprep.subr.mxu0 0.0
    %842 = vmatpush1.msra.mxu0 0.0
    %843 = vmatprep.subr.mxu0 0.0
    %844 = vmatpush1.msra.mxu0 0.0
    %845 = vmatprep.subr.mxu0 0.0
    %846 = vmatpush1.msra.mxu0 0.0
    %847 = vmatprep.subr.mxu0 0.0
    %848 = vmatpush1.msra.mxu0 0.0
    %849 = vmatprep.subr.mxu0 0.0
    %850 = vmatpush1.msra.mxu0 0.0
    %851 = vmatprep.subr.mxu0 0.0
    %852 = vmatpush1.msra.mxu0 0.0
    %853 = vmatprep.subr.mxu0 0.0
    %854 = vmatpush1.msra.mxu0 %v829
    %855 = vmatprep.subr.mxu0 0.0
    %856 = vmatpush1.msra.mxu0 %v825
    %857 = vmatprep.subr.mxu0 0.0
    %858 = vmatpush1.msra.mxu0 %v821
    %859 = vmatprep.subr.mxu0 0.0
    %860 = vmatpush1.msra.mxu0 %v817
    %861 = vmatprep.subr.mxu0 0.0
    %862 = vmatpush1.msra.mxu0 %v754
    %863 = vmatprep.subr.mxu0 0.0
    %864 = vmatpush1.msra.mxu0 %v813
    %865 = vmatprep.subr.mxu0 0.0
    %866 = vmatpush1.msra.mxu0 %v809
    %867 = vmatprep.subr.mxu0 0.0
    %868 = vmatpush1.msra.mxu0 %v805
    %869 = vmatprep.subr.mxu0 0.0
    %870 = vmatpush1.msra.mxu0 %v767
    %871 = vmatprep.subr.mxu0 0.0
    %872 = vmatpush2.msra.mxu0 0.0
    %873 = vmatprep.subr.mxu0 0.0
    %874 = vmatpush2.msra.mxu0 0.0
    %875 = vmatprep.subr.mxu0 0.0
    %876 = vmatpush2.msra.mxu0 0.0
    %877 = vmatprep.subr.mxu0 0.0
    %878 = vmatpush2.msra.mxu0 0.0
    %879 = vmatprep.subr.mxu0 0.0
    %880 = vmatpush2.msra.mxu0 0.0
    %881 = vmatprep.subr.mxu0 0.0
    %882 = vmatpush2.msra.mxu0 0.0
    %883 = vmatprep.subr.mxu0 0.0
    %884 = vmatpush2.msra.mxu0 0.0
    %885 = vmatprep.subr.mxu0 0.0
    %886 = vmatpush2.msra.mxu0 0.0
    %887 = vmatprep.subr.mxu0 0.0
    %888 = vmatpush2.msra.mxu0 0.0
    %889 = vmatprep.subr.mxu0 0.0
    %890 = vmatpush2.msra.mxu0 0.0
    %891 = vmatprep.subr.mxu0 0.0
    %892 = vmatpush2.msra.mxu0 0.0
    %893 = vmatprep.subr.mxu0 0.0
    %894 = vmatpush2.msra.mxu0 0.0
    %895 = vmatprep.subr.mxu0 0.0
    %896 = vmatpush2.msra.mxu0 0.0
    %897 = vmatprep.subr.mxu0 0.0
    %898 = vmatpush2.msra.mxu0 0.0
    %899 = vmatprep.subr.mxu0 0.0
    %900 = vmatpush2.msra.mxu0 0.0
    %901 = vmatprep.subr.mxu0 0.0
    %902 = vmatpush2.msra.mxu0 0.0
    %903 = vmatprep.mubr.f32.mxu0 0.0
    %904 = vmatmul.mubr.f32.gmra.mxu0 %v837
    %v905 = vpop.f32.mrf.mxu0
    %v906 = vadd.f32 %v834, %v905
    %v907 = vpop.f32.mrf.mxu0
    %908 = vdwg.mxu0
    %vm909 = vcmask 523264
    %v911 = vsel %vm909, %v906, 0
    %913 = vmatprep.subr.mxu0 0.0
    %914 = vmatpush1.msra.mxu0 0.0
    %915 = vmatprep.subr.mxu0 0.0
    %916 = vmatpush1.msra.mxu0 0.0
    %917 = vmatprep.subr.mxu0 0.0
    %918 = vmatpush1.msra.mxu0 0.0
    %919 = vmatprep.subr.mxu0 0.0
    %920 = vmatpush1.msra.mxu0 0.0
    %921 = vmatprep.subr.mxu0 0.0
    %922 = vmatpush1.msra.mxu0 0.0
    %923 = vmatprep.subr.mxu0 0.0
    %924 = vmatpush1.msra.mxu0 0.0
    %925 = vmatprep.subr.mxu0 0.0
    %926 = vmatpush1.msra.mxu0 0.0
    %927 = vmatprep.subr.mxu0 0.0
    %928 = vmatpush1.msra.mxu0 0.0
    %929 = vmatprep.subr.mxu0 %v246
    %930 = vmatpush1.msra.mxu0 %v245
    %931 = vmatprep.subr.mxu0 %v244
    %932 = vmatpush1.msra.mxu0 %v243
    %933 = vmatprep.subr.mxu0 %v242
    %934 = vmatpush1.msra.mxu0 %v241
    %935 = vmatprep.subr.mxu0 %v240
    %936 = vmatpush1.msra.mxu0 %v239
    %937 = vmatprep.subr.mxu0 %v238
    %938 = vmatpush1.msra.mxu0 %v237
    %939 = vmatprep.subr.mxu0 %v236
    %940 = vmatpush1.msra.mxu0 %v235
    %941 = vmatprep.subr.mxu0 %v234
    %942 = vmatpush1.msra.mxu0 %v233
    %943 = vmatprep.subr.mxu0 %v232
    %944 = vmatpush1.msra.mxu0 %v231
    %945 = vmatprep.subr.mxu0 0.0
    %946 = vmatpush2.msra.mxu0 0.0
    %947 = vmatprep.subr.mxu0 0.0
    %948 = vmatpush2.msra.mxu0 0.0
    %949 = vmatprep.subr.mxu0 0.0
    %950 = vmatpush2.msra.mxu0 0.0
    %951 = vmatprep.subr.mxu0 0.0
    %952 = vmatpush2.msra.mxu0 0.0
    %953 = vmatprep.subr.mxu0 0.0
    %954 = vmatpush2.msra.mxu0 0.0
    %955 = vmatprep.subr.mxu0 0.0
    %956 = vmatpush2.msra.mxu0 0.0
    %957 = vmatprep.subr.mxu0 0.0
    %958 = vmatpush2.msra.mxu0 0.0
    %959 = vmatprep.subr.mxu0 0.0
    %960 = vmatpush2.msra.mxu0 0.0
    %961 = vmatprep.subr.mxu0 0.0
    %962 = vmatpush2.msra.mxu0 0.0
    %963 = vmatprep.subr.mxu0 0.0
    %964 = vmatpush2.msra.mxu0 0.0
    %965 = vmatprep.subr.mxu0 0.0
    %966 = vmatpush2.msra.mxu0 0.0
    %967 = vmatprep.subr.mxu0 0.0
    %968 = vmatpush2.msra.mxu0 0.0
    %969 = vmatprep.subr.mxu0 0.0
    %970 = vmatpush2.msra.mxu0 0.0
    %971 = vmatprep.subr.mxu0 0.0
    %972 = vmatpush2.msra.mxu0 0.0
    %973 = vmatprep.subr.mxu0 0.0
    %974 = vmatpush2.msra.mxu0 0.0
    %975 = vmatprep.subr.mxu0 0.0
    %976 = vmatpush2.msra.mxu0 0.0
    %977 = vmatprep.mubr.f32.mxu0 0.0
    %978 = vmatmul.mubr.f32.gmra.mxu0 %v911
    %v979 = vpop.f32.mrf.mxu0
    %v980 = vadd.f32 0.0, %v979
    %v981 = vpop.f32.mrf.mxu0
    %v982 = vadd.f32 0.0, %v981
    %983 = vdwg.mxu0
    %s984 = sld [smem:[#allocation2 + $0x6]]
    %s985 = sld [smem:[#allocation2 + $0x7]]
    %v986 = vstv %s984
    %v987 = vmul.f32 %v986, %v431
    %v988 = vmul.f32 %v986, %v432
    %v989 = vstv %s985
    %v990 = vmul.f32 %v989, %v980
    %v991 = vmul.f32 %v989, %v982
    %v992 = vadd.f32 %v987, %v990
    %v993 = vadd.f32 %v988, %v991
    %s994 = scalar_lea.vmem %s2, 16
    %v995 = vld [vmem:[%s994] sm:$0xff]
    %s996 = scalar_lea.vmem %s3, 16
    %v997 = vld [vmem:[%s996] sm:$0xff]
    %1000 = vrot.lane.b32.xlu0 %v992, 17
    %v1001 = vpop.permute.xlu0 %1000
    %1002 = vrot.lane.b32.xlu0 %v993, 17
    %v1003 = vpop.permute.xlu0 %1002
    %vm1004 = vcmask 138240
    %v1005 = vsel %vm1004, %v1001, %v1003
    %v1009 = vsel %vm1004, 0.0, %v1001
    %v1010 = vsel %vm1004, %v1003, 0.0
    %v1011 = vmul.f32 %v1009, %v116
    %v1012 = vmul.f32 %v1005, %v117
    %1015 = vrot.lane.b32.xlu0 %v120, 1
    %v1016 = vpop.permute.xlu0 %1015
    %1017 = vrot.lane.b32.xlu0 %v121, 1
    %v1018 = vpop.permute.xlu0 %1017
    %vm1019 = vcmask 7168
    %v1020 = vsel %vm1019, %v1016, %v1018
    %v1024 = vmul.f32 %v1009, %v1016
    %v1025 = vmul.f32 %v1005, %v1020
    %v1026 = vmul.f32 %v1010, %v1018
    %1029 = vrot.lane.b32.xlu0 %v126, 2
    %v1030 = vpop.permute.xlu0 %1029
    %1031 = vrot.lane.b32.xlu0 %v127, 2
    %v1032 = vpop.permute.xlu0 %1031
    %vm1033 = vcmask 15360
    %v1034 = vsel %vm1033, %v1030, %v1032
    %v1038 = vmul.f32 %v1009, %v1030
    %v1039 = vmul.f32 %v1005, %v1034
    %v1040 = vmul.f32 %v1010, %v1032
    %1043 = vrot.lane.b32.xlu0 %v130, 16
    %v1044 = vpop.permute.xlu0 %1043
    %1045 = vrot.lane.b32.xlu0 %v131, 16
    %v1046 = vpop.permute.xlu0 %1045
    %v1047 = vsel %vm674, %v1044, %v1046
    %v1051 = vmul.f32 %v1009, %v1044
    %v1052 = vmul.f32 %v1005, %v1047
    %v1053 = vmul.f32 %v1010, %v1046
    %1056 = vrot.lane.b32.xlu0 %v134, 18
    %v1057 = vpop.permute.xlu0 %1056
    %1058 = vrot.lane.b32.xlu0 %v135, 18
    %v1059 = vpop.permute.xlu0 %1058
    %vm1060 = vcmask 146432
    %v1061 = vsel %vm1060, %v1057, %v1059
    %v1065 = vmul.f32 %v1009, %v1057
    %v1066 = vmul.f32 %v1005, %v1061
    %v1067 = vmul.f32 %v1010, %v1059
    %1070 = vrot.lane.b32.xlu0 %v140, 32
    %v1071 = vpop.permute.xlu0 %1070
    %1072 = vrot.lane.b32.xlu0 %v141, 32
    %v1073 = vpop.permute.xlu0 %1072
    %vm1074 = vcmask 261120
    %v1075 = vsel %vm1074, %v1071, %v1073
    %v1079 = vmul.f32 %v1009, %v1071
    %v1080 = vmul.f32 %v1005, %v1075
    %v1081 = vmul.f32 %v1010, %v1073
    %1084 = vrot.lane.b32.xlu0 %v144, 33
    %v1085 = vpop.permute.xlu0 %1084
    %1086 = vrot.lane.b32.xlu0 %v145, 33
    %v1087 = vpop.permute.xlu0 %1086
    %vm1088 = vcmask 269312
    %v1089 = vsel %vm1088, %v1085, %v1087
    %v1093 = vmul.f32 %v1009, %v1085
    %v1094 = vmul.f32 %v1005, %v1089
    %v1095 = vmul.f32 %v1010, %v1087
    %1098 = vrot.lane.b32.xlu0 %v150, 34
    %v1099 = vpop.permute.xlu0 %1098
    %1100 = vrot.lane.b32.xlu0 %v151, 34
    %v1101 = vpop.permute.xlu0 %1100
    %vm1102 = vcmask 277504
    %v1103 = vsel %vm1102, %v1099, %v1101
    %v1107 = vmul.f32 %v1009, %v1099
    %v1108 = vmul.f32 %v1005, %v1103
    %v1109 = vmul.f32 %v1010, %v1101
    %1113 = vrot.lane.b32.xlu0 %v1024, 127
    %v1114 = vpop.permute.xlu0 %1113
    %1115 = vrot.lane.b32.xlu0 %v1025, 127
    %v1116 = vpop.permute.xlu0 %1115
    %1117 = vrot.lane.b32.xlu0 %v1026, 127
    %v1118 = vpop.permute.xlu0 %1117
    %vm1119 = vcmask 1039360
    %v1120 = vsel %vm1119, %v1114, %v1116
    %v1121 = vsel %vm1119, %v1116, %v1118
    %1127 = vrot.lane.b32.xlu0 %v1038, 126
    %v1128 = vpop.permute.xlu0 %1127
    %1129 = vrot.lane.b32.xlu0 %v1039, 126
    %v1130 = vpop.permute.xlu0 %1129
    %1131 = vrot.lane.b32.xlu0 %v1040, 126
    %v1132 = vpop.permute.xlu0 %1131
    %vm1133 = vcmask 1031168
    %v1134 = vsel %vm1133, %v1128, %v1130
    %v1135 = vsel %vm1133, %v1130, %v1132
    %1141 = vrot.lane.b32.xlu0 %v1051, 112
    %v1142 = vpop.permute.xlu0 %1141
    %1143 = vrot.lane.b32.xlu0 %v1052, 112
    %v1144 = vpop.permute.xlu0 %1143
    %1145 = vrot.lane.b32.xlu0 %v1053, 112
    %v1146 = vpop.permute.xlu0 %1145
    %vm1147 = vcmask 916480
    %v1148 = vsel %vm1147, %v1142, %v1144
    %v1149 = vsel %vm1147, %v1144, %v1146
    %1155 = vrot.lane.b32.xlu0 %v1065, 110
    %v1156 = vpop.permute.xlu0 %1155
    %1157 = vrot.lane.b32.xlu0 %v1066, 110
    %v1158 = vpop.permute.xlu0 %1157
    %1159 = vrot.lane.b32.xlu0 %v1067, 110
    %v1160 = vpop.permute.xlu0 %1159
    %vm1161 = vcmask 900096
    %v1162 = vsel %vm1161, %v1156, %v1158
    %v1163 = vsel %vm1161, %v1158, %v1160
    %1169 = vrot.lane.b32.xlu0 %v1079, 96
    %v1170 = vpop.permute.xlu0 %1169
    %1171 = vrot.lane.b32.xlu0 %v1080, 96
    %v1172 = vpop.permute.xlu0 %1171
    %1173 = vrot.lane.b32.xlu0 %v1081, 96
    %v1174 = vpop.permute.xlu0 %1173
    %vm1175 = vcmask 785408
    %v1176 = vsel %vm1175, %v1170, %v1172
    %v1177 = vsel %vm1175, %v1172, %v1174
    %1183 = vrot.lane.b32.xlu0 %v1093, 95
    %v1184 = vpop.permute.xlu0 %1183
    %1185 = vrot.lane.b32.xlu0 %v1094, 95
    %v1186 = vpop.permute.xlu0 %1185
    %1187 = vrot.lane.b32.xlu0 %v1095, 95
    %v1188 = vpop.permute.xlu0 %1187
    %vm1189 = vcmask 777216
    %v1190 = vsel %vm1189, %v1184, %v1186
    %v1191 = vsel %vm1189, %v1186, %v1188
    %1197 = vrot.lane.b32.xlu0 %v1107, 94
    %v1198 = vpop.permute.xlu0 %1197
    %1199 = vrot.lane.b32.xlu0 %v1108, 94
    %v1200 = vpop.permute.xlu0 %1199
    %1201 = vrot.lane.b32.xlu0 %v1109, 94
    %v1202 = vpop.permute.xlu0 %1201
    %vm1203 = vcmask 769024
    %v1204 = vsel %vm1203, %v1198, %v1200
    %v1205 = vsel %vm1203, %v1200, %v1202
    %1209 = vset.pattern.permute.xlu0 0
    %1210 = vperm.xlu0 %1209, %v997
    %v1211 = vpop.permute.xlu0 %1210
    %v1214 = vsel %vm600, %v995, 0
    %1216 = vmatprep.subr.mxu0 0.0
    %1217 = vmatpush1.msra.mxu0 0.0
    %1218 = vmatprep.subr.mxu0 0.0
    %1219 = vmatpush1.msra.mxu0 0.0
    %1220 = vmatprep.subr.mxu0 0.0
    %1221 = vmatpush1.msra.mxu0 0.0
    %1222 = vmatprep.subr.mxu0 0.0
    %1223 = vmatpush1.msra.mxu0 0.0
    %1224 = vmatprep.subr.mxu0 0.0
    %1225 = vmatpush1.msra.mxu0 0.0
    %1226 = vmatprep.subr.mxu0 0.0
    %1227 = vmatpush1.msra.mxu0 0.0
    %1228 = vmatprep.subr.mxu0 0.0
    %1229 = vmatpush1.msra.mxu0 0.0
    %1230 = vmatprep.subr.mxu0 %v1205
    %1231 = vmatpush1.msra.mxu0 %v1204
    %1232 = vmatprep.subr.mxu0 %v1191
    %1233 = vmatpush1.msra.mxu0 %v1190
    %1234 = vmatprep.subr.mxu0 %v1177
    %1235 = vmatpush1.msra.mxu0 %v1176
    %1236 = vmatprep.subr.mxu0 %v1163
    %1237 = vmatpush1.msra.mxu0 %v1162
    %1238 = vmatprep.subr.mxu0 %v993
    %1239 = vmatpush1.msra.mxu0 %v992
    %1240 = vmatprep.subr.mxu0 %v1149
    %1241 = vmatpush1.msra.mxu0 %v1148
    %1242 = vmatprep.subr.mxu0 %v1135
    %1243 = vmatpush1.msra.mxu0 %v1134
    %1244 = vmatprep.subr.mxu0 %v1121
    %1245 = vmatpush1.msra.mxu0 %v1120
    %1246 = vmatprep.subr.mxu0 %v1012
    %1247 = vmatpush1.msra.mxu0 %v1011
    %1248 = vmatprep.subr.mxu0 0.0
    %1249 = vmatpush2.msra.mxu0 0.0
    %1250 = vmatprep.subr.mxu0 0.0
    %1251 = vmatpush2.msra.mxu0 0.0
    %1252 = vmatprep.subr.mxu0 0.0
    %1253 = vmatpush2.msra.mxu0 0.0
    %1254 = vmatprep.subr.mxu0 0.0
    %1255 = vmatpush2.msra.mxu0 0.0
    %1256 = vmatprep.subr.mxu0 0.0
    %1257 = vmatpush2.msra.mxu0 0.0
    %1258 = vmatprep.subr.mxu0 0.0
    %1259 = vmatpush2.msra.mxu0 0.0
    %1260 = vmatprep.subr.mxu0 0.0
    %1261 = vmatpush2.msra.mxu0 0.0
    %1262 = vmatprep.subr.mxu0 0.0
    %1263 = vmatpush2.msra.mxu0 0.0
    %1264 = vmatprep.subr.mxu0 0.0
    %1265 = vmatpush2.msra.mxu0 0.0
    %1266 = vmatprep.subr.mxu0 0.0
    %1267 = vmatpush2.msra.mxu0 0.0
    %1268 = vmatprep.subr.mxu0 0.0
    %1269 = vmatpush2.msra.mxu0 0.0
    %1270 = vmatprep.subr.mxu0 0.0
    %1271 = vmatpush2.msra.mxu0 0.0
    %1272 = vmatprep.subr.mxu0 0.0
    %1273 = vmatpush2.msra.mxu0 0.0
    %1274 = vmatprep.subr.mxu0 0.0
    %1275 = vmatpush2.msra.mxu0 0.0
    %1276 = vmatprep.subr.mxu0 0.0
    %1277 = vmatpush2.msra.mxu0 0.0
    %1278 = vmatprep.subr.mxu0 0.0
    %1279 = vmatpush2.msra.mxu0 0.0
    %1280 = vmatprep.mubr.f32.mxu0 0.0
    %1281 = vmatmul.mubr.f32.gmra.mxu0 %v1214
    %v1282 = vpop.f32.mrf.mxu0
    %v1283 = vadd.f32 %v1211, %v1282
    %v1284 = vpop.f32.mrf.mxu0
    %v1285 = vadd.f32 %v1211, %v1284
    %1286 = vdwg.mxu0
    %1289 = vrot.lane.b32.xlu0 %v1283, 17
    %v1290 = vpop.permute.xlu0 %1289
    %1291 = vrot.lane.b32.xlu0 %v1285, 17
    %v1292 = vpop.permute.xlu0 %1291
    %v1293 = vsel %vm1004, %v1290, %v1292
    %v1296 = vsel %vm1004, 0.0, %v1290
    %v1297 = vsel %vm1004, %v1292, 0.0
    %1300 = vrot.lane.b32.xlu0 %v1296, 110
    %v1301 = vpop.permute.xlu0 %1300
    %1302 = vrot.lane.b32.xlu0 %v1293, 110
    %v1303 = vpop.permute.xlu0 %1302
    %1304 = vrot.lane.b32.xlu0 %v1297, 110
    %v1305 = vpop.permute.xlu0 %1304
    %v1306 = vsel %vm1161, %v1301, %v1303
    %v1307 = vsel %vm1161, %v1303, %v1305
    %v1310 = vmax.f32 %v1283, %v1306
    %v1311 = vmax.f32 %v1285, %v1307
    %1312 = vrot.lane.b32.xlu0 %v1296, 95
    %v1313 = vpop.permute.xlu0 %1312
    %1314 = vrot.lane.b32.xlu0 %v1293, 95
    %v1315 = vpop.permute.xlu0 %1314
    %1316 = vrot.lane.b32.xlu0 %v1297, 95
    %v1317 = vpop.permute.xlu0 %1316
    %v1318 = vsel %vm1189, %v1313, %v1315
    %v1319 = vsel %vm1189, %v1315, %v1317
    %v1322 = vmax.f32 %v1310, %v1318
    %v1323 = vmax.f32 %v1311, %v1319
    %1324 = vrot.lane.b32.xlu0 %v1296, 94
    %v1325 = vpop.permute.xlu0 %1324
    %1326 = vrot.lane.b32.xlu0 %v1293, 94
    %v1327 = vpop.permute.xlu0 %1326
    %1328 = vrot.lane.b32.xlu0 %v1297, 94
    %v1329 = vpop.permute.xlu0 %1328
    %v1330 = vsel %vm1203, %v1325, %v1327
    %v1331 = vsel %vm1203, %v1327, %v1329
    %v1334 = vmax.f32 %v1322, %v1330
    %v1335 = vmax.f32 %v1323, %v1331
    %1336 = vmatprep.subr.mxu0 0.0
    %1337 = vmatpush1.msra.mxu0 %v375
    %1338 = vmatprep.subr.mxu0 0.0
    %1339 = vmatpush1.msra.mxu0 %v374
    %1340 = vmatprep.subr.mxu0 0.0
    %1341 = vmatpush1.msra.mxu0 %v373
    %1342 = vmatprep.subr.mxu0 0.0
    %1343 = vmatpush1.msra.mxu0 %v372
    %1344 = vmatprep.subr.mxu0 0.0
    %1345 = vmatpush1.msra.mxu0 %v371
    %1346 = vmatprep.subr.mxu0 0.0
    %1347 = vmatpush1.msra.mxu0 %v370
    %1348 = vmatprep.subr.mxu0 0.0
    %1349 = vmatpush1.msra.mxu0 %v369
    %1350 = vmatprep.subr.mxu0 0.0
    %1351 = vmatpush1.msra.mxu0 %v368
    %1352 = vmatprep.subr.mxu0 0.0
    %1353 = vmatpush1.msra.mxu0 %v367
    %1354 = vmatprep.subr.mxu0 0.0
    %1355 = vmatpush1.msra.mxu0 %v366
    %1356 = vmatprep.subr.mxu0 0.0
    %1357 = vmatpush1.msra.mxu0 %v365
    %1358 = vmatprep.subr.mxu0 0.0
    %1359 = vmatpush1.msra.mxu0 %v364
    %1360 = vmatprep.subr.mxu0 0.0
    %1361 = vmatpush1.msra.mxu0 %v363
    %1362 = vmatprep.subr.mxu0 0.0
    %1363 = vmatpush1.msra.mxu0 %v362
    %1364 = vmatprep.subr.mxu0 0.0
    %1365 = vmatpush1.msra.mxu0 %v361
    %1366 = vmatprep.subr.mxu0 0.0
    %1367 = vmatpush1.msra.mxu0 %v360
    %1368 = vmatprep.subr.mxu0 0.0
    %1369 = vmatpush2.msra.mxu0 %v391
    %1370 = vmatprep.subr.mxu0 0.0
    %1371 = vmatpush2.msra.mxu0 %v390
    %1372 = vmatprep.subr.mxu0 0.0
    %1373 = vmatpush2.msra.mxu0 %v389
    %1374 = vmatprep.subr.mxu0 0.0
    %1375 = vmatpush2.msra.mxu0 %v388
    %1376 = vmatprep.subr.mxu0 0.0
    %1377 = vmatpush2.msra.mxu0 %v387
    %1378 = vmatprep.subr.mxu0 0.0
    %1379 = vmatpush2.msra.mxu0 %v386
    %1380 = vmatprep.subr.mxu0 0.0
    %1381 = vmatpush2.msra.mxu0 %v385
    %1382 = vmatprep.subr.mxu0 0.0
    %1383 = vmatpush2.msra.mxu0 %v384
    %1384 = vmatprep.subr.mxu0 0.0
    %1385 = vmatpush2.msra.mxu0 %v383
    %1386 = vmatprep.subr.mxu0 0.0
    %1387 = vmatpush2.msra.mxu0 %v382
    %1388 = vmatprep.subr.mxu0 0.0
    %1389 = vmatpush2.msra.mxu0 %v381
    %1390 = vmatprep.subr.mxu0 0.0
    %1391 = vmatpush2.msra.mxu0 %v380
    %1392 = vmatprep.subr.mxu0 0.0
    %1393 = vmatpush2.msra.mxu0 %v379
    %1394 = vmatprep.subr.mxu0 0.0
    %1395 = vmatpush2.msra.mxu0 %v378
    %1396 = vmatprep.subr.mxu0 0.0
    %1397 = vmatpush2.msra.mxu0 %v377
    %1398 = vmatprep.subr.mxu0 0.0
    %1399 = vmatpush2.msra.mxu0 %v376
    %1400 = vmatprep.mubr.f32.mxu0 %v1335
    %1401 = vmatmul.mubr.f32.gmra.mxu0 %v1334
    %v1402 = vpop.f32.mrf.mxu0
    %v1403 = vadd.f32 0.0, %v1402
    %v1404 = vpop.f32.mrf.mxu0
    %1405 = vdwg.mxu0
    %s1406 = sld [smem:[#allocation2 + $0x9]]
    %s1407 = sld [smem:[#allocation2 + $0xa]]
    %s1408 = sld [smem:[#allocation2 + $0xb]]
    %v1409 = vstv %s1406
    %v1410 = vmul.f32 %v1409, %v906
    %v1411 = vstv %s1407
    %v1412 = vmul.f32 %v1411, %v1403
    %v1413 = vadd.f32 %v1410, %v1412
    %v1414 = vstv %s1408
    %v1415 = vmul.f32 %v1414, %v433
    %v1416 = vadd.f32 %v1413, %v1415
    %s1417 = scalar_lea.vmem %s2, 24
    %v1418 = vld [vmem:[%s1417] sm:$0xff]
    %s1419 = scalar_lea.vmem %s3, 24
    %v1420 = vld [vmem:[%s1419] sm:$0xff]
    %1422 = vrot.lane.b32.xlu0 %v1416, 9
    %v1423 = vpop.permute.xlu0 %1422
    %v1425 = vsel %vm763, 0.0, %v1423
    %v1426 = vsel %vm765, %v1425, 0.0
    %v1427 = vmul.f32 %v1426, %v81
    %v1428 = vmul.f32 %v1426, %v770
    %v1429 = vmul.f32 %v1426, %v775
    %v1430 = vmul.f32 %v1426, %v780
    %v1431 = vmul.f32 %v1426, %v785
    %v1432 = vmul.f32 %v1426, %v790
    %v1433 = vmul.f32 %v1426, %v795
    %v1434 = vmul.f32 %v1426, %v800
    %1436 = vrot.lane.b32.xlu0 %v1428, 127
    %v1437 = vpop.permute.xlu0 %1436
    %1440 = vrot.lane.b32.xlu0 %v1429, 126
    %v1441 = vpop.permute.xlu0 %1440
    %1444 = vrot.lane.b32.xlu0 %v1430, 120
    %v1445 = vpop.permute.xlu0 %1444
    %1448 = vrot.lane.b32.xlu0 %v1431, 118
    %v1449 = vpop.permute.xlu0 %1448
    %1452 = vrot.lane.b32.xlu0 %v1432, 112
    %v1453 = vpop.permute.xlu0 %1452
    %1456 = vrot.lane.b32.xlu0 %v1433, 111
    %v1457 = vpop.permute.xlu0 %1456
    %1460 = vrot.lane.b32.xlu0 %v1434, 110
    %v1461 = vpop.permute.xlu0 %1460
    %1464 = vset.pattern.permute.xlu0 0
    %1465 = vperm.xlu0 %1464, %v1420
    %v1466 = vpop.permute.xlu0 %1465
    %v1469 = vsel %vm600, %v1418, 0
    %1471 = vmatprep.subr.mxu0 0.0
    %1472 = vmatpush1.msra.mxu0 0.0
    %1473 = vmatprep.subr.mxu0 0.0
    %1474 = vmatpush1.msra.mxu0 0.0
    %1475 = vmatprep.subr.mxu0 0.0
    %1476 = vmatpush1.msra.mxu0 0.0
    %1477 = vmatprep.subr.mxu0 0.0
    %1478 = vmatpush1.msra.mxu0 0.0
    %1479 = vmatprep.subr.mxu0 0.0
    %1480 = vmatpush1.msra.mxu0 0.0
    %1481 = vmatprep.subr.mxu0 0.0
    %1482 = vmatpush1.msra.mxu0 0.0
    %1483 = vmatprep.subr.mxu0 0.0
    %1484 = vmatpush1.msra.mxu0 0.0
    %1485 = vmatprep.subr.mxu0 0.0
    %1486 = vmatpush1.msra.mxu0 %v1461
    %1487 = vmatprep.subr.mxu0 0.0
    %1488 = vmatpush1.msra.mxu0 %v1457
    %1489 = vmatprep.subr.mxu0 0.0
    %1490 = vmatpush1.msra.mxu0 %v1453
    %1491 = vmatprep.subr.mxu0 0.0
    %1492 = vmatpush1.msra.mxu0 %v1449
    %1493 = vmatprep.subr.mxu0 0.0
    %1494 = vmatpush1.msra.mxu0 %v1416
    %1495 = vmatprep.subr.mxu0 0.0
    %1496 = vmatpush1.msra.mxu0 %v1445
    %1497 = vmatprep.subr.mxu0 0.0
    %1498 = vmatpush1.msra.mxu0 %v1441
    %1499 = vmatprep.subr.mxu0 0.0
    %1500 = vmatpush1.msra.mxu0 %v1437
    %1501 = vmatprep.subr.mxu0 0.0
    %1502 = vmatpush1.msra.mxu0 %v1427
    %1503 = vmatprep.subr.mxu0 0.0
    %1504 = vmatpush2.msra.mxu0 0.0
    %1505 = vmatprep.subr.mxu0 0.0
    %1506 = vmatpush2.msra.mxu0 0.0
    %1507 = vmatprep.subr.mxu0 0.0
    %1508 = vmatpush2.msra.mxu0 0.0
    %1509 = vmatprep.subr.mxu0 0.0
    %1510 = vmatpush2.msra.mxu0 0.0
    %1511 = vmatprep.subr.mxu0 0.0
    %1512 = vmatpush2.msra.mxu0 0.0
    %1513 = vmatprep.subr.mxu0 0.0
    %1514 = vmatpush2.msra.mxu0 0.0
    %1515 = vmatprep.subr.mxu0 0.0
    %1516 = vmatpush2.msra.mxu0 0.0
    %1517 = vmatprep.subr.mxu0 0.0
    %1518 = vmatpush2.msra.mxu0 0.0
    %1519 = vmatprep.subr.mxu0 0.0
    %1520 = vmatpush2.msra.mxu0 0.0
    %1521 = vmatprep.subr.mxu0 0.0
    %1522 = vmatpush2.msra.mxu0 0.0
    %1523 = vmatprep.subr.mxu0 0.0
    %1524 = vmatpush2.msra.mxu0 0.0
    %1525 = vmatprep.subr.mxu0 0.0
    %1526 = vmatpush2.msra.mxu0 0.0
    %1527 = vmatprep.subr.mxu0 0.0
    %1528 = vmatpush2.msra.mxu0 0.0
    %1529 = vmatprep.subr.mxu0 0.0
    %1530 = vmatpush2.msra.mxu0 0.0
    %1531 = vmatprep.subr.mxu0 0.0
    %1532 = vmatpush2.msra.mxu0 0.0
    %1533 = vmatprep.subr.mxu0 0.0
    %1534 = vmatpush2.msra.mxu0 0.0
    %1535 = vmatprep.mubr.f32.mxu0 0.0
    %1536 = vmatmul.mubr.f32.gmra.mxu0 %v1469
    %v1537 = vpop.f32.mrf.mxu0
    %v1538 = vadd.f32 %v1466, %v1537
    %v1539 = vpop.f32.mrf.mxu0
    %1540 = vdwg.mxu0
    %1542 = vrot.lane.b32.xlu0 %v1538, 9
    %v1543 = vpop.permute.xlu0 %1542
    %v1545 = vsel %vm763, 0.0, %v1543
    %v1546 = vsel %vm765, %v1545, 0.0
    %1548 = vrot.lane.b32.xlu0 %v1546, 118
    %v1549 = vpop.permute.xlu0 %1548
    %v1551 = vmax.f32 %v1538, %v1549
    %1552 = vrot.lane.b32.xlu0 %v1546, 111
    %v1553 = vpop.permute.xlu0 %1552
    %v1555 = vmax.f32 %v1551, %v1553
    %1556 = vrot.lane.b32.xlu0 %v1546, 110
    %v1557 = vpop.permute.xlu0 %1556
    %v1559 = vmax.f32 %v1555, %v1557
    %v1561 = vsel %vm909, %v1559, 0
    %1563 = vmatprep.subr.mxu0 0.0
    %1564 = vmatpush1.msra.mxu0 0.0
    %1565 = vmatprep.subr.mxu0 0.0
    %1566 = vmatpush1.msra.mxu0 0.0
    %1567 = vmatprep.subr.mxu0 0.0
    %1568 = vmatpush1.msra.mxu0 0.0
    %1569 = vmatprep.subr.mxu0 0.0
    %1570 = vmatpush1.msra.mxu0 0.0
    %1571 = vmatprep.subr.mxu0 0.0
    %1572 = vmatpush1.msra.mxu0 0.0
    %1573 = vmatprep.subr.mxu0 0.0
    %1574 = vmatpush1.msra.mxu0 0.0
    %1575 = vmatprep.subr.mxu0 0.0
    %1576 = vmatpush1.msra.mxu0 0.0
    %1577 = vmatprep.subr.mxu0 0.0
    %1578 = vmatpush1.msra.mxu0 0.0
    %1579 = vmatprep.subr.mxu0 0.0
    %1580 = vmatpush1.msra.mxu0 %v419
    %1581 = vmatprep.subr.mxu0 0.0
    %1582 = vmatpush1.msra.mxu0 %v418
    %1583 = vmatprep.subr.mxu0 0.0
    %1584 = vmatpush1.msra.mxu0 %v417
    %1585 = vmatprep.subr.mxu0 0.0
    %1586 = vmatpush1.msra.mxu0 %v416
    %1587 = vmatprep.subr.mxu0 0.0
    %1588 = vmatpush1.msra.mxu0 %v415
    %1589 = vmatprep.subr.mxu0 0.0
    %1590 = vmatpush1.msra.mxu0 %v414
    %1591 = vmatprep.subr.mxu0 0.0
    %1592 = vmatpush1.msra.mxu0 %v413
    %1593 = vmatprep.subr.mxu0 0.0
    %1594 = vmatpush1.msra.mxu0 %v412
    %1595 = vmatprep.subr.mxu0 0.0
    %1596 = vmatpush2.msra.mxu0 0.0
    %1597 = vmatprep.subr.mxu0 0.0
    %1598 = vmatpush2.msra.mxu0 0.0
    %1599 = vmatprep.subr.mxu0 0.0
    %1600 = vmatpush2.msra.mxu0 0.0
    %1601 = vmatprep.subr.mxu0 0.0
    %1602 = vmatpush2.msra.mxu0 0.0
    %1603 = vmatprep.subr.mxu0 0.0
    %1604 = vmatpush2.msra.mxu0 0.0
    %1605 = vmatprep.subr.mxu0 0.0
    %1606 = vmatpush2.msra.mxu0 0.0
    %1607 = vmatprep.subr.mxu0 0.0
    %1608 = vmatpush2.msra.mxu0 0.0
    %1609 = vmatprep.subr.mxu0 0.0
    %1610 = vmatpush2.msra.mxu0 0.0
    %1611 = vmatprep.subr.mxu0 0.0
    %1612 = vmatpush2.msra.mxu0 0.0
    %1613 = vmatprep.subr.mxu0 0.0
    %1614 = vmatpush2.msra.mxu0 0.0
    %1615 = vmatprep.subr.mxu0 0.0
    %1616 = vmatpush2.msra.mxu0 0.0
    %1617 = vmatprep.subr.mxu0 0.0
    %1618 = vmatpush2.msra.mxu0 0.0
    %1619 = vmatprep.subr.mxu0 0.0
    %1620 = vmatpush2.msra.mxu0 0.0
    %1621 = vmatprep.subr.mxu0 0.0
    %1622 = vmatpush2.msra.mxu0 0.0
    %1623 = vmatprep.subr.mxu0 0.0
    %1624 = vmatpush2.msra.mxu0 0.0
    %1625 = vmatprep.subr.mxu0 0.0
    %1626 = vmatpush2.msra.mxu0 0.0
    %1627 = vmatprep.mubr.f32.mxu0 0.0
    %1628 = vmatmul.mubr.f32.gmra.mxu0 %v1561
    %v1629 = vpop.f32.mrf.mxu0
    %v1630 = vadd.f32 0.0, %v1629
    %v1631 = vpop.f32.mrf.mxu0
    %1632 = vdwg.mxu0
    %s1633 = sld [smem:[#allocation2 + $0xc]]
    %s1634 = sld [smem:[#allocation2 + $0xd]]
    %s1635 = sld [smem:[#allocation2 + $0xe]]
    %v1636 = vstv %s1633
    %v1637 = vmul.f32 %v1636, %v671
    %v1638 = vstv %s1634
    %v1639 = vmul.f32 %v1638, %v1630
    %v1640 = vadd.f32 %v1637, %v1639
    %v1641 = vstv %s1635
    %v1642 = vmul.f32 %v1641, %v434
    %v1643 = vadd.f32 %v1640, %v1642
    %s1644 = scalar_lea.vmem %s2, 32
    %v1645 = vld [vmem:[%s1644] sm:$0xff]
    %s1646 = scalar_lea.vmem %s3, 32
    %v1647 = vld [vmem:[%s1646] sm:$0xff]
    %1649 = vrot.lane.b32.xlu0 %v1643, 5
    %v1650 = vpop.permute.xlu0 %1649
    %v1652 = vsel %vm527, 0.0, %v1650
    %v1653 = vsel %vm529, %v1652, 0.0
    %v1654 = vmul.f32 %v1653, %v55
    %v1655 = vmul.f32 %v1653, %v534
    %v1656 = vmul.f32 %v1653, %v539
    %v1657 = vmul.f32 %v1653, %v544
    %v1658 = vmul.f32 %v1653, %v549
    %v1659 = vmul.f32 %v1653, %v554
    %v1660 = vmul.f32 %v1653, %v559
    %v1661 = vmul.f32 %v1653, %v564
    %1663 = vrot.lane.b32.xlu0 %v1655, 127
    %v1664 = vpop.permute.xlu0 %1663
    %1667 = vrot.lane.b32.xlu0 %v1656, 126
    %v1668 = vpop.permute.xlu0 %1667
    %1671 = vrot.lane.b32.xlu0 %v1657, 124
    %v1672 = vpop.permute.xlu0 %1671
    %1675 = vrot.lane.b32.xlu0 %v1658, 122
    %v1676 = vpop.permute.xlu0 %1675
    %1679 = vrot.lane.b32.xlu0 %v1659, 120
    %v1680 = vpop.permute.xlu0 %1679
    %1683 = vrot.lane.b32.xlu0 %v1660, 119
    %v1684 = vpop.permute.xlu0 %1683
    %1687 = vrot.lane.b32.xlu0 %v1661, 118
    %v1688 = vpop.permute.xlu0 %1687
    %1691 = vset.pattern.permute.xlu0 0
    %1692 = vperm.xlu0 %1691, %v1647
    %v1693 = vpop.permute.xlu0 %1692
    %v1696 = vsel %vm600, %v1645, 0
    %1698 = vmatprep.subr.mxu0 0.0
    %1699 = vmatpush1.msra.mxu0 0.0
    %1700 = vmatprep.subr.mxu0 0.0
    %1701 = vmatpush1.msra.mxu0 0.0
    %1702 = vmatprep.subr.mxu0 0.0
    %1703 = vmatpush1.msra.mxu0 0.0
    %1704 = vmatprep.subr.mxu0 0.0
    %1705 = vmatpush1.msra.mxu0 0.0
    %1706 = vmatprep.subr.mxu0 0.0
    %1707 = vmatpush1.msra.mxu0 0.0
    %1708 = vmatprep.subr.mxu0 0.0
    %1709 = vmatpush1.msra.mxu0 0.0
    %1710 = vmatprep.subr.mxu0 0.0
    %1711 = vmatpush1.msra.mxu0 0.0
    %1712 = vmatprep.subr.mxu0 0.0
    %1713 = vmatpush1.msra.mxu0 %v1688
    %1714 = vmatprep.subr.mxu0 0.0
    %1715 = vmatpush1.msra.mxu0 %v1684
    %1716 = vmatprep.subr.mxu0 0.0
    %1717 = vmatpush1.msra.mxu0 %v1680
    %1718 = vmatprep.subr.mxu0 0.0
    %1719 = vmatpush1.msra.mxu0 %v1676
    %1720 = vmatprep.subr.mxu0 0.0
    %1721 = vmatpush1.msra.mxu0 %v1643
    %1722 = vmatprep.subr.mxu0 0.0
    %1723 = vmatpush1.msra.mxu0 %v1672
    %1724 = vmatprep.subr.mxu0 0.0
    %1725 = vmatpush1.msra.mxu0 %v1668
    %1726 = vmatprep.subr.mxu0 0.0
    %1727 = vmatpush1.msra.mxu0 %v1664
    %1728 = vmatprep.subr.mxu0 0.0
    %1729 = vmatpush1.msra.mxu0 %v1654
    %1730 = vmatprep.subr.mxu0 0.0
    %1731 = vmatpush2.msra.mxu0 0.0
    %1732 = vmatprep.subr.mxu0 0.0
    %1733 = vmatpush2.msra.mxu0 0.0
    %1734 = vmatprep.subr.mxu0 0.0
    %1735 = vmatpush2.msra.mxu0 0.0
    %1736 = vmatprep.subr.mxu0 0.0
    %1737 = vmatpush2.msra.mxu0 0.0
    %1738 = vmatprep.subr.mxu0 0.0
    %1739 = vmatpush2.msra.mxu0 0.0
    %1740 = vmatprep.subr.mxu0 0.0
    %1741 = vmatpush2.msra.mxu0 0.0
    %1742 = vmatprep.subr.mxu0 0.0
    %1743 = vmatpush2.msra.mxu0 0.0
    %1744 = vmatprep.subr.mxu0 0.0
    %1745 = vmatpush2.msra.mxu0 0.0
    %1746 = vmatprep.subr.mxu0 0.0
    %1747 = vmatpush2.msra.mxu0 0.0
    %1748 = vmatprep.subr.mxu0 0.0
    %1749 = vmatpush2.msra.mxu0 0.0
    %1750 = vmatprep.subr.mxu0 0.0
    %1751 = vmatpush2.msra.mxu0 0.0
    %1752 = vmatprep.subr.mxu0 0.0
    %1753 = vmatpush2.msra.mxu0 0.0
    %1754 = vmatprep.subr.mxu0 0.0
    %1755 = vmatpush2.msra.mxu0 0.0
    %1756 = vmatprep.subr.mxu0 0.0
    %1757 = vmatpush2.msra.mxu0 0.0
    %1758 = vmatprep.subr.mxu0 0.0
    %1759 = vmatpush2.msra.mxu0 0.0
    %1760 = vmatprep.subr.mxu0 0.0
    %1761 = vmatpush2.msra.mxu0 0.0
    %1762 = vmatprep.mubr.f32.mxu0 0.0
    %1763 = vmatmul.mubr.f32.gmra.mxu0 %v1696
    %v1764 = vpop.f32.mrf.mxu0
    %v1765 = vadd.f32 %v1693, %v1764
    %v1766 = vpop.f32.mrf.mxu0
    %1767 = vdwg.mxu0
    %1769 = vrot.lane.b32.xlu0 %v1765, 5
    %v1770 = vpop.permute.xlu0 %1769
    %v1772 = vsel %vm527, 0.0, %v1770
    %v1773 = vsel %vm529, %v1772, 0.0
    %1775 = vrot.lane.b32.xlu0 %v1773, 122
    %v1776 = vpop.permute.xlu0 %1775
    %v1778 = vmax.f32 %v1765, %v1776
    %1779 = vrot.lane.b32.xlu0 %v1773, 119
    %v1780 = vpop.permute.xlu0 %1779
    %v1782 = vmax.f32 %v1778, %v1780
    %1783 = vrot.lane.b32.xlu0 %v1773, 118
    %v1784 = vpop.permute.xlu0 %1783
    %v1786 = vmax.f32 %v1782, %v1784
    %v1788 = vsel %vm674, %v1786, 0
    %1790 = vmatprep.subr.mxu0 0.0
    %1791 = vmatpush1.msra.mxu0 0.0
    %1792 = vmatprep.subr.mxu0 0.0
    %1793 = vmatpush1.msra.mxu0 0.0
    %1794 = vmatprep.subr.mxu0 0.0
    %1795 = vmatpush1.msra.mxu0 0.0
    %1796 = vmatprep.subr.mxu0 0.0
    %1797 = vmatpush1.msra.mxu0 0.0
    %1798 = vmatprep.subr.mxu0 0.0
    %1799 = vmatpush1.msra.mxu0 0.0
    %1800 = vmatprep.subr.mxu0 0.0
    %1801 = vmatpush1.msra.mxu0 0.0
    %1802 = vmatprep.subr.mxu0 0.0
    %1803 = vmatpush1.msra.mxu0 0.0
    %1804 = vmatprep.subr.mxu0 0.0
    %1805 = vmatpush1.msra.mxu0 0.0
    %1806 = vmatprep.subr.mxu0 0.0
    %1807 = vmatpush1.msra.mxu0 0.0
    %1808 = vmatprep.subr.mxu0 0.0
    %1809 = vmatpush1.msra.mxu0 0.0
    %1810 = vmatprep.subr.mxu0 0.0
    %1811 = vmatpush1.msra.mxu0 0.0
    %1812 = vmatprep.subr.mxu0 0.0
    %1813 = vmatpush1.msra.mxu0 0.0
    %1814 = vmatprep.subr.mxu0 0.0
    %1815 = vmatpush1.msra.mxu0 0.0
    %1816 = vmatprep.subr.mxu0 0.0
    %1817 = vmatpush1.msra.mxu0 0.0
    %1818 = vmatprep.subr.mxu0 0.0
    %1819 = vmatpush1.msra.mxu0 %v430
    %1820 = vmatprep.subr.mxu0 0.0
    %1821 = vmatpush1.msra.mxu0 %v429
    %1822 = vmatprep.subr.mxu0 0.0
    %1823 = vmatpush2.msra.mxu0 0.0
    %1824 = vmatprep.subr.mxu0 0.0
    %1825 = vmatpush2.msra.mxu0 0.0
    %1826 = vmatprep.subr.mxu0 0.0
    %1827 = vmatpush2.msra.mxu0 0.0
    %1828 = vmatprep.subr.mxu0 0.0
    %1829 = vmatpush2.msra.mxu0 0.0
    %1830 = vmatprep.subr.mxu0 0.0
    %1831 = vmatpush2.msra.mxu0 0.0
    %1832 = vmatprep.subr.mxu0 0.0
    %1833 = vmatpush2.msra.mxu0 0.0
    %1834 = vmatprep.subr.mxu0 0.0
    %1835 = vmatpush2.msra.mxu0 0.0
    %1836 = vmatprep.subr.mxu0 0.0
    %1837 = vmatpush2.msra.mxu0 0.0
    %1838 = vmatprep.subr.mxu0 0.0
    %1839 = vmatpush2.msra.mxu0 0.0
    %1840 = vmatprep.subr.mxu0 0.0
    %1841 = vmatpush2.msra.mxu0 0.0
    %1842 = vmatprep.subr.mxu0 0.0
    %1843 = vmatpush2.msra.mxu0 0.0
    %1844 = vmatprep.subr.mxu0 0.0
    %1845 = vmatpush2.msra.mxu0 0.0
    %1846 = vmatprep.subr.mxu0 0.0
    %1847 = vmatpush2.msra.mxu0 0.0
    %1848 = vmatprep.subr.mxu0 0.0
    %1849 = vmatpush2.msra.mxu0 0.0
    %1850 = vmatprep.subr.mxu0 0.0
    %1851 = vmatpush2.msra.mxu0 0.0
    %1852 = vmatprep.subr.mxu0 0.0
    %1853 = vmatpush2.msra.mxu0 0.0
    %1854 = vmatprep.mubr.f32.mxu0 0.0
    %1855 = vmatmul.mubr.f32.gmra.mxu0 %v1788
    %v1856 = vpop.f32.mrf.mxu0
    %v1857 = vadd.f32 0.0, %v1856
    %v1858 = vpop.f32.mrf.mxu0
    %1859 = vdwg.mxu0
    %s1860 = sld [smem:[#allocation2 + $0xf]]
    %s1861 = sld [smem:[#allocation2 + $0x10]]
    %v1862 = vstv %s1860
    %v1863 = vmul.f32 %v1862, %v435
    %v1864 = vstv %s1861
    %v1865 = vmul.f32 %v1864, %v1857
    %v1866 = vadd.f32 %v1863, %v1865
    %s1867 = scalar_lea.vmem %s2, 40
    %v1868 = vld [vmem:[%s1867] sm:$0xff]
    %s1869 = scalar_lea.vmem %s3, 40
    %v1870 = vld [vmem:[%s1869] sm:$0xff]
    %1872 = vrot.lane.b32.xlu0 %v1866, 3
    %v1873 = vpop.permute.xlu0 %1872
    %vm1875 = vcmask 23552
    %v1876 = vsel %vm1875, 0.0, %v1873
    %vm1877 = vcmask 56320
    %v1878 = vsel %vm1877, %v1876, 0.0
    %v1879 = vmul.f32 %v1878, %v160
    %1881 = vrot.lane.b32.xlu0 %v162, 1
    %v1882 = vpop.permute.xlu0 %1881
    %v1884 = vmul.f32 %v1878, %v1882
    %1886 = vrot.lane.b32.xlu0 %v165, 2
    %v1887 = vpop.permute.xlu0 %1886
    %v1889 = vmul.f32 %v1878, %v1887
    %1891 = vrot.lane.b32.xlu0 %v167, 2
    %v1892 = vpop.permute.xlu0 %1891
    %v1894 = vmul.f32 %v1878, %v1892
    %1896 = vrot.lane.b32.xlu0 %v169, 4
    %v1897 = vpop.permute.xlu0 %1896
    %v1899 = vmul.f32 %v1878, %v1897
    %1901 = vrot.lane.b32.xlu0 %v172, 4
    %v1902 = vpop.permute.xlu0 %1901
    %v1904 = vmul.f32 %v1878, %v1902
    %1906 = vrot.lane.b32.xlu0 %v174, 5
    %v1907 = vpop.permute.xlu0 %1906
    %v1909 = vmul.f32 %v1878, %v1907
    %1911 = vrot.lane.b32.xlu0 %v177, 6
    %v1912 = vpop.permute.xlu0 %1911
    %v1914 = vmul.f32 %v1878, %v1912
    %1916 = vrot.lane.b32.xlu0 %v1884, 127
    %v1917 = vpop.permute.xlu0 %1916
    %1920 = vrot.lane.b32.xlu0 %v1889, 126
    %v1921 = vpop.permute.xlu0 %1920
    %1924 = vrot.lane.b32.xlu0 %v1894, 126
    %v1925 = vpop.permute.xlu0 %1924
    %1928 = vrot.lane.b32.xlu0 %v1899, 124
    %v1929 = vpop.permute.xlu0 %1928
    %1932 = vrot.lane.b32.xlu0 %v1904, 124
    %v1933 = vpop.permute.xlu0 %1932
    %1936 = vrot.lane.b32.xlu0 %v1909, 123
    %v1937 = vpop.permute.xlu0 %1936
    %1940 = vrot.lane.b32.xlu0 %v1914, 122
    %v1941 = vpop.permute.xlu0 %1940
    %1944 = vset.pattern.permute.xlu0 0
    %1945 = vperm.xlu0 %1944, %v1870
    %v1946 = vpop.permute.xlu0 %1945
    %v1949 = vsel %vm600, %v1868, 0
    %1951 = vmatprep.subr.mxu0 0.0
    %1952 = vmatpush1.msra.mxu0 0.0
    %1953 = vmatprep.subr.mxu0 0.0
    %1954 = vmatpush1.msra.mxu0 0.0
    %1955 = vmatprep.subr.mxu0 0.0
    %1956 = vmatpush1.msra.mxu0 0.0
    %1957 = vmatprep.subr.mxu0 0.0
    %1958 = vmatpush1.msra.mxu0 0.0
    %1959 = vmatprep.subr.mxu0 0.0
    %1960 = vmatpush1.msra.mxu0 0.0
    %1961 = vmatprep.subr.mxu0 0.0
    %1962 = vmatpush1.msra.mxu0 0.0
    %1963 = vmatprep.subr.mxu0 0.0
    %1964 = vmatpush1.msra.mxu0 0.0
    %1965 = vmatprep.subr.mxu0 0.0
    %1966 = vmatpush1.msra.mxu0 %v1941
    %1967 = vmatprep.subr.mxu0 0.0
    %1968 = vmatpush1.msra.mxu0 %v1937
    %1969 = vmatprep.subr.mxu0 0.0
    %1970 = vmatpush1.msra.mxu0 %v1933
    %1971 = vmatprep.subr.mxu0 0.0
    %1972 = vmatpush1.msra.mxu0 %v1929
    %1973 = vmatprep.subr.mxu0 0.0
    %1974 = vmatpush1.msra.mxu0 %v1866
    %1975 = vmatprep.subr.mxu0 0.0
    %1976 = vmatpush1.msra.mxu0 %v1925
    %1977 = vmatprep.subr.mxu0 0.0
    %1978 = vmatpush1.msra.mxu0 %v1921
    %1979 = vmatprep.subr.mxu0 0.0
    %1980 = vmatpush1.msra.mxu0 %v1917
    %1981 = vmatprep.subr.mxu0 0.0
    %1982 = vmatpush1.msra.mxu0 %v1879
    %1983 = vmatprep.subr.mxu0 0.0
    %1984 = vmatpush2.msra.mxu0 0.0
    %1985 = vmatprep.subr.mxu0 0.0
    %1986 = vmatpush2.msra.mxu0 0.0
    %1987 = vmatprep.subr.mxu0 0.0
    %1988 = vmatpush2.msra.mxu0 0.0
    %1989 = vmatprep.subr.mxu0 0.0
    %1990 = vmatpush2.msra.mxu0 0.0
    %1991 = vmatprep.subr.mxu0 0.0
    %1992 = vmatpush2.msra.mxu0 0.0
    %1993 = vmatprep.subr.mxu0 0.0
    %1994 = vmatpush2.msra.mxu0 0.0
    %1995 = vmatprep.subr.mxu0 0.0
    %1996 = vmatpush2.msra.mxu0 0.0
    %1997 = vmatprep.subr.mxu0 0.0
    %1998 = vmatpush2.msra.mxu0 0.0
    %1999 = vmatprep.subr.mxu0 0.0
    %2000 = vmatpush2.msra.mxu0 0.0
    %2001 = vmatprep.subr.mxu0 0.0
    %2002 = vmatpush2.msra.mxu0 0.0
    %2003 = vmatprep.subr.mxu0 0.0
    %2004 = vmatpush2.msra.mxu0 0.0
    %2005 = vmatprep.subr.mxu0 0.0
    %2006 = vmatpush2.msra.mxu0 0.0
    %2007 = vmatprep.subr.mxu0 0.0
    %2008 = vmatpush2.msra.mxu0 0.0
    %2009 = vmatprep.subr.mxu0 0.0
    %2010 = vmatpush2.msra.mxu0 0.0
    %2011 = vmatprep.subr.mxu0 0.0
    %2012 = vmatpush2.msra.mxu0 0.0
    %2013 = vmatprep.subr.mxu0 0.0
    %2014 = vmatpush2.msra.mxu0 0.0
    %2015 = vmatprep.mubr.f32.mxu0 0.0
    %2016 = vmatmul.mubr.f32.gmra.mxu0 %v1949
    %v2017 = vpop.f32.mrf.mxu0
    %v2018 = vadd.f32 %v1946, %v2017
    %v2019 = vpop.f32.mrf.mxu0
    %2020 = vdwg.mxu0
    %v2021 = vsel %vm909, %v1538, 0.0
    %v2022 = vsel %vm674, %v1765, 0.0
    %v2023 = vsel %vm436, %v2018, 0.0
    %2024 = vst [vmem:[#allocation7] sm:$0xff] %v1283
    %2025 = vst [vmem:[#allocation7 + $0x8] sm:$0xff] %v1285
    %2026 = vst [vmem:[#allocation7 + $0x10] sm:$0xff] %v2021
    %2027 = vst [vmem:[#allocation7 + $0x18] sm:$0xff] %v2022
    %2028 = vst [vmem:[#allocation7 + $0x20] sm:$0xff] %v2023
    %s2029 = scalar_lea.vmem [#allocation6], 40
    %v2030 = vld [vmem:[%s2029] sm:$0xff]
    %v2031 = vld [vmem:[%s2029 + $0x8] sm:$0xff]
    %v2032 = vld [vmem:[%s2029 + $0x10] sm:$0xff]
    %v2033 = vld [vmem:[%s2029 + $0x18] sm:$0xff]
    %v2034 = vld [vmem:[%s2029 + $0x20] sm:$0xff]
    %v2036 = vsel %vm436, %v2034, 0
    %2038 = vmatprep.subr.mxu0 0.0
    %2039 = vmatpush1.msra.mxu0 0.0
    %2040 = vmatprep.subr.mxu0 0.0
    %2041 = vmatpush1.msra.mxu0 0.0
    %2042 = vmatprep.subr.mxu0 0.0
    %2043 = vmatpush1.msra.mxu0 0.0
    %2044 = vmatprep.subr.mxu0 0.0
    %2045 = vmatpush1.msra.mxu0 0.0
    %2046 = vmatprep.subr.mxu0 0.0
    %2047 = vmatpush1.msra.mxu0 0.0
    %2048 = vmatprep.subr.mxu0 0.0
    %2049 = vmatpush1.msra.mxu0 0.0
    %2050 = vmatprep.subr.mxu0 0.0
    %2051 = vmatpush1.msra.mxu0 0.0
    %2052 = vmatprep.subr.mxu0 0.0
    %2053 = vmatpush1.msra.mxu0 0.0
    %2054 = vmatprep.subr.mxu0 0.0
    %2055 = vmatpush1.msra.mxu0 0.0
    %2056 = vmatprep.subr.mxu0 0.0
    %2057 = vmatpush1.msra.mxu0 0.0
    %2058 = vmatprep.subr.mxu0 0.0
    %2059 = vmatpush1.msra.mxu0 0.0
    %2060 = vmatprep.subr.mxu0 0.0
    %2061 = vmatpush1.msra.mxu0 0.0
    %2062 = vmatprep.subr.mxu0 0.0
    %2063 = vmatpush1.msra.mxu0 0.0
    %2064 = vmatprep.subr.mxu0 0.0
    %2065 = vmatpush1.msra.mxu0 0.0
    %2066 = vmatprep.subr.mxu0 0.0
    %2067 = vmatpush1.msra.mxu0 0.0
    %2068 = vmatprep.subr.mxu0 0.0
    %2069 = vmatpush1.msra.mxu0 %v442
    %2070 = vmatprep.subr.mxu0 0.0
    %2071 = vmatpush2.msra.mxu0 0.0
    %2072 = vmatprep.subr.mxu0 0.0
    %2073 = vmatpush2.msra.mxu0 0.0
    %2074 = vmatprep.subr.mxu0 0.0
    %2075 = vmatpush2.msra.mxu0 0.0
    %2076 = vmatprep.subr.mxu0 0.0
    %2077 = vmatpush2.msra.mxu0 0.0
    %2078 = vmatprep.subr.mxu0 0.0
    %2079 = vmatpush2.msra.mxu0 0.0
    %2080 = vmatprep.subr.mxu0 0.0
    %2081 = vmatpush2.msra.mxu0 0.0
    %2082 = vmatprep.subr.mxu0 0.0
    %2083 = vmatpush2.msra.mxu0 0.0
    %2084 = vmatprep.subr.mxu0 0.0
    %2085 = vmatpush2.msra.mxu0 0.0
    %2086 = vmatprep.subr.mxu0 0.0
    %2087 = vmatpush2.msra.mxu0 0.0
    %2088 = vmatprep.subr.mxu0 0.0
    %2089 = vmatpush2.msra.mxu0 0.0
    %2090 = vmatprep.subr.mxu0 0.0
    %2091 = vmatpush2.msra.mxu0 0.0
    %2092 = vmatprep.subr.mxu0 0.0
    %2093 = vmatpush2.msra.mxu0 0.0
    %2094 = vmatprep.subr.mxu0 0.0
    %2095 = vmatpush2.msra.mxu0 0.0
    %2096 = vmatprep.subr.mxu0 0.0
    %2097 = vmatpush2.msra.mxu0 0.0
    %2098 = vmatprep.subr.mxu0 0.0
    %2099 = vmatpush2.msra.mxu0 0.0
    %2100 = vmatprep.subr.mxu0 0.0
    %2101 = vmatpush2.msra.mxu0 0.0
    %2102 = vmatprep.mubr.f32.mxu0 0.0
    %2103 = vmatmul.mubr.f32.gmra.mxu0 %v2036
    %v2104 = vpop.f32.mrf.mxu0
    %v2105 = vadd.f32 0.0, %v2104
    %v2106 = vpop.f32.mrf.mxu0
    %2107 = vdwg.mxu0
    %s2108 = sld [smem:[#allocation2]]
    %s2109 = sld [smem:[#allocation2 + $0x1]]
    %v2110 = vstv %s2108
    %v2111 = vmul.f32 %v2110, %v2033
    %v2112 = vstv %s2109
    %v2113 = vmul.f32 %v2112, %v2105
    %v2114 = vadd.f32 %v2111, %v2113
    %v2115 = vld [vmem:[%s2] sm:$0xff]
    %v2116 = vld [vmem:[%s3] sm:$0xff]
    %2118 = vrot.lane.b32.xlu0 %v2114, 5
    %v2119 = vpop.permute.xlu0 %2118
    %v2121 = vsel %vm527, 0.0, %v2119
    %v2122 = vsel %vm529, %v2121, 0.0
    %v2123 = vmul.f32 %v2122, %v55
    %v2124 = vmul.f32 %v2122, %v534
    %v2125 = vmul.f32 %v2122, %v539
    %v2126 = vmul.f32 %v2122, %v544
    %v2127 = vmul.f32 %v2122, %v549
    %v2128 = vmul.f32 %v2122, %v554
    %v2129 = vmul.f32 %v2122, %v559
    %v2130 = vmul.f32 %v2122, %v564
    %2132 = vrot.lane.b32.xlu0 %v2124, 127
    %v2133 = vpop.permute.xlu0 %2132
    %2136 = vrot.lane.b32.xlu0 %v2125, 126
    %v2137 = vpop.permute.xlu0 %2136
    %2140 = vrot.lane.b32.xlu0 %v2126, 124
    %v2141 = vpop.permute.xlu0 %2140
    %2144 = vrot.lane.b32.xlu0 %v2127, 122
    %v2145 = vpop.permute.xlu0 %2144
    %2148 = vrot.lane.b32.xlu0 %v2128, 120
    %v2149 = vpop.permute.xlu0 %2148
    %2152 = vrot.lane.b32.xlu0 %v2129, 119
    %v2153 = vpop.permute.xlu0 %2152
    %2156 = vrot.lane.b32.xlu0 %v2130, 118
    %v2157 = vpop.permute.xlu0 %2156
    %2160 = vset.pattern.permute.xlu0 0
    %2161 = vperm.xlu0 %2160, %v2116
    %v2162 = vpop.permute.xlu0 %2161
    %v2165 = vsel %vm600, %v2115, 0
    %2167 = vmatprep.subr.mxu0 0.0
    %2168 = vmatpush1.msra.mxu0 0.0
    %2169 = vmatprep.subr.mxu0 0.0
    %2170 = vmatpush1.msra.mxu0 0.0
    %2171 = vmatprep.subr.mxu0 0.0
    %2172 = vmatpush1.msra.mxu0 0.0
    %2173 = vmatprep.subr.mxu0 0.0
    %2174 = vmatpush1.msra.mxu0 0.0
    %2175 = vmatprep.subr.mxu0 0.0
    %2176 = vmatpush1.msra.mxu0 0.0
    %2177 = vmatprep.subr.mxu0 0.0
    %2178 = vmatpush1.msra.mxu0 0.0
    %2179 = vmatprep.subr.mxu0 0.0
    %2180 = vmatpush1.msra.mxu0 0.0
    %2181 = vmatprep.subr.mxu0 0.0
    %2182 = vmatpush1.msra.mxu0 %v2157
    %2183 = vmatprep.subr.mxu0 0.0
    %2184 = vmatpush1.msra.mxu0 %v2153
    %2185 = vmatprep.subr.mxu0 0.0
    %2186 = vmatpush1.msra.mxu0 %v2149
    %2187 = vmatprep.subr.mxu0 0.0
    %2188 = vmatpush1.msra.mxu0 %v2145
    %2189 = vmatprep.subr.mxu0 0.0
    %2190 = vmatpush1.msra.mxu0 %v2114
    %2191 = vmatprep.subr.mxu0 0.0
    %2192 = vmatpush1.msra.mxu0 %v2141
    %2193 = vmatprep.subr.mxu0 0.0
    %2194 = vmatpush1.msra.mxu0 %v2137
    %2195 = vmatprep.subr.mxu0 0.0
    %2196 = vmatpush1.msra.mxu0 %v2133
    %2197 = vmatprep.subr.mxu0 0.0
    %2198 = vmatpush1.msra.mxu0 %v2123
    %2199 = vmatprep.subr.mxu0 0.0
    %2200 = vmatpush2.msra.mxu0 0.0
    %2201 = vmatprep.subr.mxu0 0.0
    %2202 = vmatpush2.msra.mxu0 0.0
    %2203 = vmatprep.subr.mxu0 0.0
    %2204 = vmatpush2.msra.mxu0 0.0
    %2205 = vmatprep.subr.mxu0 0.0
    %2206 = vmatpush2.msra.mxu0 0.0
    %2207 = vmatprep.subr.mxu0 0.0
    %2208 = vmatpush2.msra.mxu0 0.0
    %2209 = vmatprep.subr.mxu0 0.0
    %2210 = vmatpush2.msra.mxu0 0.0
    %2211 = vmatprep.subr.mxu0 0.0
    %2212 = vmatpush2.msra.mxu0 0.0
    %2213 = vmatprep.subr.mxu0 0.0
    %2214 = vmatpush2.msra.mxu0 0.0
    %2215 = vmatprep.subr.mxu0 0.0
    %2216 = vmatpush2.msra.mxu0 0.0
    %2217 = vmatprep.subr.mxu0 0.0
    %2218 = vmatpush2.msra.mxu0 0.0
    %2219 = vmatprep.subr.mxu0 0.0
    %2220 = vmatpush2.msra.mxu0 0.0
    %2221 = vmatprep.subr.mxu0 0.0
    %2222 = vmatpush2.msra.mxu0 0.0
    %2223 = vmatprep.subr.mxu0 0.0
    %2224 = vmatpush2.msra.mxu0 0.0
    %2225 = vmatprep.subr.mxu0 0.0
    %2226 = vmatpush2.msra.mxu0 0.0
    %2227 = vmatprep.subr.mxu0 0.0
    %2228 = vmatpush2.msra.mxu0 0.0
    %2229 = vmatprep.subr.mxu0 0.0
    %2230 = vmatpush2.msra.mxu0 0.0
    %2231 = vmatprep.mubr.f32.mxu0 0.0
    %2232 = vmatmul.mubr.f32.gmra.mxu0 %v2165
    %v2233 = vpop.f32.mrf.mxu0
    %v2234 = vadd.f32 %v2162, %v2233
    %v2235 = vpop.f32.mrf.mxu0
    %2236 = vdwg.mxu0
    %v2238 = vsel %vm674, %v2234, 0
    %2240 = vmatprep.subr.mxu0 0.0
    %2241 = vmatpush1.msra.mxu0 0.0
    %2242 = vmatprep.subr.mxu0 0.0
    %2243 = vmatpush1.msra.mxu0 0.0
    %2244 = vmatprep.subr.mxu0 0.0
    %2245 = vmatpush1.msra.mxu0 0.0
    %2246 = vmatprep.subr.mxu0 0.0
    %2247 = vmatpush1.msra.mxu0 0.0
    %2248 = vmatprep.subr.mxu0 0.0
    %2249 = vmatpush1.msra.mxu0 0.0
    %2250 = vmatprep.subr.mxu0 0.0
    %2251 = vmatpush1.msra.mxu0 0.0
    %2252 = vmatprep.subr.mxu0 0.0
    %2253 = vmatpush1.msra.mxu0 0.0
    %2254 = vmatprep.subr.mxu0 0.0
    %2255 = vmatpush1.msra.mxu0 0.0
    %2256 = vmatprep.subr.mxu0 0.0
    %2257 = vmatpush1.msra.mxu0 0.0
    %2258 = vmatprep.subr.mxu0 0.0
    %2259 = vmatpush1.msra.mxu0 0.0
    %2260 = vmatprep.subr.mxu0 0.0
    %2261 = vmatpush1.msra.mxu0 0.0
    %2262 = vmatprep.subr.mxu0 0.0
    %2263 = vmatpush1.msra.mxu0 0.0
    %2264 = vmatprep.subr.mxu0 0.0
    %2265 = vmatpush1.msra.mxu0 0.0
    %2266 = vmatprep.subr.mxu0 0.0
    %2267 = vmatpush1.msra.mxu0 0.0
    %2268 = vmatprep.subr.mxu0 0.0
    %2269 = vmatpush1.msra.mxu0 %v258
    %2270 = vmatprep.subr.mxu0 0.0
    %2271 = vmatpush1.msra.mxu0 %v257
    %2272 = vmatprep.subr.mxu0 0.0
    %2273 = vmatpush2.msra.mxu0 0.0
    %2274 = vmatprep.subr.mxu0 0.0
    %2275 = vmatpush2.msra.mxu0 0.0
    %2276 = vmatprep.subr.mxu0 0.0
    %2277 = vmatpush2.msra.mxu0 0.0
    %2278 = vmatprep.subr.mxu0 0.0
    %2279 = vmatpush2.msra.mxu0 0.0
    %2280 = vmatprep.subr.mxu0 0.0
    %2281 = vmatpush2.msra.mxu0 0.0
    %2282 = vmatprep.subr.mxu0 0.0
    %2283 = vmatpush2.msra.mxu0 0.0
    %2284 = vmatprep.subr.mxu0 0.0
    %2285 = vmatpush2.msra.mxu0 0.0
    %2286 = vmatprep.subr.mxu0 0.0
    %2287 = vmatpush2.msra.mxu0 0.0
    %2288 = vmatprep.subr.mxu0 0.0
    %2289 = vmatpush2.msra.mxu0 0.0
    %2290 = vmatprep.subr.mxu0 0.0
    %2291 = vmatpush2.msra.mxu0 0.0
    %2292 = vmatprep.subr.mxu0 0.0
    %2293 = vmatpush2.msra.mxu0 0.0
    %2294 = vmatprep.subr.mxu0 0.0
    %2295 = vmatpush2.msra.mxu0 0.0
    %2296 = vmatprep.subr.mxu0 0.0
    %2297 = vmatpush2.msra.mxu0 0.0
    %2298 = vmatprep.subr.mxu0 0.0
    %2299 = vmatpush2.msra.mxu0 0.0
    %2300 = vmatprep.subr.mxu0 0.0
    %2301 = vmatpush2.msra.mxu0 0.0
    %2302 = vmatprep.subr.mxu0 0.0
    %2303 = vmatpush2.msra.mxu0 0.0
    %2304 = vmatprep.mubr.f32.mxu0 0.0
    %2305 = vmatmul.mubr.f32.gmra.mxu0 %v2238
    %v2306 = vpop.f32.mrf.mxu0
    %v2307 = vadd.f32 0.0, %v2306
    %v2308 = vpop.f32.mrf.mxu0
    %2309 = vdwg.mxu0
    %s2310 = sld [smem:[#allocation2 + $0x3]]
    %s2311 = sld [smem:[#allocation2 + $0x4]]
    %v2312 = vstv %s2310
    %v2313 = vmul.f32 %v2312, %v2032
    %v2314 = vstv %s2311
    %v2315 = vmul.f32 %v2314, %v2307
    %v2316 = vadd.f32 %v2313, %v2315
    %v2317 = vld [vmem:[%s755] sm:$0xff]
    %v2318 = vld [vmem:[%s757] sm:$0xff]
    %2320 = vrot.lane.b32.xlu0 %v2316, 9
    %v2321 = vpop.permute.xlu0 %2320
    %v2323 = vsel %vm763, 0.0, %v2321
    %v2324 = vsel %vm765, %v2323, 0.0
    %v2325 = vmul.f32 %v2324, %v81
    %v2326 = vmul.f32 %v2324, %v770
    %v2327 = vmul.f32 %v2324, %v775
    %v2328 = vmul.f32 %v2324, %v780
    %v2329 = vmul.f32 %v2324, %v785
    %v2330 = vmul.f32 %v2324, %v790
    %v2331 = vmul.f32 %v2324, %v795
    %v2332 = vmul.f32 %v2324, %v800
    %2334 = vrot.lane.b32.xlu0 %v2326, 127
    %v2335 = vpop.permute.xlu0 %2334
    %2338 = vrot.lane.b32.xlu0 %v2327, 126
    %v2339 = vpop.permute.xlu0 %2338
    %2342 = vrot.lane.b32.xlu0 %v2328, 120
    %v2343 = vpop.permute.xlu0 %2342
    %2346 = vrot.lane.b32.xlu0 %v2329, 118
    %v2347 = vpop.permute.xlu0 %2346
    %2350 = vrot.lane.b32.xlu0 %v2330, 112
    %v2351 = vpop.permute.xlu0 %2350
    %2354 = vrot.lane.b32.xlu0 %v2331, 111
    %v2355 = vpop.permute.xlu0 %2354
    %2358 = vrot.lane.b32.xlu0 %v2332, 110
    %v2359 = vpop.permute.xlu0 %2358
    %2362 = vset.pattern.permute.xlu0 0
    %2363 = vperm.xlu0 %2362, %v2318
    %v2364 = vpop.permute.xlu0 %2363
    %v2367 = vsel %vm600, %v2317, 0
    %2369 = vmatprep.subr.mxu0 0.0
    %2370 = vmatpush1.msra.mxu0 0.0
    %2371 = vmatprep.subr.mxu0 0.0
    %2372 = vmatpush1.msra.mxu0 0.0
    %2373 = vmatprep.subr.mxu0 0.0
    %2374 = vmatpush1.msra.mxu0 0.0
    %2375 = vmatprep.subr.mxu0 0.0
    %2376 = vmatpush1.msra.mxu0 0.0
    %2377 = vmatprep.subr.mxu0 0.0
    %2378 = vmatpush1.msra.mxu0 0.0
    %2379 = vmatprep.subr.mxu0 0.0
    %2380 = vmatpush1.msra.mxu0 0.0
    %2381 = vmatprep.subr.mxu0 0.0
    %2382 = vmatpush1.msra.mxu0 0.0
    %2383 = vmatprep.subr.mxu0 0.0
    %2384 = vmatpush1.msra.mxu0 %v2359
    %2385 = vmatprep.subr.mxu0 0.0
    %2386 = vmatpush1.msra.mxu0 %v2355
    %2387 = vmatprep.subr.mxu0 0.0
    %2388 = vmatpush1.msra.mxu0 %v2351
    %2389 = vmatprep.subr.mxu0 0.0
    %2390 = vmatpush1.msra.mxu0 %v2347
    %2391 = vmatprep.subr.mxu0 0.0
    %2392 = vmatpush1.msra.mxu0 %v2316
    %2393 = vmatprep.subr.mxu0 0.0
    %2394 = vmatpush1.msra.mxu0 %v2343
    %2395 = vmatprep.subr.mxu0 0.0
    %2396 = vmatpush1.msra.mxu0 %v2339
    %2397 = vmatprep.subr.mxu0 0.0
    %2398 = vmatpush1.msra.mxu0 %v2335
    %2399 = vmatprep.subr.mxu0 0.0
    %2400 = vmatpush1.msra.mxu0 %v2325
    %2401 = vmatprep.subr.mxu0 0.0
    %2402 = vmatpush2.msra.mxu0 0.0
    %2403 = vmatprep.subr.mxu0 0.0
    %2404 = vmatpush2.msra.mxu0 0.0
    %2405 = vmatprep.subr.mxu0 0.0
    %2406 = vmatpush2.msra.mxu0 0.0
    %2407 = vmatprep.subr.mxu0 0.0
    %2408 = vmatpush2.msra.mxu0 0.0
    %2409 = vmatprep.subr.mxu0 0.0
    %2410 = vmatpush2.msra.mxu0 0.0
    %2411 = vmatprep.subr.mxu0 0.0
    %2412 = vmatpush2.msra.mxu0 0.0
    %2413 = vmatprep.subr.mxu0 0.0
    %2414 = vmatpush2.msra.mxu0 0.0
    %2415 = vmatprep.subr.mxu0 0.0
    %2416 = vmatpush2.msra.mxu0 0.0
    %2417 = vmatprep.subr.mxu0 0.0
    %2418 = vmatpush2.msra.mxu0 0.0
    %2419 = vmatprep.subr.mxu0 0.0
    %2420 = vmatpush2.msra.mxu0 0.0
    %2421 = vmatprep.subr.mxu0 0.0
    %2422 = vmatpush2.msra.mxu0 0.0
    %2423 = vmatprep.subr.mxu0 0.0
    %2424 = vmatpush2.msra.mxu0 0.0
    %2425 = vmatprep.subr.mxu0 0.0
    %2426 = vmatpush2.msra.mxu0 0.0
    %2427 = vmatprep.subr.mxu0 0.0
    %2428 = vmatpush2.msra.mxu0 0.0
    %2429 = vmatprep.subr.mxu0 0.0
    %2430 = vmatpush2.msra.mxu0 0.0
    %2431 = vmatprep.subr.mxu0 0.0
    %2432 = vmatpush2.msra.mxu0 0.0
    %2433 = vmatprep.mubr.f32.mxu0 0.0
    %2434 = vmatmul.mubr.f32.gmra.mxu0 %v2367
    %v2435 = vpop.f32.mrf.mxu0
    %v2436 = vadd.f32 %v2364, %v2435
    %v2437 = vpop.f32.mrf.mxu0
    %2438 = vdwg.mxu0
    %v2440 = vsel %vm909, %v2436, 0
    %2442 = vmatprep.subr.mxu0 0.0
    %2443 = vmatpush1.msra.mxu0 0.0
    %2444 = vmatprep.subr.mxu0 0.0
    %2445 = vmatpush1.msra.mxu0 0.0
    %2446 = vmatprep.subr.mxu0 0.0
    %2447 = vmatpush1.msra.mxu0 0.0
    %2448 = vmatprep.subr.mxu0 0.0
    %2449 = vmatpush1.msra.mxu0 0.0
    %2450 = vmatprep.subr.mxu0 0.0
    %2451 = vmatpush1.msra.mxu0 0.0
    %2452 = vmatprep.subr.mxu0 0.0
    %2453 = vmatpush1.msra.mxu0 0.0
    %2454 = vmatprep.subr.mxu0 0.0
    %2455 = vmatpush1.msra.mxu0 0.0
    %2456 = vmatprep.subr.mxu0 0.0
    %2457 = vmatpush1.msra.mxu0 0.0
    %2458 = vmatprep.subr.mxu0 %v246
    %2459 = vmatpush1.msra.mxu0 %v245
    %2460 = vmatprep.subr.mxu0 %v244
    %2461 = vmatpush1.msra.mxu0 %v243
    %2462 = vmatprep.subr.mxu0 %v242
    %2463 = vmatpush1.msra.mxu0 %v241
    %2464 = vmatprep.subr.mxu0 %v240
    %2465 = vmatpush1.msra.mxu0 %v239
    %2466 = vmatprep.subr.mxu0 %v238
    %2467 = vmatpush1.msra.mxu0 %v237
    %2468 = vmatprep.subr.mxu0 %v236
    %2469 = vmatpush1.msra.mxu0 %v235
    %2470 = vmatprep.subr.mxu0 %v234
    %2471 = vmatpush1.msra.mxu0 %v233
    %2472 = vmatprep.subr.mxu0 %v232
    %2473 = vmatpush1.msra.mxu0 %v231
    %2474 = vmatprep.subr.mxu0 0.0
    %2475 = vmatpush2.msra.mxu0 0.0
    %2476 = vmatprep.subr.mxu0 0.0
    %2477 = vmatpush2.msra.mxu0 0.0
    %2478 = vmatprep.subr.mxu0 0.0
    %2479 = vmatpush2.msra.mxu0 0.0
    %2480 = vmatprep.subr.mxu0 0.0
    %2481 = vmatpush2.msra.mxu0 0.0
    %2482 = vmatprep.subr.mxu0 0.0
    %2483 = vmatpush2.msra.mxu0 0.0
    %2484 = vmatprep.subr.mxu0 0.0
    %2485 = vmatpush2.msra.mxu0 0.0
    %2486 = vmatprep.subr.mxu0 0.0
    %2487 = vmatpush2.msra.mxu0 0.0
    %2488 = vmatprep.subr.mxu0 0.0
    %2489 = vmatpush2.msra.mxu0 0.0
    %2490 = vmatprep.subr.mxu0 0.0
    %2491 = vmatpush2.msra.mxu0 0.0
    %2492 = vmatprep.subr.mxu0 0.0
    %2493 = vmatpush2.msra.mxu0 0.0
    %2494 = vmatprep.subr.mxu0 0.0
    %2495 = vmatpush2.msra.mxu0 0.0
    %2496 = vmatprep.subr.mxu0 0.0
    %2497 = vmatpush2.msra.mxu0 0.0
    %2498 = vmatprep.subr.mxu0 0.0
    %2499 = vmatpush2.msra.mxu0 0.0
    %2500 = vmatprep.subr.mxu0 0.0
    %2501 = vmatpush2.msra.mxu0 0.0
    %2502 = vmatprep.subr.mxu0 0.0
    %2503 = vmatpush2.msra.mxu0 0.0
    %2504 = vmatprep.subr.mxu0 0.0
    %2505 = vmatpush2.msra.mxu0 0.0
    %2506 = vmatprep.mubr.f32.mxu0 0.0
    %2507 = vmatmul.mubr.f32.gmra.mxu0 %v2440
    %v2508 = vpop.f32.mrf.mxu0
    %v2509 = vadd.f32 0.0, %v2508
    %v2510 = vpop.f32.mrf.mxu0
    %v2511 = vadd.f32 0.0, %v2510
    %2512 = vdwg.mxu0
    %s2513 = sld [smem:[#allocation2 + $0x6]]
    %s2514 = sld [smem:[#allocation2 + $0x7]]
    %v2515 = vstv %s2513
    %v2516 = vmul.f32 %v2515, %v2030
    %v2517 = vmul.f32 %v2515, %v2031
    %v2518 = vstv %s2514
    %v2519 = vmul.f32 %v2518, %v2509
    %v2520 = vmul.f32 %v2518, %v2511
    %v2521 = vadd.f32 %v2516, %v2519
    %v2522 = vadd.f32 %v2517, %v2520
    %v2523 = vld [vmem:[%s994] sm:$0xff]
    %v2524 = vld [vmem:[%s996] sm:$0xff]
    %2527 = vrot.lane.b32.xlu0 %v2521, 17
    %v2528 = vpop.permute.xlu0 %2527
    %2529 = vrot.lane.b32.xlu0 %v2522, 17
    %v2530 = vpop.permute.xlu0 %2529
    %v2531 = vsel %vm1004, %v2528, %v2530
    %v2535 = vsel %vm1004, 0.0, %v2528
    %v2536 = vsel %vm1004, %v2530, 0.0
    %v2537 = vmul.f32 %v2535, %v116
    %v2538 = vmul.f32 %v2531, %v117
    %v2539 = vmul.f32 %v2535, %v1016
    %v2540 = vmul.f32 %v2531, %v1020
    %v2541 = vmul.f32 %v2536, %v1018
    %v2542 = vmul.f32 %v2535, %v1030
    %v2543 = vmul.f32 %v2531, %v1034
    %v2544 = vmul.f32 %v2536, %v1032
    %v2545 = vmul.f32 %v2535, %v1044
    %v2546 = vmul.f32 %v2531, %v1047
    %v2547 = vmul.f32 %v2536, %v1046
    %v2548 = vmul.f32 %v2535, %v1057
    %v2549 = vmul.f32 %v2531, %v1061
    %v2550 = vmul.f32 %v2536, %v1059
    %v2551 = vmul.f32 %v2535, %v1071
    %v2552 = vmul.f32 %v2531, %v1075
    %v2553 = vmul.f32 %v2536, %v1073
    %v2554 = vmul.f32 %v2535, %v1085
    %v2555 = vmul.f32 %v2531, %v1089
    %v2556 = vmul.f32 %v2536, %v1087
    %v2557 = vmul.f32 %v2535, %v1099
    %v2558 = vmul.f32 %v2531, %v1103
    %v2559 = vmul.f32 %v2536, %v1101
    %2563 = vrot.lane.b32.xlu0 %v2539, 127
    %v2564 = vpop.permute.xlu0 %2563
    %2565 = vrot.lane.b32.xlu0 %v2540, 127
    %v2566 = vpop.permute.xlu0 %2565
    %2567 = vrot.lane.b32.xlu0 %v2541, 127
    %v2568 = vpop.permute.xlu0 %2567
    %v2569 = vsel %vm1119, %v2564, %v2566
    %v2570 = vsel %vm1119, %v2566, %v2568
    %2576 = vrot.lane.b32.xlu0 %v2542, 126
    %v2577 = vpop.permute.xlu0 %2576
    %2578 = vrot.lane.b32.xlu0 %v2543, 126
    %v2579 = vpop.permute.xlu0 %2578
    %2580 = vrot.lane.b32.xlu0 %v2544, 126
    %v2581 = vpop.permute.xlu0 %2580
    %v2582 = vsel %vm1133, %v2577, %v2579
    %v2583 = vsel %vm1133, %v2579, %v2581
    %2589 = vrot.lane.b32.xlu0 %v2545, 112
    %v2590 = vpop.permute.xlu0 %2589
    %2591 = vrot.lane.b32.xlu0 %v2546, 112
    %v2592 = vpop.permute.xlu0 %2591
    %2593 = vrot.lane.b32.xlu0 %v2547, 112
    %v2594 = vpop.permute.xlu0 %2593
    %v2595 = vsel %vm1147, %v2590, %v2592
    %v2596 = vsel %vm1147, %v2592, %v2594
    %2602 = vrot.lane.b32.xlu0 %v2548, 110
    %v2603 = vpop.permute.xlu0 %2602
    %2604 = vrot.lane.b32.xlu0 %v2549, 110
    %v2605 = vpop.permute.xlu0 %2604
    %2606 = vrot.lane.b32.xlu0 %v2550, 110
    %v2607 = vpop.permute.xlu0 %2606
    %v2608 = vsel %vm1161, %v2603, %v2605
    %v2609 = vsel %vm1161, %v2605, %v2607
    %2615 = vrot.lane.b32.xlu0 %v2551, 96
    %v2616 = vpop.permute.xlu0 %2615
    %2617 = vrot.lane.b32.xlu0 %v2552, 96
    %v2618 = vpop.permute.xlu0 %2617
    %2619 = vrot.lane.b32.xlu0 %v2553, 96
    %v2620 = vpop.permute.xlu0 %2619
    %v2621 = vsel %vm1175, %v2616, %v2618
    %v2622 = vsel %vm1175, %v2618, %v2620
    %2628 = vrot.lane.b32.xlu0 %v2554, 95
    %v2629 = vpop.permute.xlu0 %2628
    %2630 = vrot.lane.b32.xlu0 %v2555, 95
    %v2631 = vpop.permute.xlu0 %2630
    %2632 = vrot.lane.b32.xlu0 %v2556, 95
    %v2633 = vpop.permute.xlu0 %2632
    %v2634 = vsel %vm1189, %v2629, %v2631
    %v2635 = vsel %vm1189, %v2631, %v2633
    %2641 = vrot.lane.b32.xlu0 %v2557, 94
    %v2642 = vpop.permute.xlu0 %2641
    %2643 = vrot.lane.b32.xlu0 %v2558, 94
    %v2644 = vpop.permute.xlu0 %2643
    %2645 = vrot.lane.b32.xlu0 %v2559, 94
    %v2646 = vpop.permute.xlu0 %2645
    %v2647 = vsel %vm1203, %v2642, %v2644
    %v2648 = vsel %vm1203, %v2644, %v2646
    %2652 = vset.pattern.permute.xlu0 0
    %2653 = vperm.xlu0 %2652, %v2524
    %v2654 = vpop.permute.xlu0 %2653
    %v2657 = vsel %vm600, %v2523, 0
    %2659 = vmatprep.subr.mxu0 0.0
    %2660 = vmatpush1.msra.mxu0 0.0
    %2661 = vmatprep.subr.mxu0 0.0
    %2662 = vmatpush1.msra.mxu0 0.0
    %2663 = vmatprep.subr.mxu0 0.0
    %2664 = vmatpush1.msra.mxu0 0.0
    %2665 = vmatprep.subr.mxu0 0.0
    %2666 = vmatpush1.msra.mxu0 0.0
    %2667 = vmatprep.subr.mxu0 0.0
    %2668 = vmatpush1.msra.mxu0 0.0
    %2669 = vmatprep.subr.mxu0 0.0
    %2670 = vmatpush1.msra.mxu0 0.0
    %2671 = vmatprep.subr.mxu0 0.0
    %2672 = vmatpush1.msra.mxu0 0.0
    %2673 = vmatprep.subr.mxu0 %v2648
    %2674 = vmatpush1.msra.mxu0 %v2647
    %2675 = vmatprep.subr.mxu0 %v2635
    %2676 = vmatpush1.msra.mxu0 %v2634
    %2677 = vmatprep.subr.mxu0 %v2622
    %2678 = vmatpush1.msra.mxu0 %v2621
    %2679 = vmatprep.subr.mxu0 %v2609
    %2680 = vmatpush1.msra.mxu0 %v2608
    %2681 = vmatprep.subr.mxu0 %v2522
    %2682 = vmatpush1.msra.mxu0 %v2521
    %2683 = vmatprep.subr.mxu0 %v2596
    %2684 = vmatpush1.msra.mxu0 %v2595
    %2685 = vmatprep.subr.mxu0 %v2583
    %2686 = vmatpush1.msra.mxu0 %v2582
    %2687 = vmatprep.subr.mxu0 %v2570
    %2688 = vmatpush1.msra.mxu0 %v2569
    %2689 = vmatprep.subr.mxu0 %v2538
    %2690 = vmatpush1.msra.mxu0 %v2537
    %2691 = vmatprep.subr.mxu0 0.0
    %2692 = vmatpush2.msra.mxu0 0.0
    %2693 = vmatprep.subr.mxu0 0.0
    %2694 = vmatpush2.msra.mxu0 0.0
    %2695 = vmatprep.subr.mxu0 0.0
    %2696 = vmatpush2.msra.mxu0 0.0
    %2697 = vmatprep.subr.mxu0 0.0
    %2698 = vmatpush2.msra.mxu0 0.0
    %2699 = vmatprep.subr.mxu0 0.0
    %2700 = vmatpush2.msra.mxu0 0.0
    %2701 = vmatprep.subr.mxu0 0.0
    %2702 = vmatpush2.msra.mxu0 0.0
    %2703 = vmatprep.subr.mxu0 0.0
    %2704 = vmatpush2.msra.mxu0 0.0
    %2705 = vmatprep.subr.mxu0 0.0
    %2706 = vmatpush2.msra.mxu0 0.0
    %2707 = vmatprep.subr.mxu0 0.0
    %2708 = vmatpush2.msra.mxu0 0.0
    %2709 = vmatprep.subr.mxu0 0.0
    %2710 = vmatpush2.msra.mxu0 0.0
    %2711 = vmatprep.subr.mxu0 0.0
    %2712 = vmatpush2.msra.mxu0 0.0
    %2713 = vmatprep.subr.mxu0 0.0
    %2714 = vmatpush2.msra.mxu0 0.0
    %2715 = vmatprep.subr.mxu0 0.0
    %2716 = vmatpush2.msra.mxu0 0.0
    %2717 = vmatprep.subr.mxu0 0.0
    %2718 = vmatpush2.msra.mxu0 0.0
    %2719 = vmatprep.subr.mxu0 0.0
    %2720 = vmatpush2.msra.mxu0 0.0
    %2721 = vmatprep.subr.mxu0 0.0
    %2722 = vmatpush2.msra.mxu0 0.0
    %2723 = vmatprep.mubr.f32.mxu0 0.0
    %2724 = vmatmul.mubr.f32.gmra.mxu0 %v2657
    %v2725 = vpop.f32.mrf.mxu0
    %v2726 = vadd.f32 %v2654, %v2725
    %v2727 = vpop.f32.mrf.mxu0
    %v2728 = vadd.f32 %v2654, %v2727
    %2729 = vdwg.mxu0
    %2732 = vrot.lane.b32.xlu0 %v2726, 17
    %v2733 = vpop.permute.xlu0 %2732
    %2734 = vrot.lane.b32.xlu0 %v2728, 17
    %v2735 = vpop.permute.xlu0 %2734
    %v2736 = vsel %vm1004, %v2733, %v2735
    %v2739 = vsel %vm1004, 0.0, %v2733
    %v2740 = vsel %vm1004, %v2735, 0.0
    %2743 = vrot.lane.b32.xlu0 %v2739, 110
    %v2744 = vpop.permute.xlu0 %2743
    %2745 = vrot.lane.b32.xlu0 %v2736, 110
    %v2746 = vpop.permute.xlu0 %2745
    %2747 = vrot.lane.b32.xlu0 %v2740, 110
    %v2748 = vpop.permute.xlu0 %2747
    %v2749 = vsel %vm1161, %v2744, %v2746
    %v2750 = vsel %vm1161, %v2746, %v2748
    %v2753 = vmax.f32 %v2726, %v2749
    %v2754 = vmax.f32 %v2728, %v2750
    %2755 = vrot.lane.b32.xlu0 %v2739, 95
    %v2756 = vpop.permute.xlu0 %2755
    %2757 = vrot.lane.b32.xlu0 %v2736, 95
    %v2758 = vpop.permute.xlu0 %2757
    %2759 = vrot.lane.b32.xlu0 %v2740, 95
    %v2760 = vpop.permute.xlu0 %2759
    %v2761 = vsel %vm1189, %v2756, %v2758
    %v2762 = vsel %vm1189, %v2758, %v2760
    %v2765 = vmax.f32 %v2753, %v2761
    %v2766 = vmax.f32 %v2754, %v2762
    %2767 = vrot.lane.b32.xlu0 %v2739, 94
    %v2768 = vpop.permute.xlu0 %2767
    %2769 = vrot.lane.b32.xlu0 %v2736, 94
    %v2770 = vpop.permute.xlu0 %2769
    %2771 = vrot.lane.b32.xlu0 %v2740, 94
    %v2772 = vpop.permute.xlu0 %2771
    %v2773 = vsel %vm1203, %v2768, %v2770
    %v2774 = vsel %vm1203, %v2770, %v2772
    %v2777 = vmax.f32 %v2765, %v2773
    %v2778 = vmax.f32 %v2766, %v2774
    %2779 = vmatprep.subr.mxu0 0.0
    %2780 = vmatpush1.msra.mxu0 %v375
    %2781 = vmatprep.subr.mxu0 0.0
    %2782 = vmatpush1.msra.mxu0 %v374
    %2783 = vmatprep.subr.mxu0 0.0
    %2784 = vmatpush1.msra.mxu0 %v373
    %2785 = vmatprep.subr.mxu0 0.0
    %2786 = vmatpush1.msra.mxu0 %v372
    %2787 = vmatprep.subr.mxu0 0.0
    %2788 = vmatpush1.msra.mxu0 %v371
    %2789 = vmatprep.subr.mxu0 0.0
    %2790 = vmatpush1.msra.mxu0 %v370
    %2791 = vmatprep.subr.mxu0 0.0
    %2792 = vmatpush1.msra.mxu0 %v369
    %2793 = vmatprep.subr.mxu0 0.0
    %2794 = vmatpush1.msra.mxu0 %v368
    %2795 = vmatprep.subr.mxu0 0.0
    %2796 = vmatpush1.msra.mxu0 %v367
    %2797 = vmatprep.subr.mxu0 0.0
    %2798 = vmatpush1.msra.mxu0 %v366
    %2799 = vmatprep.subr.mxu0 0.0
    %2800 = vmatpush1.msra.mxu0 %v365
    %2801 = vmatprep.subr.mxu0 0.0
    %2802 = vmatpush1.msra.mxu0 %v364
    %2803 = vmatprep.subr.mxu0 0.0
    %2804 = vmatpush1.msra.mxu0 %v363
    %2805 = vmatprep.subr.mxu0 0.0
    %2806 = vmatpush1.msra.mxu0 %v362
    %2807 = vmatprep.subr.mxu0 0.0
    %2808 = vmatpush1.msra.mxu0 %v361
    %2809 = vmatprep.subr.mxu0 0.0
    %2810 = vmatpush1.msra.mxu0 %v360
    %2811 = vmatprep.subr.mxu0 0.0
    %2812 = vmatpush2.msra.mxu0 %v391
    %2813 = vmatprep.subr.mxu0 0.0
    %2814 = vmatpush2.msra.mxu0 %v390
    %2815 = vmatprep.subr.mxu0 0.0
    %2816 = vmatpush2.msra.mxu0 %v389
    %2817 = vmatprep.subr.mxu0 0.0
    %2818 = vmatpush2.msra.mxu0 %v388
    %2819 = vmatprep.subr.mxu0 0.0
    %2820 = vmatpush2.msra.mxu0 %v387
    %2821 = vmatprep.subr.mxu0 0.0
    %2822 = vmatpush2.msra.mxu0 %v386
    %2823 = vmatprep.subr.mxu0 0.0
    %2824 = vmatpush2.msra.mxu0 %v385
    %2825 = vmatprep.subr.mxu0 0.0
    %2826 = vmatpush2.msra.mxu0 %v384
    %2827 = vmatprep.subr.mxu0 0.0
    %2828 = vmatpush2.msra.mxu0 %v383
    %2829 = vmatprep.subr.mxu0 0.0
    %2830 = vmatpush2.msra.mxu0 %v382
    %2831 = vmatprep.subr.mxu0 0.0
    %2832 = vmatpush2.msra.mxu0 %v381
    %2833 = vmatprep.subr.mxu0 0.0
    %2834 = vmatpush2.msra.mxu0 %v380
    %2835 = vmatprep.subr.mxu0 0.0
    %2836 = vmatpush2.msra.mxu0 %v379
    %2837 = vmatprep.subr.mxu0 0.0
    %2838 = vmatpush2.msra.mxu0 %v378
    %2839 = vmatprep.subr.mxu0 0.0
    %2840 = vmatpush2.msra.mxu0 %v377
    %2841 = vmatprep.subr.mxu0 0.0
    %2842 = vmatpush2.msra.mxu0 %v376
    %2843 = vmatprep.mubr.f32.mxu0 %v2778
    %2844 = vmatmul.mubr.f32.gmra.mxu0 %v2777
    %v2845 = vpop.f32.mrf.mxu0
    %v2846 = vadd.f32 0.0, %v2845
    %v2847 = vpop.f32.mrf.mxu0
    %2848 = vdwg.mxu0
    %s2849 = sld [smem:[#allocation2 + $0x9]]
    %s2850 = sld [smem:[#allocation2 + $0xa]]
    %s2851 = sld [smem:[#allocation2 + $0xb]]
    %v2852 = vstv %s2849
    %v2853 = vmul.f32 %v2852, %v2436
    %v2854 = vstv %s2850
    %v2855 = vmul.f32 %v2854, %v2846
    %v2856 = vadd.f32 %v2853, %v2855
    %v2857 = vstv %s2851
    %v2858 = vmul.f32 %v2857, %v2032
    %v2859 = vadd.f32 %v2856, %v2858
    %v2860 = vld [vmem:[%s1417] sm:$0xff]
    %v2861 = vld [vmem:[%s1419] sm:$0xff]
    %2863 = vrot.lane.b32.xlu0 %v2859, 9
    %v2864 = vpop.permute.xlu0 %2863
    %v2866 = vsel %vm763, 0.0, %v2864
    %v2867 = vsel %vm765, %v2866, 0.0
    %v2868 = vmul.f32 %v2867, %v81
    %v2869 = vmul.f32 %v2867, %v770
    %v2870 = vmul.f32 %v2867, %v775
    %v2871 = vmul.f32 %v2867, %v780
    %v2872 = vmul.f32 %v2867, %v785
    %v2873 = vmul.f32 %v2867, %v790
    %v2874 = vmul.f32 %v2867, %v795
    %v2875 = vmul.f32 %v2867, %v800
    %2877 = vrot.lane.b32.xlu0 %v2869, 127
    %v2878 = vpop.permute.xlu0 %2877
    %2881 = vrot.lane.b32.xlu0 %v2870, 126
    %v2882 = vpop.permute.xlu0 %2881
    %2885 = vrot.lane.b32.xlu0 %v2871, 120
    %v2886 = vpop.permute.xlu0 %2885
    %2889 = vrot.lane.b32.xlu0 %v2872, 118
    %v2890 = vpop.permute.xlu0 %2889
    %2893 = vrot.lane.b32.xlu0 %v2873, 112
    %v2894 = vpop.permute.xlu0 %2893
    %2897 = vrot.lane.b32.xlu0 %v2874, 111
    %v2898 = vpop.permute.xlu0 %2897
    %2901 = vrot.lane.b32.xlu0 %v2875, 110
    %v2902 = vpop.permute.xlu0 %2901
    %2905 = vset.pattern.permute.xlu0 0
    %2906 = vperm.xlu0 %2905, %v2861
    %v2907 = vpop.permute.xlu0 %2906
    %v2910 = vsel %vm600, %v2860, 0
    %2912 = vmatprep.subr.mxu0 0.0
    %2913 = vmatpush1.msra.mxu0 0.0
    %2914 = vmatprep.subr.mxu0 0.0
    %2915 = vmatpush1.msra.mxu0 0.0
    %2916 = vmatprep.subr.mxu0 0.0
    %2917 = vmatpush1.msra.mxu0 0.0
    %2918 = vmatprep.subr.mxu0 0.0
    %2919 = vmatpush1.msra.mxu0 0.0
    %2920 = vmatprep.subr.mxu0 0.0
    %2921 = vmatpush1.msra.mxu0 0.0
    %2922 = vmatprep.subr.mxu0 0.0
    %2923 = vmatpush1.msra.mxu0 0.0
    %2924 = vmatprep.subr.mxu0 0.0
    %2925 = vmatpush1.msra.mxu0 0.0
    %2926 = vmatprep.subr.mxu0 0.0
    %2927 = vmatpush1.msra.mxu0 %v2902
    %2928 = vmatprep.subr.mxu0 0.0
    %2929 = vmatpush1.msra.mxu0 %v2898
    %2930 = vmatprep.subr.mxu0 0.0
    %2931 = vmatpush1.msra.mxu0 %v2894
    %2932 = vmatprep.subr.mxu0 0.0
    %2933 = vmatpush1.msra.mxu0 %v2890
    %2934 = vmatprep.subr.mxu0 0.0
    %2935 = vmatpush1.msra.mxu0 %v2859
    %2936 = vmatprep.subr.mxu0 0.0
    %2937 = vmatpush1.msra.mxu0 %v2886
    %2938 = vmatprep.subr.mxu0 0.0
    %2939 = vmatpush1.msra.mxu0 %v2882
    %2940 = vmatprep.subr.mxu0 0.0
    %2941 = vmatpush1.msra.mxu0 %v2878
    %2942 = vmatprep.subr.mxu0 0.0
    %2943 = vmatpush1.msra.mxu0 %v2868
    %2944 = vmatprep.subr.mxu0 0.0
    %2945 = vmatpush2.msra.mxu0 0.0
    %2946 = vmatprep.subr.mxu0 0.0
    %2947 = vmatpush2.msra.mxu0 0.0
    %2948 = vmatprep.subr.mxu0 0.0
    %2949 = vmatpush2.msra.mxu0 0.0
    %2950 = vmatprep.subr.mxu0 0.0
    %2951 = vmatpush2.msra.mxu0 0.0
    %2952 = vmatprep.subr.mxu0 0.0
    %2953 = vmatpush2.msra.mxu0 0.0
    %2954 = vmatprep.subr.mxu0 0.0
    %2955 = vmatpush2.msra.mxu0 0.0
    %2956 = vmatprep.subr.mxu0 0.0
    %2957 = vmatpush2.msra.mxu0 0.0
    %2958 = vmatprep.subr.mxu0 0.0
    %2959 = vmatpush2.msra.mxu0 0.0
    %2960 = vmatprep.subr.mxu0 0.0
    %2961 = vmatpush2.msra.mxu0 0.0
    %2962 = vmatprep.subr.mxu0 0.0
    %2963 = vmatpush2.msra.mxu0 0.0
    %2964 = vmatprep.subr.mxu0 0.0
    %2965 = vmatpush2.msra.mxu0 0.0
    %2966 = vmatprep.subr.mxu0 0.0
    %2967 = vmatpush2.msra.mxu0 0.0
    %2968 = vmatprep.subr.mxu0 0.0
    %2969 = vmatpush2.msra.mxu0 0.0
    %2970 = vmatprep.subr.mxu0 0.0
    %2971 = vmatpush2.msra.mxu0 0.0
    %2972 = vmatprep.subr.mxu0 0.0
    %2973 = vmatpush2.msra.mxu0 0.0
    %2974 = vmatprep.subr.mxu0 0.0
    %2975 = vmatpush2.msra.mxu0 0.0
    %2976 = vmatprep.mubr.f32.mxu0 0.0
    %2977 = vmatmul.mubr.f32.gmra.mxu0 %v2910
    %v2978 = vpop.f32.mrf.mxu0
    %v2979 = vadd.f32 %v2907, %v2978
    %v2980 = vpop.f32.mrf.mxu0
    %2981 = vdwg.mxu0
    %2983 = vrot.lane.b32.xlu0 %v2979, 9
    %v2984 = vpop.permute.xlu0 %2983
    %v2986 = vsel %vm763, 0.0, %v2984
    %v2987 = vsel %vm765, %v2986, 0.0
    %2989 = vrot.lane.b32.xlu0 %v2987, 118
    %v2990 = vpop.permute.xlu0 %2989
    %v2992 = vmax.f32 %v2979, %v2990
    %2993 = vrot.lane.b32.xlu0 %v2987, 111
    %v2994 = vpop.permute.xlu0 %2993
    %v2996 = vmax.f32 %v2992, %v2994
    %2997 = vrot.lane.b32.xlu0 %v2987, 110
    %v2998 = vpop.permute.xlu0 %2997
    %v3000 = vmax.f32 %v2996, %v2998
    %v3002 = vsel %vm909, %v3000, 0
    %3004 = vmatprep.subr.mxu0 0.0
    %3005 = vmatpush1.msra.mxu0 0.0
    %3006 = vmatprep.subr.mxu0 0.0
    %3007 = vmatpush1.msra.mxu0 0.0
    %3008 = vmatprep.subr.mxu0 0.0
    %3009 = vmatpush1.msra.mxu0 0.0
    %3010 = vmatprep.subr.mxu0 0.0
    %3011 = vmatpush1.msra.mxu0 0.0
    %3012 = vmatprep.subr.mxu0 0.0
    %3013 = vmatpush1.msra.mxu0 0.0
    %3014 = vmatprep.subr.mxu0 0.0
    %3015 = vmatpush1.msra.mxu0 0.0
    %3016 = vmatprep.subr.mxu0 0.0
    %3017 = vmatpush1.msra.mxu0 0.0
    %3018 = vmatprep.subr.mxu0 0.0
    %3019 = vmatpush1.msra.mxu0 0.0
    %3020 = vmatprep.subr.mxu0 0.0
    %3021 = vmatpush1.msra.mxu0 %v419
    %3022 = vmatprep.subr.mxu0 0.0
    %3023 = vmatpush1.msra.mxu0 %v418
    %3024 = vmatprep.subr.mxu0 0.0
    %3025 = vmatpush1.msra.mxu0 %v417
    %3026 = vmatprep.subr.mxu0 0.0
    %3027 = vmatpush1.msra.mxu0 %v416
    %3028 = vmatprep.subr.mxu0 0.0
    %3029 = vmatpush1.msra.mxu0 %v415
    %3030 = vmatprep.subr.mxu0 0.0
    %3031 = vmatpush1.msra.mxu0 %v414
    %3032 = vmatprep.subr.mxu0 0.0
    %3033 = vmatpush1.msra.mxu0 %v413
    %3034 = vmatprep.subr.mxu0 0.0
    %3035 = vmatpush1.msra.mxu0 %v412
    %3036 = vmatprep.subr.mxu0 0.0
    %3037 = vmatpush2.msra.mxu0 0.0
    %3038 = vmatprep.subr.mxu0 0.0
    %3039 = vmatpush2.msra.mxu0 0.0
    %3040 = vmatprep.subr.mxu0 0.0
    %3041 = vmatpush2.msra.mxu0 0.0
    %3042 = vmatprep.subr.mxu0 0.0
    %3043 = vmatpush2.msra.mxu0 0.0
    %3044 = vmatprep.subr.mxu0 0.0
    %3045 = vmatpush2.msra.mxu0 0.0
    %3046 = vmatprep.subr.mxu0 0.0
    %3047 = vmatpush2.msra.mxu0 0.0
    %3048 = vmatprep.subr.mxu0 0.0
    %3049 = vmatpush2.msra.mxu0 0.0
    %3050 = vmatprep.subr.mxu0 0.0
    %3051 = vmatpush2.msra.mxu0 0.0
    %3052 = vmatprep.subr.mxu0 0.0
    %3053 = vmatpush2.msra.mxu0 0.0
    %3054 = vmatprep.subr.mxu0 0.0
    %3055 = vmatpush2.msra.mxu0 0.0
    %3056 = vmatprep.subr.mxu0 0.0
    %3057 = vmatpush2.msra.mxu0 0.0
    %3058 = vmatprep.subr.mxu0 0.0
    %3059 = vmatpush2.msra.mxu0 0.0
    %3060 = vmatprep.subr.mxu0 0.0
    %3061 = vmatpush2.msra.mxu0 0.0
    %3062 = vmatprep.subr.mxu0 0.0
    %3063 = vmatpush2.msra.mxu0 0.0
    %3064 = vmatprep.subr.mxu0 0.0
    %3065 = vmatpush2.msra.mxu0 0.0
    %3066 = vmatprep.subr.mxu0 0.0
    %3067 = vmatpush2.msra.mxu0 0.0
    %3068 = vmatprep.mubr.f32.mxu0 0.0
    %3069 = vmatmul.mubr.f32.gmra.mxu0 %v3002
    %v3070 = vpop.f32.mrf.mxu0
    %v3071 = vadd.f32 0.0, %v3070
    %v3072 = vpop.f32.mrf.mxu0
    %3073 = vdwg.mxu0
    %s3074 = sld [smem:[#allocation2 + $0xc]]
    %s3075 = sld [smem:[#allocation2 + $0xd]]
    %s3076 = sld [smem:[#allocation2 + $0xe]]
    %v3077 = vstv %s3074
    %v3078 = vmul.f32 %v3077, %v2234
    %v3079 = vstv %s3075
    %v3080 = vmul.f32 %v3079, %v3071
    %v3081 = vadd.f32 %v3078, %v3080
    %v3082 = vstv %s3076
    %v3083 = vmul.f32 %v3082, %v2033
    %v3084 = vadd.f32 %v3081, %v3083
    %v3085 = vld [vmem:[%s1644] sm:$0xff]
    %v3086 = vld [vmem:[%s1646] sm:$0xff]
    %3088 = vrot.lane.b32.xlu0 %v3084, 5
    %v3089 = vpop.permute.xlu0 %3088
    %v3091 = vsel %vm527, 0.0, %v3089
    %v3092 = vsel %vm529, %v3091, 0.0
    %v3093 = vmul.f32 %v3092, %v55
    %v3094 = vmul.f32 %v3092, %v534
    %v3095 = vmul.f32 %v3092, %v539
    %v3096 = vmul.f32 %v3092, %v544
    %v3097 = vmul.f32 %v3092, %v549
    %v3098 = vmul.f32 %v3092, %v554
    %v3099 = vmul.f32 %v3092, %v559
    %v3100 = vmul.f32 %v3092, %v564
    %3102 = vrot.lane.b32.xlu0 %v3094, 127
    %v3103 = vpop.permute.xlu0 %3102
    %3106 = vrot.lane.b32.xlu0 %v3095, 126
    %v3107 = vpop.permute.xlu0 %3106
    %3110 = vrot.lane.b32.xlu0 %v3096, 124
    %v3111 = vpop.permute.xlu0 %3110
    %3114 = vrot.lane.b32.xlu0 %v3097, 122
    %v3115 = vpop.permute.xlu0 %3114
    %3118 = vrot.lane.b32.xlu0 %v3098, 120
    %v3119 = vpop.permute.xlu0 %3118
    %3122 = vrot.lane.b32.xlu0 %v3099, 119
    %v3123 = vpop.permute.xlu0 %3122
    %3126 = vrot.lane.b32.xlu0 %v3100, 118
    %v3127 = vpop.permute.xlu0 %3126
    %3130 = vset.pattern.permute.xlu0 0
    %3131 = vperm.xlu0 %3130, %v3086
    %v3132 = vpop.permute.xlu0 %3131
    %v3135 = vsel %vm600, %v3085, 0
    %3137 = vmatprep.subr.mxu0 0.0
    %3138 = vmatpush1.msra.mxu0 0.0
    %3139 = vmatprep.subr.mxu0 0.0
    %3140 = vmatpush1.msra.mxu0 0.0
    %3141 = vmatprep.subr.mxu0 0.0
    %3142 = vmatpush1.msra.mxu0 0.0
    %3143 = vmatprep.subr.mxu0 0.0
    %3144 = vmatpush1.msra.mxu0 0.0
    %3145 = vmatprep.subr.mxu0 0.0
    %3146 = vmatpush1.msra.mxu0 0.0
    %3147 = vmatprep.subr.mxu0 0.0
    %3148 = vmatpush1.msra.mxu0 0.0
    %3149 = vmatprep.subr.mxu0 0.0
    %3150 = vmatpush1.msra.mxu0 0.0
    %3151 = vmatprep.subr.mxu0 0.0
    %3152 = vmatpush1.msra.mxu0 %v3127
    %3153 = vmatprep.subr.mxu0 0.0
    %3154 = vmatpush1.msra.mxu0 %v3123
    %3155 = vmatprep.subr.mxu0 0.0
    %3156 = vmatpush1.msra.mxu0 %v3119
    %3157 = vmatprep.subr.mxu0 0.0
    %3158 = vmatpush1.msra.mxu0 %v3115
    %3159 = vmatprep.subr.mxu0 0.0
    %3160 = vmatpush1.msra.mxu0 %v3084
    %3161 = vmatprep.subr.mxu0 0.0
    %3162 = vmatpush1.msra.mxu0 %v3111
    %3163 = vmatprep.subr.mxu0 0.0
    %3164 = vmatpush1.msra.mxu0 %v3107
    %3165 = vmatprep.subr.mxu0 0.0
    %3166 = vmatpush1.msra.mxu0 %v3103
    %3167 = vmatprep.subr.mxu0 0.0
    %3168 = vmatpush1.msra.mxu0 %v3093
    %3169 = vmatprep.subr.mxu0 0.0
    %3170 = vmatpush2.msra.mxu0 0.0
    %3171 = vmatprep.subr.mxu0 0.0
    %3172 = vmatpush2.msra.mxu0 0.0
    %3173 = vmatprep.subr.mxu0 0.0
    %3174 = vmatpush2.msra.mxu0 0.0
    %3175 = vmatprep.subr.mxu0 0.0
    %3176 = vmatpush2.msra.mxu0 0.0
    %3177 = vmatprep.subr.mxu0 0.0
    %3178 = vmatpush2.msra.mxu0 0.0
    %3179 = vmatprep.subr.mxu0 0.0
    %3180 = vmatpush2.msra.mxu0 0.0
    %3181 = vmatprep.subr.mxu0 0.0
    %3182 = vmatpush2.msra.mxu0 0.0
    %3183 = vmatprep.subr.mxu0 0.0
    %3184 = vmatpush2.msra.mxu0 0.0
    %3185 = vmatprep.subr.mxu0 0.0
    %3186 = vmatpush2.msra.mxu0 0.0
    %3187 = vmatprep.subr.mxu0 0.0
    %3188 = vmatpush2.msra.mxu0 0.0
    %3189 = vmatprep.subr.mxu0 0.0
    %3190 = vmatpush2.msra.mxu0 0.0
    %3191 = vmatprep.subr.mxu0 0.0
    %3192 = vmatpush2.msra.mxu0 0.0
    %3193 = vmatprep.subr.mxu0 0.0
    %3194 = vmatpush2.msra.mxu0 0.0
    %3195 = vmatprep.subr.mxu0 0.0
    %3196 = vmatpush2.msra.mxu0 0.0
    %3197 = vmatprep.subr.mxu0 0.0
    %3198 = vmatpush2.msra.mxu0 0.0
    %3199 = vmatprep.subr.mxu0 0.0
    %3200 = vmatpush2.msra.mxu0 0.0
    %3201 = vmatprep.mubr.f32.mxu0 0.0
    %3202 = vmatmul.mubr.f32.gmra.mxu0 %v3135
    %v3203 = vpop.f32.mrf.mxu0
    %v3204 = vadd.f32 %v3132, %v3203
    %v3205 = vpop.f32.mrf.mxu0
    %3206 = vdwg.mxu0
    %3208 = vrot.lane.b32.xlu0 %v3204, 5
    %v3209 = vpop.permute.xlu0 %3208
    %v3211 = vsel %vm527, 0.0, %v3209
    %v3212 = vsel %vm529, %v3211, 0.0
    %3214 = vrot.lane.b32.xlu0 %v3212, 122
    %v3215 = vpop.permute.xlu0 %3214
    %v3217 = vmax.f32 %v3204, %v3215
    %3218 = vrot.lane.b32.xlu0 %v3212, 119
    %v3219 = vpop.permute.xlu0 %3218
    %v3221 = vmax.f32 %v3217, %v3219
    %3222 = vrot.lane.b32.xlu0 %v3212, 118
    %v3223 = vpop.permute.xlu0 %3222
    %v3225 = vmax.f32 %v3221, %v3223
    %v3227 = vsel %vm674, %v3225, 0
    %3229 = vmatprep.subr.mxu0 0.0
    %3230 = vmatpush1.msra.mxu0 0.0
    %3231 = vmatprep.subr.mxu0 0.0
    %3232 = vmatpush1.msra.mxu0 0.0
    %3233 = vmatprep.subr.mxu0 0.0
    %3234 = vmatpush1.msra.mxu0 0.0
    %3235 = vmatprep.subr.mxu0 0.0
    %3236 = vmatpush1.msra.mxu0 0.0
    %3237 = vmatprep.subr.mxu0 0.0
    %3238 = vmatpush1.msra.mxu0 0.0
    %3239 = vmatprep.subr.mxu0 0.0
    %3240 = vmatpush1.msra.mxu0 0.0
    %3241 = vmatprep.subr.mxu0 0.0
    %3242 = vmatpush1.msra.mxu0 0.0
    %3243 = vmatprep.subr.mxu0 0.0
    %3244 = vmatpush1.msra.mxu0 0.0
    %3245 = vmatprep.subr.mxu0 0.0
    %3246 = vmatpush1.msra.mxu0 0.0
    %3247 = vmatprep.subr.mxu0 0.0
    %3248 = vmatpush1.msra.mxu0 0.0
    %3249 = vmatprep.subr.mxu0 0.0
    %3250 = vmatpush1.msra.mxu0 0.0
    %3251 = vmatprep.subr.mxu0 0.0
    %3252 = vmatpush1.msra.mxu0 0.0
    %3253 = vmatprep.subr.mxu0 0.0
    %3254 = vmatpush1.msra.mxu0 0.0
    %3255 = vmatprep.subr.mxu0 0.0
    %3256 = vmatpush1.msra.mxu0 0.0
    %3257 = vmatprep.subr.mxu0 0.0
    %3258 = vmatpush1.msra.mxu0 %v430
    %3259 = vmatprep.subr.mxu0 0.0
    %3260 = vmatpush1.msra.mxu0 %v429
    %3261 = vmatprep.subr.mxu0 0.0
    %3262 = vmatpush2.msra.mxu0 0.0
    %3263 = vmatprep.subr.mxu0 0.0
    %3264 = vmatpush2.msra.mxu0 0.0
    %3265 = vmatprep.subr.mxu0 0.0
    %3266 = vmatpush2.msra.mxu0 0.0
    %3267 = vmatprep.subr.mxu0 0.0
    %3268 = vmatpush2.msra.mxu0 0.0
    %3269 = vmatprep.subr.mxu0 0.0
    %3270 = vmatpush2.msra.mxu0 0.0
    %3271 = vmatprep.subr.mxu0 0.0
    %3272 = vmatpush2.msra.mxu0 0.0
    %3273 = vmatprep.subr.mxu0 0.0
    %3274 = vmatpush2.msra.mxu0 0.0
    %3275 = vmatprep.subr.mxu0 0.0
    %3276 = vmatpush2.msra.mxu0 0.0
    %3277 = vmatprep.subr.mxu0 0.0
    %3278 = vmatpush2.msra.mxu0 0.0
    %3279 = vmatprep.subr.mxu0 0.0
    %3280 = vmatpush2.msra.mxu0 0.0
    %3281 = vmatprep.subr.mxu0 0.0
    %3282 = vmatpush2.msra.mxu0 0.0
    %3283 = vmatprep.subr.mxu0 0.0
    %3284 = vmatpush2.msra.mxu0 0.0
    %3285 = vmatprep.subr.mxu0 0.0
    %3286 = vmatpush2.msra.mxu0 0.0
    %3287 = vmatprep.subr.mxu0 0.0
    %3288 = vmatpush2.msra.mxu0 0.0
    %3289 = vmatprep.subr.mxu0 0.0
    %3290 = vmatpush2.msra.mxu0 0.0
    %3291 = vmatprep.subr.mxu0 0.0
    %3292 = vmatpush2.msra.mxu0 0.0
    %3293 = vmatprep.mubr.f32.mxu0 0.0
    %3294 = vmatmul.mubr.f32.gmra.mxu0 %v3227
    %v3295 = vpop.f32.mrf.mxu0
    %v3296 = vadd.f32 0.0, %v3295
    %v3297 = vpop.f32.mrf.mxu0
    %3298 = vdwg.mxu0
    %s3299 = sld [smem:[#allocation2 + $0xf]]
    %s3300 = sld [smem:[#allocation2 + $0x10]]
    %v3301 = vstv %s3299
    %v3302 = vmul.f32 %v3301, %v2034
    %v3303 = vstv %s3300
    %v3304 = vmul.f32 %v3303, %v3296
    %v3305 = vadd.f32 %v3302, %v3304
    %v3306 = vld [vmem:[%s1867] sm:$0xff]
    %v3307 = vld [vmem:[%s1869] sm:$0xff]
    %3309 = vrot.lane.b32.xlu0 %v3305, 3
    %v3310 = vpop.permute.xlu0 %3309
    %v3312 = vsel %vm1875, 0.0, %v3310
    %v3313 = vsel %vm1877, %v3312, 0.0
    %v3314 = vmul.f32 %v3313, %v160
    %v3315 = vmul.f32 %v3313, %v1882
    %v3316 = vmul.f32 %v3313, %v1887
    %v3317 = vmul.f32 %v3313, %v1892
    %v3318 = vmul.f32 %v3313, %v1897
    %v3319 = vmul.f32 %v3313, %v1902
    %v3320 = vmul.f32 %v3313, %v1907
    %v3321 = vmul.f32 %v3313, %v1912
    %3323 = vrot.lane.b32.xlu0 %v3315, 127
    %v3324 = vpop.permute.xlu0 %3323
    %3327 = vrot.lane.b32.xlu0 %v3316, 126
    %v3328 = vpop.permute.xlu0 %3327
    %3331 = vrot.lane.b32.xlu0 %v3317, 126
    %v3332 = vpop.permute.xlu0 %3331
    %3335 = vrot.lane.b32.xlu0 %v3318, 124
    %v3336 = vpop.permute.xlu0 %3335
    %3339 = vrot.lane.b32.xlu0 %v3319, 124
    %v3340 = vpop.permute.xlu0 %3339
    %3343 = vrot.lane.b32.xlu0 %v3320, 123
    %v3344 = vpop.permute.xlu0 %3343
    %3347 = vrot.lane.b32.xlu0 %v3321, 122
    %v3348 = vpop.permute.xlu0 %3347
    %3351 = vset.pattern.permute.xlu0 0
    %3352 = vperm.xlu0 %3351, %v3307
    %v3353 = vpop.permute.xlu0 %3352
    %v3356 = vsel %vm600, %v3306, 0
    %3358 = vmatprep.subr.mxu0 0.0
    %3359 = vmatpush1.msra.mxu0 0.0
    %3360 = vmatprep.subr.mxu0 0.0
    %3361 = vmatpush1.msra.mxu0 0.0
    %3362 = vmatprep.subr.mxu0 0.0
    %3363 = vmatpush1.msra.mxu0 0.0
    %3364 = vmatprep.subr.mxu0 0.0
    %3365 = vmatpush1.msra.mxu0 0.0
    %3366 = vmatprep.subr.mxu0 0.0
    %3367 = vmatpush1.msra.mxu0 0.0
    %3368 = vmatprep.subr.mxu0 0.0
    %3369 = vmatpush1.msra.mxu0 0.0
    %3370 = vmatprep.subr.mxu0 0.0
    %3371 = vmatpush1.msra.mxu0 0.0
    %3372 = vmatprep.subr.mxu0 0.0
    %3373 = vmatpush1.msra.mxu0 %v3348
    %3374 = vmatprep.subr.mxu0 0.0
    %3375 = vmatpush1.msra.mxu0 %v3344
    %3376 = vmatprep.subr.mxu0 0.0
    %3377 = vmatpush1.msra.mxu0 %v3340
    %3378 = vmatprep.subr.mxu0 0.0
    %3379 = vmatpush1.msra.mxu0 %v3336
    %3380 = vmatprep.subr.mxu0 0.0
    %3381 = vmatpush1.msra.mxu0 %v3305
    %3382 = vmatprep.subr.mxu0 0.0
    %3383 = vmatpush1.msra.mxu0 %v3332
    %3384 = vmatprep.subr.mxu0 0.0
    %3385 = vmatpush1.msra.mxu0 %v3328
    %3386 = vmatprep.subr.mxu0 0.0
    %3387 = vmatpush1.msra.mxu0 %v3324
    %3388 = vmatprep.subr.mxu0 0.0
    %3389 = vmatpush1.msra.mxu0 %v3314
    %3390 = vmatprep.subr.mxu0 0.0
    %3391 = vmatpush2.msra.mxu0 0.0
    %3392 = vmatprep.subr.mxu0 0.0
    %3393 = vmatpush2.msra.mxu0 0.0
    %3394 = vmatprep.subr.mxu0 0.0
    %3395 = vmatpush2.msra.mxu0 0.0
    %3396 = vmatprep.subr.mxu0 0.0
    %3397 = vmatpush2.msra.mxu0 0.0
    %3398 = vmatprep.subr.mxu0 0.0
    %3399 = vmatpush2.msra.mxu0 0.0
    %3400 = vmatprep.subr.mxu0 0.0
    %3401 = vmatpush2.msra.mxu0 0.0
    %3402 = vmatprep.subr.mxu0 0.0
    %3403 = vmatpush2.msra.mxu0 0.0
    %3404 = vmatprep.subr.mxu0 0.0
    %3405 = vmatpush2.msra.mxu0 0.0
    %3406 = vmatprep.subr.mxu0 0.0
    %3407 = vmatpush2.msra.mxu0 0.0
    %3408 = vmatprep.subr.mxu0 0.0
    %3409 = vmatpush2.msra.mxu0 0.0
    %3410 = vmatprep.subr.mxu0 0.0
    %3411 = vmatpush2.msra.mxu0 0.0
    %3412 = vmatprep.subr.mxu0 0.0
    %3413 = vmatpush2.msra.mxu0 0.0
    %3414 = vmatprep.subr.mxu0 0.0
    %3415 = vmatpush2.msra.mxu0 0.0
    %3416 = vmatprep.subr.mxu0 0.0
    %3417 = vmatpush2.msra.mxu0 0.0
    %3418 = vmatprep.subr.mxu0 0.0
    %3419 = vmatpush2.msra.mxu0 0.0
    %3420 = vmatprep.subr.mxu0 0.0
    %3421 = vmatpush2.msra.mxu0 0.0
    %3422 = vmatprep.mubr.f32.mxu0 0.0
    %3423 = vmatmul.mubr.f32.gmra.mxu0 %v3356
    %v3424 = vpop.f32.mrf.mxu0
    %v3425 = vadd.f32 %v3353, %v3424
    %v3426 = vpop.f32.mrf.mxu0
    %3427 = vdwg.mxu0
    %v3428 = vsel %vm909, %v2979, 0.0
    %v3429 = vsel %vm674, %v3204, 0.0
    %v3430 = vsel %vm436, %v3425, 0.0
    %s3431 = scalar_lea.vmem [#allocation7], 40
    %3432 = vst [vmem:[%s3431] sm:$0xff] %v2726
    %3433 = vst [vmem:[%s3431 + $0x8] sm:$0xff] %v2728
    %3434 = vst [vmem:[%s3431 + $0x10] sm:$0xff] %v3428
    %3435 = vst [vmem:[%s3431 + $0x18] sm:$0xff] %v3429
    %3436 = vst [vmem:[%s3431 + $0x20] sm:$0xff] %v3430
    // Predicated region
    $region26: #{tpu_custom_call.1} parent=1 // pred_check
      _
    $region27: #{tpu_custom_call.1} parent=1 // pred_check_branch
      %3438 = sbr.rel (0) target = $region29
    $region28: #{tpu_custom_call.1} parent=1 // pred_region
      %s3440 = ssub.s32 1280, 1280
      %3441 = vsyncadd [#allocation4], %s3440
      %s3442 = sshll.u32 [#allocation7], 4
      %s3443 = int_to_ptr.vmem [resolvable:$true] %s3442
      %3448 = dma.vmem_to_hbm [thread:$0]  %s3443, 1280, %s4, [#allocation4], 640, 640, 40
    $region29: #{tpu_custom_call.1} parent=1 // pred_fallthru
      _
    // Predicated region
    $region30: #{tpu_custom_call.1} parent=1 // pred_check
      _
    $region31: #{tpu_custom_call.1} parent=1 // pred_check_branch
      %3450 = sbr.rel (0) target = $region33
    $region32: #{tpu_custom_call.1} parent=1 // pred_region
      %3451 = dma.done [#allocation4], 1280
    $region33: #{tpu_custom_call.1} parent=1 // pred_fallthru
      _
    %3452 = vsyncpa [#allocation3], 1
    %3453 = vsyncpa [#allocation4], 1
    %3454 = vsyncpa [#allocation5], 1

</llo_original>
